<compile_context>
chip_gen: v7x
topology: tpu7x:2x2x1
jax: 0.10.0
libtpu: 0.0.40
codegen_flags: <defaults>
</compile_context>

<pallas_src>
import functools
import math

import numpy as np

import jax
import jax.numpy as jnp
from jax import lax
from jax.experimental import pallas as pl
from jax.experimental.pallas import tpu as pltpu


def _round_up(a, m):
    return ((a + m - 1) // m) * m


def _vmem_capacity_bytes():
    """Per-core VMEM capacity; used to derive block sizes per TPU generation."""
    try:
        info = pltpu.get_tpu_info()
        for name in ("vmem_capacity_bytes", "vmem_size_bytes", "vmem_bytes"):
            v = getattr(info, name, None)
            if v:
                return int(v)
    except Exception:
        pass
    return 128 * 1024 * 1024        # v5e / v6e default; v7x is 64 MiB per TensorCore


# ------------------------- fused kernel -------------------------

def _fused_kernel(*refs, expand, use_res, stride, dilation, H, W, pad, wp):
    if expand:
        (xc_ref, xh_ref, code_ref, w1_ref, b1_ref,
         wd_ref, bd_ref, w3_ref, b3_ref, o_ref, xb_ref) = refs
    else:
        xc_ref, xh_ref, wd_ref, bd_ref, w3_ref, b3_ref, o_ref, xb_ref = refs

    th_out, w_out, c_out = o_ref.shape
    inter = wd_ref.shape[-1]
    ksize = wd_ref.shape[0]
    n_core = xc_ref.shape[0]
    n_halo = xh_ref.shape[0]
    L = xb_ref.shape[0]
    acc_cols = wp if stride == 1 else w_out
    n_acc = th_out * acc_cols

    r = pl.program_id(1)
    row0 = r * (th_out * stride)        # first padded input row of this block

    # Assemble the haloed, flat (rows * Wp, Cin) input window in VMEM scratch:
    # core rows + halo rows + one zero row (tap overhang of the last output row).
    xb_ref[0:n_core, :] = xc_ref[...]
    xb_ref[n_core:n_core + n_halo, :] = xh_ref[...]
    xb_ref[n_core + n_halo:, :] = jnp.zeros(
        (L - n_core - n_halo, xb_ref.shape[1]), xb_ref.dtype)
    xb = xb_ref[...]

    # ---- stage 1: 1x1 expand conv + BN + ReLU6 -------------------------------------
    # One flat (rows*Wp, Cin) x (Cin, inter) MXU matmul; the expanded activation lives
    # only in VMEM/vregs for this row block and never touches HBM.
    if expand:
        e = jnp.dot(xb, w1_ref[...], preferred_element_type=jnp.float32)
        e = jnp.clip(e + b1_ref[...], 0.0, 6.0)
        # Re-zero the conv zero-padding border (expanding a zero row is relu6(bias)!=0).
        # Cheap mask: precomputed row/col code, 1 add + 2 compares + 1 full-size select.
        grow = code_ref[...] + row0
        e = jnp.where((grow >= pad) & (grow < H + pad), e, 0.0)
    else:
        e = xb.astype(jnp.float32)       # zero padding is already exactly zero here

    # ---- stage 2: 3x3 depthwise conv + BN + ReLU6 (VPU, 9 shifted MAC taps) ---------
    wd = wd_ref[...].astype(jnp.float32)
    if stride == 1:
        acc = jnp.zeros((n_acc, inter), jnp.float32)
        for kh in range(ksize):
            for kw in range(ksize):
                off = (kh * wp + kw) * dilation
                acc = acc + e[off:off + n_acc, :] * wd[kh, kw][None, :]
    else:
        # TODO(synk): de-interleave the W axis once per block instead of 9 strided
        # sublane slices (stride==2 path, not exercised by the tests below).
        e3 = e.reshape(L // wp, wp, inter)
        acc3 = jnp.zeros((th_out, w_out, inter), jnp.float32)
        for kh in range(ksize):
            for kw in range(ksize):
                h0 = kh * dilation
                w0 = kw * dilation
                patch = e3[h0:h0 + (th_out - 1) * stride + 1:stride,
                           w0:w0 + (w_out - 1) * stride + 1:stride, :]
                acc3 = acc3 + patch * wd[kh, kw][None, None, :]
        acc = acc3.reshape(n_acc, inter)
    acc = jnp.clip(acc + bd_ref[...], 0.0, 6.0)

    # ---- stage 3: 1x1 project conv + BN (+ residual) -- one flat MXU matmul ---------
    if w3_ref.dtype != jnp.float32:      # bf16 storage path (inference only)
        acc = acc.astype(w3_ref.dtype)
    out = jnp.dot(acc, w3_ref[...], preferred_element_type=jnp.float32) + b3_ref[...]
    if use_res:
        # Residual from the already-loaded haloed block (stride == 1 by construction).
        out = out + xb[pad * (wp + 1):pad * (wp + 1) + n_acc, :].astype(jnp.float32)
    out = out.astype(o_ref.dtype)

    # Per-row store: drops the padded junk columns of the flat layout; slice starts are
    # sublane aligned for stride==1 because wp % 8 == 0.
    # TODO(synk): lane-dense (row, W*C) folded store (sublane->lane relayout) skipped.
    for h in range(th_out):
        o_ref[h, :, :] = out[h * acc_cols:h * acc_cols + w_out, :]


# ------------------------- wrapper -------------------------

def _fused_inverted_residual(x_nhwc, params, *, stride, dilation, expand,
                             use_res, ksize=3, block_rows=None,
                             vmem_limit_bytes=None):
    N, H, W, Cin = x_nhwc.shape
    pad = dilation
    eff = dilation * (ksize - 1) + 1
    H_out = (H + 2 * pad - eff) // stride + 1
    W_out = (W + 2 * pad - eff) // stride + 1
    inter = params['w_dw'].shape[-1]
    Cout = params['w3'].shape[-1]
    Wp = _round_up(W + 2 * pad, 8)              # sublane-aligned padded width
    itemsize = jnp.dtype(x_nhwc.dtype).itemsize
    w_itemsize = jnp.dtype(params['w_dw'].dtype).itemsize

    vmem_cap = _vmem_capacity_bytes()

    # th_out * stride must be a multiple of 2*pad so every block's halo rows land on a
    # block boundary of the halo BlockSpec (plain Blocked indexing, no pl.Element).
    g = (2 * pad) // math.gcd(stride, 2 * pad)
    if block_rows is None:
        # Per-generation budget for the f32 expanded-activation block (the dominant
        # VMEM-resident tensor): ~VMEM/24, clamped to [2, 8] MiB.
        budget = int(min(8 << 20, max(2 << 20, vmem_cap // 24)))
        rows_budget = max(1, budget // max(1, Wp * inter * 4))
        block_rows = max(1, (rows_budget - 2 * pad) // stride)
    th_out = min(block_rows, _round_up(H_out, g))
    th_out = max(g, (th_out // g) * g)
    R = pl.cdiv(H_out, th_out)
    B = th_out * stride                          # core input rows consumed per block
    halo = 2 * pad
    L = (B + halo + 1) * Wp                      # flat rows per block (+1 zero overhang row)
    acc_cols = Wp if stride == 1 else W_out

    # Zero-pad once in HBM so every haloed window is in bounds, then view it flat
    # (free reshape): each block is a contiguous run of full padded rows.
    # TODO(synk): fold this pad into the kernel to save one HBM read+write input pass.
    Hp = max(H + 2 * pad, R * B + halo)
    xp = jnp.pad(x_nhwc, ((0, 0), (pad, Hp - H - pad), (pad, Wp - W - pad), (0, 0)))
    xf = xp.reshape(N, Hp * Wp, Cin)

    halo_scale = B // halo
    in_specs = [
        pl.BlockSpec((None, B * Wp, Cin), lambda n, r: (n, r, 0)),
        pl.BlockSpec((None, halo * Wp, Cin),
                     lambda n, r: (n, (r + 1) * halo_scale, 0)),
    ]
    args = [xf, xf]
    if expand:
        # Precomputed border-mask code: local row index where the column is valid,
        # a huge sentinel where it is not (so one compare kills both cases).
        q = np.arange(L)
        col_ok = ((q % Wp) >= pad) & ((q % Wp) < W + pad)
        row_code = np.where(col_ok, q // Wp, 1 << 30).astype(np.int32)[:, None]
        args += [jnp.asarray(row_code), params['w1'], params['b1'].reshape(1, inter)]
        in_specs += [
            pl.BlockSpec((L, 1), lambda n, r: (0, 0)),
            pl.BlockSpec((Cin, inter), lambda n, r: (0, 0)),
            pl.BlockSpec((1, inter), lambda n, r: (0, 0)),
        ]
    args += [params['w_dw'], params['b_dw'].reshape(1, inter),
             params['w3'], params['b3'].reshape(1, Cout)]
    in_specs += [
        pl.BlockSpec((ksize, ksize, inter), lambda n, r: (0, 0, 0)),
        pl.BlockSpec((1, inter), lambda n, r: (0, 0)),
        pl.BlockSpec((inter, Cout), lambda n, r: (0, 0)),
        pl.BlockSpec((1, Cout), lambda n, r: (0, 0)),
    ]

    if vmem_limit_bytes is None:
        est = (2 * (B + halo) * Wp * Cin * itemsize         # haloed input blocks (x2 buf)
               + 2 * th_out * W_out * Cout * itemsize       # output blocks (x2 buf)
               + L * Cin * itemsize                         # xb scratch
               + 2 * (Cin * inter + ksize * ksize * inter + inter * Cout) * w_itemsize
               + 3 * L * inter * 4                          # expanded activation + temps
               + 2 * th_out * acc_cols * inter * 4          # depthwise accumulator + temp
               + th_out * acc_cols * Cout * 4 + 4 * L)
        vmem_limit_bytes = int(min(max(32 << 20, 2 * est), (vmem_cap * 3) // 4))

    kernel = functools.partial(
        _fused_kernel, expand=expand, use_res=use_res, stride=stride,
        dilation=dilation, H=H, W=W, pad=pad, wp=Wp)

    return pl.pallas_call(
        kernel,
        out_shape=jax.ShapeDtypeStruct((N, H_out, W_out, Cout), x_nhwc.dtype),
        grid=(N, R),
        in_specs=in_specs,
        out_specs=pl.BlockSpec((None, th_out, W_out, Cout),
                               lambda n, r: (n, r, 0, 0)),
        scratch_shapes=[pltpu.VMEM((L, Cin), x_nhwc.dtype)],
        compiler_params=pltpu.CompilerParams(
            dimension_semantics=("parallel", "parallel"),
            vmem_limit_bytes=vmem_limit_bytes),
    )(*args)


# ------------------------- module -------------------------

class InvertedResidualPallas:
    """MobileNetV2 InvertedResidual; BN folded (inference).  NCHW __call__ interface;
    use apply_nhwc() to chain layers without paying NCHW<->NHWC transposes per layer.
    On v6e/v7x deployments prefer dtype=jnp.bfloat16 (bf16 MXU, f32 accumulation)."""

    def __init__(self, in_channels, out_channels, stride, expand_ratio,
                 dilation=1, *, key, dtype=jnp.float32, eps=1e-5):
        assert stride in [1, 2]
        self.use_res_connect = stride == 1 and in_channels == out_channels
        self.stride = stride
        self.dilation = dilation
        self.expand_ratio = expand_ratio
        self.dtype = dtype
        inter = int(round(in_channels * expand_ratio))
        self.inter = inter
        self.in_channels = in_channels
        self.out_channels = out_channels

        ks = list(jax.random.split(key, 6))

        def bn_params(k, c):
            k1, k2, k3, k4 = jax.random.split(k, 4)
            gamma = 1.0 + 0.1 * jax.random.normal(k1, (c,), jnp.float32)
            beta = 0.1 * jax.random.normal(k2, (c,), jnp.float32)
            mean = 0.1 * jax.random.normal(k3, (c,), jnp.float32)
            var = jnp.abs(jax.random.normal(k4, (c,), jnp.float32)) + 0.5
            return gamma, beta, mean, var

        def fold(gamma, beta, mean, var):
            scale = gamma / jnp.sqrt(var + eps)
            return scale, beta - mean * scale

        params = {}
        # 1x1 expand conv (torch weight (inter, in, 1, 1)) + BN, folded.
        if expand_ratio != 1:
            w1 = 0.2 * jax.random.normal(ks[0], (inter, in_channels), jnp.float32)
            s1, b1 = fold(*bn_params(ks[1], inter))
            params['w1'] = (w1.T * s1[None, :]).astype(dtype)      # (Cin, inter)
            params['b1'] = b1                                      # f32 (inter,)

        # 3x3 depthwise conv (torch weight (inter, 1, 3, 3)) + BN, folded.
        w_dw = 0.2 * jax.random.normal(ks[2], (3, 3, inter), jnp.float32)
        s2, b2 = fold(*bn_params(ks[3], inter))
        params['w_dw'] = (w_dw * s2[None, None, :]).astype(dtype)  # (3, 3, inter)
        params['b_dw'] = b2                                        # f32 (inter,)

        # 1x1 project conv (torch weight (out, inter, 1, 1), no bias) + BN, folded.
        w3 = 0.2 * jax.random.normal(ks[4], (out_channels, inter), jnp.float32)
        s3, b3 = fold(*bn_params(ks[5], out_channels))
        params['w3'] = (w3.T * s3[None, :]).astype(dtype)          # (inter, out)
        params['b3'] = b3                                          # f32 (out,)
        self.params = params

    def apply_nhwc(self, x_nhwc, *, block_rows=None):
        return _fused_inverted_residual(
            x_nhwc.astype(self.dtype), self.params,
            stride=self.stride, dilation=self.dilation,
            expand=(self.expand_ratio != 1), use_res=self.use_res_connect,
            block_rows=block_rows)

    def __call__(self, x_nchw, *, block_rows=None):
        x = jnp.transpose(x_nchw, (0, 2, 3, 1))     # NCHW -> NHWC
        y = self.apply_nhwc(x, block_rows=block_rows)
        return jnp.transpose(y, (0, 3, 1, 2))       # NHWC -> NCHW


# ------------------------- pure-JAX reference -------------------------

def ref_forward(mod, x_nchw):
    hp = lax.Precision.HIGHEST
    p = {k: v.astype(jnp.float32) for k, v in mod.params.items()}
    x = jnp.transpose(x_nchw, (0, 2, 3, 1)).astype(mod.dtype).astype(jnp.float32)
    y = x
    if mod.expand_ratio != 1:
        y = jnp.clip(jnp.einsum('nhwc,cd->nhwd', y, p['w1'], precision=hp)
                     + p['b1'], 0.0, 6.0)
    pad = mod.dilation
    y = lax.conv_general_dilated(
        y, p['w_dw'][:, :, None, :],                # HWIO (3,3,1,C)
        window_strides=(mod.stride, mod.stride),
        padding=[(pad, pad), (pad, pad)],
        rhs_dilation=(mod.dilation, mod.dilation),
        dimension_numbers=('NHWC', 'HWIO', 'NHWC'),
        feature_group_count=mod.inter,
        precision=hp)
    y = jnp.clip(y + p['b_dw'], 0.0, 6.0)
    y = jnp.einsum('nhwc,cd->nhwd', y, p['w3'], precision=hp) + p['b3']
    if mod.use_res_connect:
        y = y + x
    return jnp.transpose(y, (0, 3, 1, 2))


if __name__ == "__main__":
    key = jax.random.PRNGKey(0)
    k_x, k_p1, k_p2 = jax.random.split(key, 3)

    x = jax.random.normal(k_x, (2, 8, 20, 16), jnp.float32)   # NCHW, like PyTorch

    # Config A: expand path + residual, 3 row blocks per image incl. a partial tail block.
    mod_a = InvertedResidualPallas(8, 8, stride=1, expand_ratio=2, dilation=1, key=k_p1)
    out_a = jax.block_until_ready(mod_a(x, block_rows=8))
    ref_a = ref_forward(mod_a, x)
    assert out_a.shape == ref_a.shape == (2, 8, 20, 16)
    err_a = float(jnp.max(jnp.abs(out_a - ref_a)))
    assert err_a < 2e-4, f"config A max abs err {err_a}"

    # Config B: no-expand path, Cin != Cout (no residual), auto-derived row block.
    mod_b = InvertedResidualPallas(8, 16, stride=1, expand_ratio=1, dilation=1, key=k_p2)
    out_b = jax.block_until_ready(mod_b(x))
    ref_b = ref_forward(mod_b, x)
    assert out_b.shape == ref_b.shape == (2, 16, 20, 16)
    err_b = float(jnp.max(jnp.abs(out_b - ref_b)))
    assert err_b < 2e-4, f"config B max abs err {err_b}"

    # Config C: bf16 storage + f32 accumulation (halves HBM traffic on v6e/v7x).
    mod_c = InvertedResidualPallas(8, 8, stride=1, expand_ratio=2, dilation=1,
                                   key=k_p1, dtype=jnp.bfloat16)
    out_c = jax.block_until_ready(mod_c(x, block_rows=8)).astype(jnp.float32)
    ref_c = ref_forward(mod_c, x)
    err_c = float(jnp.max(jnp.abs(out_c - ref_c)))
    assert err_c < 0.25, f"config C (bf16) max abs err {err_c}"

    print("KERNEL_OK")
</pallas_src>

<mosaic_0001>
module attributes {stable_mosaic.version = 11 : i64} {
  func.func @_fused_kernel(%arg0: i32, %arg1: i32, %arg2: memref<1x192x8xf32, #tpu.memory_space<vmem>>, %arg3: memref<1x48x8xf32, #tpu.memory_space<vmem>>, %arg4: memref<264x1xi32, #tpu.memory_space<vmem>>, %arg5: memref<8x16xf32, #tpu.memory_space<vmem>>, %arg6: memref<1x16xf32, #tpu.memory_space<vmem>>, %arg7: memref<3x3x16xf32, #tpu.memory_space<vmem>>, %arg8: memref<1x16xf32, #tpu.memory_space<vmem>>, %arg9: memref<16x8xf32, #tpu.memory_space<vmem>>, %arg10: memref<1x8xf32, #tpu.memory_space<vmem>>, %arg11: memref<1x8x16x8xf32, #tpu.memory_space<vmem>>, %arg12: memref<264x8xf32, #tpu.memory_space<vmem>>) attributes {dimension_semantics = [#tpu.dimension_semantics<parallel>, #tpu.dimension_semantics<parallel>], iteration_bounds = array<i64: 2, 3>, scalar_prefetch = 0 : i64, scratch_operands = 1 : i64, tpu.core_type = #tpu.core_type<tc>, window_params = [{transform_indices = @transform_0, window_bounds = array<i64: 1, 192, 8>}, {transform_indices = @transform_1, window_bounds = array<i64: 1, 48, 8>}, {pipeline_mode = #tpu.pipeline_mode<synchronous>, transform_indices = @transform_2, window_bounds = array<i64: 264, 1>}, {pipeline_mode = #tpu.pipeline_mode<synchronous>, transform_indices = @transform_3, window_bounds = array<i64: 8, 16>}, {pipeline_mode = #tpu.pipeline_mode<synchronous>, transform_indices = @transform_4, window_bounds = array<i64: 1, 16>}, {pipeline_mode = #tpu.pipeline_mode<synchronous>, transform_indices = @transform_5, window_bounds = array<i64: 3, 3, 16>}, {pipeline_mode = #tpu.pipeline_mode<synchronous>, transform_indices = @transform_6, window_bounds = array<i64: 1, 16>}, {pipeline_mode = #tpu.pipeline_mode<synchronous>, transform_indices = @transform_7, window_bounds = array<i64: 16, 8>}, {pipeline_mode = #tpu.pipeline_mode<synchronous>, transform_indices = @transform_8, window_bounds = array<i64: 1, 8>}, {transform_indices = @transform_9, window_bounds = array<i64: 1, 8, 16, 8>}]} {
    %c8_i32 = arith.constant 8 : i32
    %0 = arith.muli %arg1, %c8_i32 : i32
    %c0 = arith.constant 0 : index
    %c0_0 = arith.constant 0 : index
    %c0_1 = arith.constant 0 : index
    %1 = vector.load %arg2[%c0, %c0_0, %c0_1] : memref<1x192x8xf32, #tpu.memory_space<vmem>>, vector<1x192x8xf32>
    %2 = vector.shape_cast %1 : vector<1x192x8xf32> to vector<192x8xf32>
    %c0_2 = arith.constant 0 : index
    %c0_3 = arith.constant 0 : index
    %3 = vector.load %arg12[%c0_2, %c0_3] : memref<264x8xf32, #tpu.memory_space<vmem>>, vector<192x8xf32>
    tpu.vector_store %arg12[%c0_2, %c0_3], %2 {strides = array<i32>} : memref<264x8xf32, #tpu.memory_space<vmem>>, vector<192x8xf32>,
    %c0_4 = arith.constant 0 : index
    %c0_5 = arith.constant 0 : index
    %c0_6 = arith.constant 0 : index
    %4 = vector.load %arg3[%c0_4, %c0_5, %c0_6] : memref<1x48x8xf32, #tpu.memory_space<vmem>>, vector<1x48x8xf32>
    %5 = vector.shape_cast %4 : vector<1x48x8xf32> to vector<48x8xf32>
    %c192 = arith.constant 192 : index
    %c0_7 = arith.constant 0 : index
    %6 = vector.load %arg12[%c192, %c0_7] : memref<264x8xf32, #tpu.memory_space<vmem>>, vector<48x8xf32>
    tpu.vector_store %arg12[%c192, %c0_7], %5 {strides = array<i32>} : memref<264x8xf32, #tpu.memory_space<vmem>>, vector<48x8xf32>,
    %cst = arith.constant 0.000000e+00 : f32
    %7 = vector.broadcast %cst : f32 to vector<24x8xf32>
    %c240 = arith.constant 240 : index
    %c0_8 = arith.constant 0 : index
    %8 = vector.load %arg12[%c240, %c0_8] : memref<264x8xf32, #tpu.memory_space<vmem>>, vector<24x8xf32>
    tpu.vector_store %arg12[%c240, %c0_8], %7 {strides = array<i32>} : memref<264x8xf32, #tpu.memory_space<vmem>>, vector<24x8xf32>,
    %c0_9 = arith.constant 0 : index
    %c0_10 = arith.constant 0 : index
    %9 = vector.load %arg12[%c0_9, %c0_10] : memref<264x8xf32, #tpu.memory_space<vmem>>, vector<264x8xf32>
    %c0_11 = arith.constant 0 : index
    %c0_12 = arith.constant 0 : index
    %10 = vector.load %arg5[%c0_11, %c0_12] : memref<8x16xf32, #tpu.memory_space<vmem>>, vector<8x16xf32>
    %cst_13 = arith.constant dense<0.000000e+00> : vector<264x16xf32>
    %11 = tpu.matmul %9, %10, %cst_13 {dimension_numbers = #tpu.dot_dimension_numbers<[1], [0], [0], [1], [0, 0, 1, 1], [], []>} : vector<264x8xf32>, vector<8x16xf32>, vector<264x16xf32> -> vector<264x16xf32>
    %c0_14 = arith.constant 0 : index
    %c0_15 = arith.constant 0 : index
    %12 = vector.load %arg6[%c0_14, %c0_15] : memref<1x16xf32, #tpu.memory_space<vmem>>, vector<1x16xf32>
    %13 = vector.broadcast %12 : vector<1x16xf32> to vector<264x16xf32>
    %14 = arith.addf %11, %13 : vector<264x16xf32>
    %cst_16 = arith.constant 0.000000e+00 : f32
    %cst_17 = arith.constant 6.000000e+00 : f32
    %15 = vector.broadcast %cst_16 : f32 to vector<264x16xf32>
    %16 = arith.maximumf %15, %14 : vector<264x16xf32>
    %17 = vector.broadcast %cst_17 : f32 to vector<264x16xf32>
    %18 = arith.minimumf %17, %16 : vector<264x16xf32>
    %c0_18 = arith.constant 0 : index
    %c0_19 = arith.constant 0 : index
    %19 = vector.load %arg4[%c0_18, %c0_19] : memref<264x1xi32, #tpu.memory_space<vmem>>, vector<264x1xi32>
    %20 = vector.broadcast %0 : i32 to vector<264x1xi32>
    %21 = arith.addi %19, %20 : vector<264x1xi32>
    %c1_i32 = arith.constant 1 : i32
    %22 = vector.broadcast %c1_i32 : i32 to vector<264x1xi32>
    %23 = arith.cmpi sge, %21, %22 : vector<264x1xi32>
    %c21_i32 = arith.constant 21 : i32
    %24 = vector.broadcast %c21_i32 : i32 to vector<264x1xi32>
    %25 = arith.cmpi slt, %21, %24 : vector<264x1xi32>
    %26 = arith.andi %23, %25 : vector<264x1xi1>
    %cst_20 = arith.constant 0.000000e+00 : f32
    %27 = vector.shape_cast %26 : vector<264x1xi1> to vector<264x1xi1>
    %28 = vector.broadcast %27 : vector<264x1xi1> to vector<264x16xi1>
    %29 = vector.broadcast %cst_20 : f32 to vector<264x16xf32>
    %30 = arith.select %28, %18, %29 : vector<264x16xi1>, vector<264x16xf32>
    %c0_21 = arith.constant 0 : index
    %c0_22 = arith.constant 0 : index
    %c0_23 = arith.constant 0 : index
    %31 = vector.load %arg7[%c0_21, %c0_22, %c0_23] : memref<3x3x16xf32, #tpu.memory_space<vmem>>, vector<3x3x16xf32>
    %cst_24 = arith.constant 0.000000e+00 : f32
    %32 = vector.broadcast %cst_24 : f32 to vector<192x16xf32>
    %33 = vector.extract_strided_slice %30 {offsets = [0, 0], sizes = [192, 16], strides = [1, 1]} : vector<264x16xf32> to vector<192x16xf32>
    %34 = vector.extract_strided_slice %31 {offsets = [0, 0, 0], sizes = [1, 1, 16], strides = [1, 1, 1]} : vector<3x3x16xf32> to vector<1x1x16xf32>
    %35 = vector.shape_cast %34 : vector<1x1x16xf32> to vector<16xf32>
    %36 = vector.shape_cast %35 : vector<16xf32> to vector<1x16xf32>
    %37 = vector.broadcast %36 : vector<1x16xf32> to vector<192x16xf32>
    %38 = arith.mulf %33, %37 : vector<192x16xf32>
    %39 = arith.addf %32, %38 : vector<192x16xf32>
    %40 = vector.extract_strided_slice %30 {offsets = [1, 0], sizes = [192, 16], strides = [1, 1]} : vector<264x16xf32> to vector<192x16xf32>
    %41 = vector.extract_strided_slice %31 {offsets = [0, 1, 0], sizes = [1, 1, 16], strides = [1, 1, 1]} : vector<3x3x16xf32> to vector<1x1x16xf32>
    %42 = vector.shape_cast %41 : vector<1x1x16xf32> to vector<16xf32>
    %43 = vector.shape_cast %42 : vector<16xf32> to vector<1x16xf32>
    %44 = vector.broadcast %43 : vector<1x16xf32> to vector<192x16xf32>
    %45 = arith.mulf %40, %44 : vector<192x16xf32>
    %46 = arith.addf %39, %45 : vector<192x16xf32>
    %47 = vector.extract_strided_slice %30 {offsets = [2, 0], sizes = [192, 16], strides = [1, 1]} : vector<264x16xf32> to vector<192x16xf32>
    %48 = vector.extract_strided_slice %31 {offsets = [0, 2, 0], sizes = [1, 1, 16], strides = [1, 1, 1]} : vector<3x3x16xf32> to vector<1x1x16xf32>
    %49 = vector.shape_cast %48 : vector<1x1x16xf32> to vector<16xf32>
    %50 = vector.shape_cast %49 : vector<16xf32> to vector<1x16xf32>
    %51 = vector.broadcast %50 : vector<1x16xf32> to vector<192x16xf32>
    %52 = arith.mulf %47, %51 : vector<192x16xf32>
    %53 = arith.addf %46, %52 : vector<192x16xf32>
    %54 = vector.extract_strided_slice %30 {offsets = [24, 0], sizes = [192, 16], strides = [1, 1]} : vector<264x16xf32> to vector<192x16xf32>
    %55 = vector.extract_strided_slice %31 {offsets = [1, 0, 0], sizes = [1, 1, 16], strides = [1, 1, 1]} : vector<3x3x16xf32> to vector<1x1x16xf32>
    %56 = vector.shape_cast %55 : vector<1x1x16xf32> to vector<16xf32>
    %57 = vector.shape_cast %56 : vector<16xf32> to vector<1x16xf32>
    %58 = vector.broadcast %57 : vector<1x16xf32> to vector<192x16xf32>
    %59 = arith.mulf %54, %58 : vector<192x16xf32>
    %60 = arith.addf %53, %59 : vector<192x16xf32>
    %61 = vector.extract_strided_slice %30 {offsets = [25, 0], sizes = [192, 16], strides = [1, 1]} : vector<264x16xf32> to vector<192x16xf32>
    %62 = vector.extract_strided_slice %31 {offsets = [1, 1, 0], sizes = [1, 1, 16], strides = [1, 1, 1]} : vector<3x3x16xf32> to vector<1x1x16xf32>
    %63 = vector.shape_cast %62 : vector<1x1x16xf32> to vector<16xf32>
    %64 = vector.shape_cast %63 : vector<16xf32> to vector<1x16xf32>
    %65 = vector.broadcast %64 : vector<1x16xf32> to vector<192x16xf32>
    %66 = arith.mulf %61, %65 : vector<192x16xf32>
    %67 = arith.addf %60, %66 : vector<192x16xf32>
    %68 = vector.extract_strided_slice %30 {offsets = [26, 0], sizes = [192, 16], strides = [1, 1]} : vector<264x16xf32> to vector<192x16xf32>
    %69 = vector.extract_strided_slice %31 {offsets = [1, 2, 0], sizes = [1, 1, 16], strides = [1, 1, 1]} : vector<3x3x16xf32> to vector<1x1x16xf32>
    %70 = vector.shape_cast %69 : vector<1x1x16xf32> to vector<16xf32>
    %71 = vector.shape_cast %70 : vector<16xf32> to vector<1x16xf32>
    %72 = vector.broadcast %71 : vector<1x16xf32> to vector<192x16xf32>
    %73 = arith.mulf %68, %72 : vector<192x16xf32>
    %74 = arith.addf %67, %73 : vector<192x16xf32>
    %75 = vector.extract_strided_slice %30 {offsets = [48, 0], sizes = [192, 16], strides = [1, 1]} : vector<264x16xf32> to vector<192x16xf32>
    %76 = vector.extract_strided_slice %31 {offsets = [2, 0, 0], sizes = [1, 1, 16], strides = [1, 1, 1]} : vector<3x3x16xf32> to vector<1x1x16xf32>
    %77 = vector.shape_cast %76 : vector<1x1x16xf32> to vector<16xf32>
    %78 = vector.shape_cast %77 : vector<16xf32> to vector<1x16xf32>
    %79 = vector.broadcast %78 : vector<1x16xf32> to vector<192x16xf32>
    %80 = arith.mulf %75, %79 : vector<192x16xf32>
    %81 = arith.addf %74, %80 : vector<192x16xf32>
    %82 = vector.extract_strided_slice %30 {offsets = [49, 0], sizes = [192, 16], strides = [1, 1]} : vector<264x16xf32> to vector<192x16xf32>
    %83 = vector.extract_strided_slice %31 {offsets = [2, 1, 0], sizes = [1, 1, 16], strides = [1, 1, 1]} : vector<3x3x16xf32> to vector<1x1x16xf32>
    %84 = vector.shape_cast %83 : vector<1x1x16xf32> to vector<16xf32>
    %85 = vector.shape_cast %84 : vector<16xf32> to vector<1x16xf32>
    %86 = vector.broadcast %85 : vector<1x16xf32> to vector<192x16xf32>
    %87 = arith.mulf %82, %86 : vector<192x16xf32>
    %88 = arith.addf %81, %87 : vector<192x16xf32>
    %89 = vector.extract_strided_slice %30 {offsets = [50, 0], sizes = [192, 16], strides = [1, 1]} : vector<264x16xf32> to vector<192x16xf32>
    %90 = vector.extract_strided_slice %31 {offsets = [2, 2, 0], sizes = [1, 1, 16], strides = [1, 1, 1]} : vector<3x3x16xf32> to vector<1x1x16xf32>
    %91 = vector.shape_cast %90 : vector<1x1x16xf32> to vector<16xf32>
    %92 = vector.shape_cast %91 : vector<16xf32> to vector<1x16xf32>
    %93 = vector.broadcast %92 : vector<1x16xf32> to vector<192x16xf32>
    %94 = arith.mulf %89, %93 : vector<192x16xf32>
    %95 = arith.addf %88, %94 : vector<192x16xf32>
    %c0_25 = arith.constant 0 : index
    %c0_26 = arith.constant 0 : index
    %96 = vector.load %arg8[%c0_25, %c0_26] : memref<1x16xf32, #tpu.memory_space<vmem>>, vector<1x16xf32>
    %97 = vector.broadcast %96 : vector<1x16xf32> to vector<192x16xf32>
    %98 = arith.addf %95, %97 : vector<192x16xf32>
    %cst_27 = arith.constant 0.000000e+00 : f32
    %cst_28 = arith.constant 6.000000e+00 : f32
    %99 = vector.broadcast %cst_27 : f32 to vector<192x16xf32>
    %100 = arith.maximumf %99, %98 : vector<192x16xf32>
    %101 = vector.broadcast %cst_28 : f32 to vector<192x16xf32>
    %102 = arith.minimumf %101, %100 : vector<192x16xf32>
    %c0_29 = arith.constant 0 : index
    %c0_30 = arith.constant 0 : index
    %103 = vector.load %arg9[%c0_29, %c0_30] : memref<16x8xf32, #tpu.memory_space<vmem>>, vector<16x8xf32>
    %cst_31 = arith.constant dense<0.000000e+00> : vector<192x8xf32>
    %104 = tpu.matmul %102, %103, %cst_31 {dimension_numbers = #tpu.dot_dimension_numbers<[1], [0], [0], [1], [0, 0, 1, 1], [], []>} : vector<192x16xf32>, vector<16x8xf32>, vector<192x8xf32> -> vector<192x8xf32>
    %c0_32 = arith.constant 0 : index
    %c0_33 = arith.constant 0 : index
    %105 = vector.load %arg10[%c0_32, %c0_33] : memref<1x8xf32, #tpu.memory_space<vmem>>, vector<1x8xf32>
    %106 = vector.broadcast %105 : vector<1x8xf32> to vector<192x8xf32>
    %107 = arith.addf %104, %106 : vector<192x8xf32>
    %108 = vector.extract_strided_slice %9 {offsets = [25, 0], sizes = [192, 8], strides = [1, 1]} : vector<264x8xf32> to vector<192x8xf32>
    %109 = arith.addf %107, %108 : vector<192x8xf32>
    %110 = vector.extract_strided_slice %109 {offsets = [0, 0], sizes = [16, 8], strides = [1, 1]} : vector<192x8xf32> to vector<16x8xf32>
    %c0_34 = arith.constant 0 : index
    %c0_35 = arith.constant 0 : index
    %c0_36 = arith.constant 0 : index
    %c0_37 = arith.constant 0 : index
    %111 = vector.load %arg11[%c0_34, %c0_35, %c0_36, %c0_37] : memref<1x8x16x8xf32, #tpu.memory_space<vmem>>, vector<1x1x16x8xf32>
    %112 = vector.shape_cast %111 : vector<1x1x16x8xf32> to vector<16x8xf32>
    %113 = vector.shape_cast %110 : vector<16x8xf32> to vector<1x1x16x8xf32>
    tpu.vector_store %arg11[%c0_34, %c0_35, %c0_36, %c0_37], %113 {strides = array<i32>} : memref<1x8x16x8xf32, #tpu.memory_space<vmem>>, vector<1x1x16x8xf32>,
    %114 = vector.extract_strided_slice %109 {offsets = [24, 0], sizes = [16, 8], strides = [1, 1]} : vector<192x8xf32> to vector<16x8xf32>
    %c0_38 = arith.constant 0 : index
    %c1 = arith.constant 1 : index
    %c0_39 = arith.constant 0 : index
    %c0_40 = arith.constant 0 : index
    %115 = vector.load %arg11[%c0_38, %c1, %c0_39, %c0_40] : memref<1x8x16x8xf32, #tpu.memory_space<vmem>>, vector<1x1x16x8xf32>
    %116 = vector.shape_cast %115 : vector<1x1x16x8xf32> to vector<16x8xf32>
    %117 = vector.shape_cast %114 : vector<16x8xf32> to vector<1x1x16x8xf32>
    tpu.vector_store %arg11[%c0_38, %c1, %c0_39, %c0_40], %117 {strides = array<i32>} : memref<1x8x16x8xf32, #tpu.memory_space<vmem>>, vector<1x1x16x8xf32>,
    %118 = vector.extract_strided_slice %109 {offsets = [48, 0], sizes = [16, 8], strides = [1, 1]} : vector<192x8xf32> to vector<16x8xf32>
    %c0_41 = arith.constant 0 : index
    %c2 = arith.constant 2 : index
    %c0_42 = arith.constant 0 : index
    %c0_43 = arith.constant 0 : index
    %119 = vector.load %arg11[%c0_41, %c2, %c0_42, %c0_43] : memref<1x8x16x8xf32, #tpu.memory_space<vmem>>, vector<1x1x16x8xf32>
    %120 = vector.shape_cast %119 : vector<1x1x16x8xf32> to vector<16x8xf32>
    %121 = vector.shape_cast %118 : vector<16x8xf32> to vector<1x1x16x8xf32>
    tpu.vector_store %arg11[%c0_41, %c2, %c0_42, %c0_43], %121 {strides = array<i32>} : memref<1x8x16x8xf32, #tpu.memory_space<vmem>>, vector<1x1x16x8xf32>,
    %122 = vector.extract_strided_slice %109 {offsets = [72, 0], sizes = [16, 8], strides = [1, 1]} : vector<192x8xf32> to vector<16x8xf32>
    %c0_44 = arith.constant 0 : index
    %c3 = arith.constant 3 : index
    %c0_45 = arith.constant 0 : index
    %c0_46 = arith.constant 0 : index
    %123 = vector.load %arg11[%c0_44, %c3, %c0_45, %c0_46] : memref<1x8x16x8xf32, #tpu.memory_space<vmem>>, vector<1x1x16x8xf32>
    %124 = vector.shape_cast %123 : vector<1x1x16x8xf32> to vector<16x8xf32>
    %125 = vector.shape_cast %122 : vector<16x8xf32> to vector<1x1x16x8xf32>
    tpu.vector_store %arg11[%c0_44, %c3, %c0_45, %c0_46], %125 {strides = array<i32>} : memref<1x8x16x8xf32, #tpu.memory_space<vmem>>, vector<1x1x16x8xf32>,
    %126 = vector.extract_strided_slice %109 {offsets = [96, 0], sizes = [16, 8], strides = [1, 1]} : vector<192x8xf32> to vector<16x8xf32>
    %c0_47 = arith.constant 0 : index
    %c4 = arith.constant 4 : index
    %c0_48 = arith.constant 0 : index
    %c0_49 = arith.constant 0 : index
    %127 = vector.load %arg11[%c0_47, %c4, %c0_48, %c0_49] : memref<1x8x16x8xf32, #tpu.memory_space<vmem>>, vector<1x1x16x8xf32>
    %128 = vector.shape_cast %127 : vector<1x1x16x8xf32> to vector<16x8xf32>
    %129 = vector.shape_cast %126 : vector<16x8xf32> to vector<1x1x16x8xf32>
    tpu.vector_store %arg11[%c0_47, %c4, %c0_48, %c0_49], %129 {strides = array<i32>} : memref<1x8x16x8xf32, #tpu.memory_space<vmem>>, vector<1x1x16x8xf32>,
    %130 = vector.extract_strided_slice %109 {offsets = [120, 0], sizes = [16, 8], strides = [1, 1]} : vector<192x8xf32> to vector<16x8xf32>
    %c0_50 = arith.constant 0 : index
    %c5 = arith.constant 5 : index
    %c0_51 = arith.constant 0 : index
    %c0_52 = arith.constant 0 : index
    %131 = vector.load %arg11[%c0_50, %c5, %c0_51, %c0_52] : memref<1x8x16x8xf32, #tpu.memory_space<vmem>>, vector<1x1x16x8xf32>
    %132 = vector.shape_cast %131 : vector<1x1x16x8xf32> to vector<16x8xf32>
    %133 = vector.shape_cast %130 : vector<16x8xf32> to vector<1x1x16x8xf32>
    tpu.vector_store %arg11[%c0_50, %c5, %c0_51, %c0_52], %133 {strides = array<i32>} : memref<1x8x16x8xf32, #tpu.memory_space<vmem>>, vector<1x1x16x8xf32>,
    %134 = vector.extract_strided_slice %109 {offsets = [144, 0], sizes = [16, 8], strides = [1, 1]} : vector<192x8xf32> to vector<16x8xf32>
    %c0_53 = arith.constant 0 : index
    %c6 = arith.constant 6 : index
    %c0_54 = arith.constant 0 : index
    %c0_55 = arith.constant 0 : index
    %135 = vector.load %arg11[%c0_53, %c6, %c0_54, %c0_55] : memref<1x8x16x8xf32, #tpu.memory_space<vmem>>, vector<1x1x16x8xf32>
    %136 = vector.shape_cast %135 : vector<1x1x16x8xf32> to vector<16x8xf32>
    %137 = vector.shape_cast %134 : vector<16x8xf32> to vector<1x1x16x8xf32>
    tpu.vector_store %arg11[%c0_53, %c6, %c0_54, %c0_55], %137 {strides = array<i32>} : memref<1x8x16x8xf32, #tpu.memory_space<vmem>>, vector<1x1x16x8xf32>,
    %138 = vector.extract_strided_slice %109 {offsets = [168, 0], sizes = [16, 8], strides = [1, 1]} : vector<192x8xf32> to vector<16x8xf32>
    %c0_56 = arith.constant 0 : index
    %c7 = arith.constant 7 : index
    %c0_57 = arith.constant 0 : index
    %c0_58 = arith.constant 0 : index
    %139 = vector.load %arg11[%c0_56, %c7, %c0_57, %c0_58] : memref<1x8x16x8xf32, #tpu.memory_space<vmem>>, vector<1x1x16x8xf32>
    %140 = vector.shape_cast %139 : vector<1x1x16x8xf32> to vector<16x8xf32>
    %141 = vector.shape_cast %138 : vector<16x8xf32> to vector<1x1x16x8xf32>
    tpu.vector_store %arg11[%c0_56, %c7, %c0_57, %c0_58], %141 {strides = array<i32>} : memref<1x8x16x8xf32, #tpu.memory_space<vmem>>, vector<1x1x16x8xf32>,
    return
  }
  func.func @transform_0(%arg0: i32, %arg1: i32) -> (i32, i32, i32) {
    %c0_i32 = arith.constant 0 : i32
    %c0_i32_0 = arith.constant 0 : i32
    return %arg0, %arg1, %c0_i32 : i32, i32, i32
  }
  func.func @transform_1(%arg0: i32, %arg1: i32) -> (i32, i32, i32) {
    %c1_i32 = arith.constant 1 : i32
    %0 = arith.addi %arg1, %c1_i32 : i32
    %c4_i32 = arith.constant 4 : i32
    %1 = arith.muli %0, %c4_i32 : i32
    %c0_i32 = arith.constant 0 : i32
    %c0_i32_0 = arith.constant 0 : i32
    return %arg0, %1, %c0_i32 : i32, i32, i32
  }
  func.func @transform_2(%arg0: i32, %arg1: i32) -> (i32, i32) {
    %c0_i32 = arith.constant 0 : i32
    %c0_i32_0 = arith.constant 0 : i32
    %c0_i32_1 = arith.constant 0 : i32
    return %c0_i32, %c0_i32_0 : i32, i32
  }
  func.func @transform_3(%arg0: i32, %arg1: i32) -> (i32, i32) {
    %c0_i32 = arith.constant 0 : i32
    %c0_i32_0 = arith.constant 0 : i32
    %c0_i32_1 = arith.constant 0 : i32
    return %c0_i32, %c0_i32_0 : i32, i32
  }
  func.func @transform_4(%arg0: i32, %arg1: i32) -> (i32, i32) {
    %c0_i32 = arith.constant 0 : i32
    %c0_i32_0 = arith.constant 0 : i32
    %c0_i32_1 = arith.constant 0 : i32
    return %c0_i32, %c0_i32_0 : i32, i32
  }
  func.func @transform_5(%arg0: i32, %arg1: i32) -> (i32, i32, i32) {
    %c0_i32 = arith.constant 0 : i32
    %c0_i32_0 = arith.constant 0 : i32
    %c0_i32_1 = arith.constant 0 : i32
    %c0_i32_2 = arith.constant 0 : i32
    return %c0_i32, %c0_i32_0, %c0_i32_1 : i32, i32, i32
  }
  func.func @transform_6(%arg0: i32, %arg1: i32) -> (i32, i32) {
    %c0_i32 = arith.constant 0 : i32
    %c0_i32_0 = arith.constant 0 : i32
    %c0_i32_1 = arith.constant 0 : i32
    return %c0_i32, %c0_i32_0 : i32, i32
  }
  func.func @transform_7(%arg0: i32, %arg1: i32) -> (i32, i32) {
    %c0_i32 = arith.constant 0 : i32
    %c0_i32_0 = arith.constant 0 : i32
    %c0_i32_1 = arith.constant 0 : i32
    return %c0_i32, %c0_i32_0 : i32, i32
  }
  func.func @transform_8(%arg0: i32, %arg1: i32) -> (i32, i32) {
    %c0_i32 = arith.constant 0 : i32
    %c0_i32_0 = arith.constant 0 : i32
    %c0_i32_1 = arith.constant 0 : i32
    return %c0_i32, %c0_i32_0 : i32, i32
  }
  func.func @transform_9(%arg0: i32, %arg1: i32) -> (i32, i32, i32, i32) {
    %c0_i32 = arith.constant 0 : i32
    %c0_i32_0 = arith.constant 0 : i32
    %c0_i32_1 = arith.constant 0 : i32
    return %arg0, %arg1, %c0_i32, %c0_i32_0 : i32, i32, i32, i32
  }
}

</mosaic_0001>

<llo_original>
// kernel: tpu_custom_call.1
$region0: #{tpu_custom_call.1}
  #allocation0 [shape = 'u32[]', space=smem, size = 0x4, offset = 0x4, fixed_abs, tag = 'smem constant byte address 0x4 - core index']
  #allocation1 [shape = 'u32[144,128]{1,0:T(1,128)}', space=vmem, size = 0x12000, scoped, tag = 'internal scratch']
  #allocation2 [shape = 'f32[264,8]{1,0:T(8,128)}', space=vmem, size = 0x21000, scoped, tag = 'scratch operand']
  %s0 = inlined_call_operand.vmem [shape: f32[2,624,8], index: 0, kind: input, shape index: {}]
  %s1 = inlined_call_operand.vmem [shape: f32[2,624,8], index: 1, kind: input, shape index: {}]
  %s2 = inlined_call_operand.vmem [shape: s32[264,1], index: 2, kind: input, shape index: {}]
  %s3 = inlined_call_operand.vmem [shape: f32[8,16], index: 3, kind: input, shape index: {}]
  %s4 = inlined_call_operand.vmem [shape: f32[1,16], index: 4, kind: input, shape index: {}]
  %s5 = inlined_call_operand.vmem [shape: f32[3,3,16], index: 5, kind: input, shape index: {}]
  %s6 = inlined_call_operand.vmem [shape: f32[1,16], index: 6, kind: input, shape index: {}]
  %s7 = inlined_call_operand.vmem [shape: f32[16,8], index: 7, kind: input, shape index: {}]
  %s8 = inlined_call_operand.vmem [shape: f32[1,8], index: 8, kind: input, shape index: {}]
  %s9 = inlined_call_operand.vmem [shape: f32[2,20,16,8], index: 9, kind: output, shape index: {}]
  %s10 = sld [smem:[#allocation0]]
  $region117: #{tpu_custom_call.1} parent=0
    _
  %s12 = ssub.s32 1, %s10
  %s13 = scalar_select 0, %s12, %s10
  $region1: #{tpu_custom_call.1} parent=0
    #allocation3 [shape = 'u8[131072]{0}', space=vmem, size = 0x20000, scoped, tag = 'output window, operand 0']
    loop: start=0, step=1, limit=8
    $region2: #{tpu_custom_call.1} parent=1 // loop_pre_header
      _
    $region3: #{tpu_custom_call.1} parent=1 // loop_header
      %s15 = sphi 0, %s19
      %p16 = scmp.ge.s32.totalorder %s15, 8
      %s22 = sphi 0, %s34
      %s23 = sphi 0, %s30
      %s24 = sphi 0, %s22
      %s25 = sphi 0, %s23
      %s26 = sphi 0, %s24
      %s27 = sphi 0, %s25
      %s39 = sphi 0, %s41
      %s42 = sphi 0, %s39
      %s43 = sphi 0, %s42
      %s59 = sphi 0, %s43
      %s71 = sphi 0, %s73
      %s74 = sphi 0, %s71
      %s75 = sphi 0, %s74
      %s91 = sphi 0, %s75
      %s95 = sphi 0, %s95
      %s97 = sphi 0, %s95
      %s98 = sphi 0, %s97
      %s112 = sphi 0, %s98
      %s116 = sphi 0, %s116
      %s118 = sphi 0, %s116
      %s119 = sphi 0, %s118
      %s133 = sphi 0, %s119
      %s137 = sphi 0, %s137
      %s139 = sphi 0, %s137
      %s140 = sphi 0, %s139
      %s154 = sphi 0, %s140
      %s158 = sphi 0, %s158
      %s160 = sphi 0, %s158
      %s161 = sphi 0, %s160
      %s175 = sphi 0, %s161
      %s179 = sphi 0, %s179
      %s181 = sphi 0, %s179
      %s182 = sphi 0, %s181
      %s196 = sphi 0, %s182
      %s200 = sphi 0, %s200
      %s202 = sphi 0, %s200
      %s203 = sphi 0, %s202
      %s217 = sphi 0, %s203
      %s221 = sphi 0, %s221
      %s223 = sphi 0, %s221
      %s224 = sphi 0, %s223
      %s238 = sphi 0, %s224
      %s246 = sphi 0, %s248
      %s249 = sphi 0, %s246
      %s250 = sphi 0, %s249
      %s266 = sphi 0, %s250
    $region4: #{tpu_custom_call.1} parent=1 // loop_header_branch
      %18 = sbr.rel (%p16) target = $region8
    $region5: #{tpu_custom_call.1} parent=1 // loop_body
      %s20 = ssub.s32 %s15, 1
      %s21 = ssub.s32 %s15, 2
      %s28 = sadd.s32 1, %s23
      %p29 = scmp.ge.s32.totalorder %s28, 3
      %s30 = scalar_select %p29, 0, %s28
      %s31 = sadd.s32 1, %s22
      %s32 = scalar_select %p29, %s31, %s22
      %p33 = scmp.ge.s32.totalorder %s32, 2
      %s34 = scalar_select %p33, 0, %s32
      %s35 = ssub.s32 %s22, %s34
      %s36 = ssub.s32 %s23, %s30
      %s37 = sor.u32 %s35, %s36
      %p38 = scmp.eq.s32.totalorder %s37, 0
      %s40 = sadd.s32 %s39, 1
      %s41 = scalar_select %p38, %s39, %s40
      %p44 = pneg %p38
      %p45 = scmp.eq.s32.totalorder %s15, 5
      %p46 = por %p44, %p45
      %p47 = scmp.ne.s32.totalorder %s39, %s42
      %p48 = scmp.eq.s32.totalorder %s15, 0
      %p49 = por %p47, %p48
      %p50 = scmp.ne.s32.totalorder %s39, %s42
      %p51 = scmp.eq.s32.totalorder %s20, 5
      %p52 = por %p50, %p51
      %p53 = scmp.ne.s32.totalorder %s42, %s43
      %p54 = scmp.eq.s32.totalorder %s20, 0
      %p55 = por %p53, %p54
      %p56 = scmp.ne.s32.totalorder %s42, %s43
      %p57 = scmp.eq.s32.totalorder %s21, 5
      %p58 = por %p56, %p57
      %p60 = scmp.ne.s32.totalorder %s43, %s59
      %p61 = scmp.eq.s32.totalorder %s21, 0
      %p62 = por %p60, %p61
      %s63 = sadd.s32 %s23, 1
      %s64 = smul.u32 %s63, 4
      %s65 = sadd.s32 %s30, 1
      %s66 = smul.u32 %s65, 4
      %s67 = ssub.s32 %s22, %s34
      %s68 = ssub.s32 %s64, %s66
      %s69 = sor.u32 %s67, %s68
      %p70 = scmp.eq.s32.totalorder %s69, 0
      %s72 = sadd.s32 %s71, 1
      %s73 = scalar_select %p70, %s71, %s72
      %p76 = pneg %p70
      %p77 = scmp.eq.s32.totalorder %s15, 5
      %p78 = por %p76, %p77
      %p79 = scmp.ne.s32.totalorder %s71, %s74
      %p80 = scmp.eq.s32.totalorder %s15, 0
      %p81 = por %p79, %p80
      %p82 = scmp.ne.s32.totalorder %s71, %s74
      %p83 = scmp.eq.s32.totalorder %s20, 5
      %p84 = por %p82, %p83
      %p85 = scmp.ne.s32.totalorder %s74, %s75
      %p86 = scmp.eq.s32.totalorder %s20, 0
      %p87 = por %p85, %p86
      %p88 = scmp.ne.s32.totalorder %s74, %s75
      %p89 = scmp.eq.s32.totalorder %s21, 5
      %p90 = por %p88, %p89
      %p92 = scmp.ne.s32.totalorder %s75, %s91
      %p93 = scmp.eq.s32.totalorder %s21, 0
      %p94 = por %p92, %p93
      %s96 = sadd.s32 %s95, 1
      %p99 = scmp.eq.s32.totalorder %s15, 5
      %p100 = scmp.ne.s32.totalorder %s95, %s97
      %p101 = scmp.eq.s32.totalorder %s15, 0
      %p102 = por %p100, %p101
      %p103 = scmp.ne.s32.totalorder %s95, %s97
      %p104 = scmp.eq.s32.totalorder %s20, 5
      %p105 = por %p103, %p104
      %p106 = scmp.ne.s32.totalorder %s97, %s98
      %p107 = scmp.eq.s32.totalorder %s20, 0
      %p108 = por %p106, %p107
      %p109 = scmp.ne.s32.totalorder %s97, %s98
      %p110 = scmp.eq.s32.totalorder %s21, 5
      %p111 = por %p109, %p110
      %p113 = scmp.ne.s32.totalorder %s98, %s112
      %p114 = scmp.eq.s32.totalorder %s21, 0
      %p115 = por %p113, %p114
      %s117 = sadd.s32 %s116, 1
      %p120 = scmp.eq.s32.totalorder %s15, 5
      %p121 = scmp.ne.s32.totalorder %s116, %s118
      %p122 = scmp.eq.s32.totalorder %s15, 0
      %p123 = por %p121, %p122
      %p124 = scmp.ne.s32.totalorder %s116, %s118
      %p125 = scmp.eq.s32.totalorder %s20, 5
      %p126 = por %p124, %p125
      %p127 = scmp.ne.s32.totalorder %s118, %s119
      %p128 = scmp.eq.s32.totalorder %s20, 0
      %p129 = por %p127, %p128
      %p130 = scmp.ne.s32.totalorder %s118, %s119
      %p131 = scmp.eq.s32.totalorder %s21, 5
      %p132 = por %p130, %p131
      %p134 = scmp.ne.s32.totalorder %s119, %s133
      %p135 = scmp.eq.s32.totalorder %s21, 0
      %p136 = por %p134, %p135
      %s138 = sadd.s32 %s137, 1
      %p141 = scmp.eq.s32.totalorder %s15, 5
      %p142 = scmp.ne.s32.totalorder %s137, %s139
      %p143 = scmp.eq.s32.totalorder %s15, 0
      %p144 = por %p142, %p143
      %p145 = scmp.ne.s32.totalorder %s137, %s139
      %p146 = scmp.eq.s32.totalorder %s20, 5
      %p147 = por %p145, %p146
      %p148 = scmp.ne.s32.totalorder %s139, %s140
      %p149 = scmp.eq.s32.totalorder %s20, 0
      %p150 = por %p148, %p149
      %p151 = scmp.ne.s32.totalorder %s139, %s140
      %p152 = scmp.eq.s32.totalorder %s21, 5
      %p153 = por %p151, %p152
      %p155 = scmp.ne.s32.totalorder %s140, %s154
      %p156 = scmp.eq.s32.totalorder %s21, 0
      %p157 = por %p155, %p156
      %s159 = sadd.s32 %s158, 1
      %p162 = scmp.eq.s32.totalorder %s15, 5
      %p163 = scmp.ne.s32.totalorder %s158, %s160
      %p164 = scmp.eq.s32.totalorder %s15, 0
      %p165 = por %p163, %p164
      %p166 = scmp.ne.s32.totalorder %s158, %s160
      %p167 = scmp.eq.s32.totalorder %s20, 5
      %p168 = por %p166, %p167
      %p169 = scmp.ne.s32.totalorder %s160, %s161
      %p170 = scmp.eq.s32.totalorder %s20, 0
      %p171 = por %p169, %p170
      %p172 = scmp.ne.s32.totalorder %s160, %s161
      %p173 = scmp.eq.s32.totalorder %s21, 5
      %p174 = por %p172, %p173
      %p176 = scmp.ne.s32.totalorder %s161, %s175
      %p177 = scmp.eq.s32.totalorder %s21, 0
      %p178 = por %p176, %p177
      %s180 = sadd.s32 %s179, 1
      %p183 = scmp.eq.s32.totalorder %s15, 5
      %p184 = scmp.ne.s32.totalorder %s179, %s181
      %p185 = scmp.eq.s32.totalorder %s15, 0
      %p186 = por %p184, %p185
      %p187 = scmp.ne.s32.totalorder %s179, %s181
      %p188 = scmp.eq.s32.totalorder %s20, 5
      %p189 = por %p187, %p188
      %p190 = scmp.ne.s32.totalorder %s181, %s182
      %p191 = scmp.eq.s32.totalorder %s20, 0
      %p192 = por %p190, %p191
      %p193 = scmp.ne.s32.totalorder %s181, %s182
      %p194 = scmp.eq.s32.totalorder %s21, 5
      %p195 = por %p193, %p194
      %p197 = scmp.ne.s32.totalorder %s182, %s196
      %p198 = scmp.eq.s32.totalorder %s21, 0
      %p199 = por %p197, %p198
      %s201 = sadd.s32 %s200, 1
      %p204 = scmp.eq.s32.totalorder %s15, 5
      %p205 = scmp.ne.s32.totalorder %s200, %s202
      %p206 = scmp.eq.s32.totalorder %s15, 0
      %p207 = por %p205, %p206
      %p208 = scmp.ne.s32.totalorder %s200, %s202
      %p209 = scmp.eq.s32.totalorder %s20, 5
      %p210 = por %p208, %p209
      %p211 = scmp.ne.s32.totalorder %s202, %s203
      %p212 = scmp.eq.s32.totalorder %s20, 0
      %p213 = por %p211, %p212
      %p214 = scmp.ne.s32.totalorder %s202, %s203
      %p215 = scmp.eq.s32.totalorder %s21, 5
      %p216 = por %p214, %p215
      %p218 = scmp.ne.s32.totalorder %s203, %s217
      %p219 = scmp.eq.s32.totalorder %s21, 0
      %p220 = por %p218, %p219
      %s222 = sadd.s32 %s221, 1
      %p225 = scmp.eq.s32.totalorder %s15, 5
      %p226 = scmp.ne.s32.totalorder %s221, %s223
      %p227 = scmp.eq.s32.totalorder %s15, 0
      %p228 = por %p226, %p227
      %p229 = scmp.ne.s32.totalorder %s221, %s223
      %p230 = scmp.eq.s32.totalorder %s20, 5
      %p231 = por %p229, %p230
      %p232 = scmp.ne.s32.totalorder %s223, %s224
      %p233 = scmp.eq.s32.totalorder %s20, 0
      %p234 = por %p232, %p233
      %p235 = scmp.ne.s32.totalorder %s223, %s224
      %p236 = scmp.eq.s32.totalorder %s21, 5
      %p237 = por %p235, %p236
      %p239 = scmp.ne.s32.totalorder %s224, %s238
      %p240 = scmp.eq.s32.totalorder %s21, 0
      %p241 = por %p239, %p240
      %s242 = ssub.s32 %s22, %s34
      %s243 = ssub.s32 %s23, %s30
      %s244 = sor.u32 %s242, %s243
      %p245 = scmp.eq.s32.totalorder %s244, 0
      %s247 = sadd.s32 %s246, 1
      %s248 = scalar_select %p245, %s246, %s247
      %p251 = pneg %p245
      %p252 = scmp.eq.s32.totalorder %s15, 5
      %p253 = por %p251, %p252
      %p254 = scmp.ne.s32.totalorder %s246, %s249
      %p255 = scmp.eq.s32.totalorder %s15, 0
      %p256 = por %p254, %p255
      %p257 = scmp.ne.s32.totalorder %s246, %s249
      %p258 = scmp.eq.s32.totalorder %s20, 5
      %p259 = por %p257, %p258
      %p260 = scmp.ne.s32.totalorder %s249, %s250
      %p261 = scmp.eq.s32.totalorder %s20, 0
      %p262 = por %p260, %p261
      %p263 = scmp.ne.s32.totalorder %s249, %s250
      %p264 = scmp.eq.s32.totalorder %s21, 5
      %p265 = por %p263, %p264
      %p267 = scmp.ne.s32.totalorder %s250, %s266
      %p268 = scmp.eq.s32.totalorder %s21, 0
      %p269 = por %p267, %p268
      %p270 = scmp.le.s32.totalorder 1, %s15
      %p271 = scmp.lt.s32.totalorder %s15, 7
      %p272 = pnand %p270, %p271
      %p273 = pneg %p272
      // Predicated region
      $region9: #{tpu_custom_call.1} parent=5 // pred_check
        _
      $region10: #{tpu_custom_call.1} parent=5 // pred_check_branch
        %275 = sbr.rel (%p272) target = $region12
      $region11: #{tpu_custom_call.1} parent=5 // pred_region
        %s276 = ssub.s32 %s15, 1
        // Predicated region
        $region13: #{tpu_custom_call.1} parent=11 // pred_check
          %p277 = pneg %p108
        $region14: #{tpu_custom_call.1} parent=11 // pred_check_branch
          %279 = sbr.rel (%p277) target = $region16
        $region15: #{tpu_custom_call.1} parent=11 // pred_region
          _
        $region16: #{tpu_custom_call.1} parent=11 // pred_fallthru
          _
        // Predicated region
        $region17: #{tpu_custom_call.1} parent=11 // pred_check
          %p280 = pneg %p129
        $region18: #{tpu_custom_call.1} parent=11 // pred_check_branch
          %282 = sbr.rel (%p280) target = $region20
        $region19: #{tpu_custom_call.1} parent=11 // pred_region
          _
        $region20: #{tpu_custom_call.1} parent=11 // pred_fallthru
          _
        // Predicated region
        $region21: #{tpu_custom_call.1} parent=11 // pred_check
          %p283 = pneg %p150
        $region22: #{tpu_custom_call.1} parent=11 // pred_check_branch
          %285 = sbr.rel (%p283) target = $region24
        $region23: #{tpu_custom_call.1} parent=11 // pred_region
          _
        $region24: #{tpu_custom_call.1} parent=11 // pred_fallthru
          _
        // Predicated region
        $region25: #{tpu_custom_call.1} parent=11 // pred_check
          %p286 = pneg %p171
        $region26: #{tpu_custom_call.1} parent=11 // pred_check_branch
          %288 = sbr.rel (%p286) target = $region28
        $region27: #{tpu_custom_call.1} parent=11 // pred_region
          _
        $region28: #{tpu_custom_call.1} parent=11 // pred_fallthru
          _
        // Predicated region
        $region29: #{tpu_custom_call.1} parent=11 // pred_check
          %p289 = pneg %p192
        $region30: #{tpu_custom_call.1} parent=11 // pred_check_branch
          %291 = sbr.rel (%p289) target = $region32
        $region31: #{tpu_custom_call.1} parent=11 // pred_region
          _
        $region32: #{tpu_custom_call.1} parent=11 // pred_fallthru
          _
        // Predicated region
        $region33: #{tpu_custom_call.1} parent=11 // pred_check
          %p292 = pneg %p213
        $region34: #{tpu_custom_call.1} parent=11 // pred_check_branch
          %294 = sbr.rel (%p292) target = $region36
        $region35: #{tpu_custom_call.1} parent=11 // pred_region
          _
        $region36: #{tpu_custom_call.1} parent=11 // pred_fallthru
          _
        // Predicated region
        $region37: #{tpu_custom_call.1} parent=11 // pred_check
          %p295 = pneg %p234
        $region38: #{tpu_custom_call.1} parent=11 // pred_check_branch
          %297 = sbr.rel (%p295) target = $region40
        $region39: #{tpu_custom_call.1} parent=11 // pred_region
          _
        $region40: #{tpu_custom_call.1} parent=11 // pred_fallthru
          _
      $region12: #{tpu_custom_call.1} parent=5 // pred_fallthru
        _
      %p298 = scmp.lt.s32.totalorder %s15, 6
      // Predicated region
      $region41: #{tpu_custom_call.1} parent=5 // pred_check
        %p299 = pneg %p298
      $region42: #{tpu_custom_call.1} parent=5 // pred_check_branch
        %301 = sbr.rel (%p299) target = $region44
      $region43: #{tpu_custom_call.1} parent=5 // pred_region
        // Predicated region
        $region45: #{tpu_custom_call.1} parent=43 // pred_check
          %p302 = pneg %p49
        $region46: #{tpu_custom_call.1} parent=43 // pred_check_branch
          %304 = sbr.rel (%p302) target = $region48
        $region47: #{tpu_custom_call.1} parent=43 // pred_region
          %s305 = smul.u32 24, %s23
          %s306 = ssub.s32 78, %s305
          %p307 = scmp.lt.s32.totalorder %s306, 24
          %s308 = scalar_select %p307, %s306, 24
          %s309 = smul.u32 128, %s308
          %p310 = scmp.lt.s32.totalorder %s22, 1
          %s311 = scalar_select %p310, %s22, 1
          %p312 = scmp.lt.s32.totalorder %s305, 77
          %s313 = scalar_select %p312, %s305, 77
          %s314 = smul.addr %s311, 78
          %s315 = sadd.s32 %s313, %s314
          %s316 = smul.addr %s315, 8
          %s317 = scalar_lea.vmem %s0, %s316
          %s318 = smul.u32 24, %s23
          %s319 = ssub.s32 78, %s318
          %p320 = scmp.lt.s32.totalorder %s319, 24
          %s321 = scalar_select %p320, %s319, 24
          %s322 = smul.u32 128, %s321
        $region48: #{tpu_custom_call.1} parent=43 // pred_fallthru
          _
        // Predicated region
        $region49: #{tpu_custom_call.1} parent=43 // pred_check
          %p323 = pneg %p81
        $region50: #{tpu_custom_call.1} parent=43 // pred_check_branch
          %325 = sbr.rel (%p323) target = $region52
        $region51: #{tpu_custom_call.1} parent=43 // pred_region
          %s326 = sadd.s32 %s23, 1
          %s327 = smul.u32 %s326, 4
          %s328 = smul.u32 6, %s327
          %p329 = scmp.lt.s32.totalorder %s22, 1
          %s330 = scalar_select %p329, %s22, 1
          %p331 = scmp.lt.s32.totalorder %s328, 77
          %s332 = scalar_select %p331, %s328, 77
          %s333 = smul.addr %s330, 78
          %s334 = sadd.s32 %s332, %s333
          %s335 = smul.addr %s334, 8
          %s336 = scalar_lea.vmem %s1, %s335
          %s337 = sadd.s32 %s23, 1
          %s338 = smul.u32 %s337, 4
          %s339 = smul.u32 6, %s338
        $region52: #{tpu_custom_call.1} parent=43 // pred_fallthru
          _
      $region44: #{tpu_custom_call.1} parent=5 // pred_fallthru
        _
      %p340 = scmp.le.s32.totalorder 1, %s15
      %p341 = scmp.lt.s32.totalorder %s15, 7
      %p342 = pnand %p340, %p341
      %p343 = pneg %p342
      // Predicated region
      $region53: #{tpu_custom_call.1} parent=5 // pred_check
        _
      $region54: #{tpu_custom_call.1} parent=5 // pred_check_branch
        %345 = sbr.rel (%p342) target = $region56
      $region55: #{tpu_custom_call.1} parent=5 // pred_region
        %s346 = ssub.s32 %s15, 1
        %s347 = smul.u32 24, %s25
        %s348 = ssub.s32 78, %s347
        %p349 = scmp.lt.s32.totalorder %s348, 24
        %s350 = scalar_select %p349, %s348, 24
        %s351 = smul.u32 128, %s350
        %p352 = scmp.lt.s32.totalorder %s24, 1
        %s353 = scalar_select %p352, %s24, 1
        %p354 = scmp.lt.s32.totalorder %s347, 77
        %s355 = scalar_select %p354, %s347, 77
        %s356 = smul.addr %s353, 78
        %s357 = sadd.s32 %s355, %s356
        %s358 = smul.addr %s357, 8
        %s359 = scalar_lea.vmem %s0, %s358
        %p360 = pneg %p55
        %p361 = pneg %p52
        %s362 = sadd.s32 %s25, 1
        %s363 = smul.u32 %s362, 4
        %s364 = smul.u32 6, %s363
        %p365 = scmp.lt.s32.totalorder %s24, 1
        %s366 = scalar_select %p365, %s24, 1
        %p367 = scmp.lt.s32.totalorder %s364, 77
        %s368 = scalar_select %p367, %s364, 77
        %s369 = smul.addr %s366, 78
        %s370 = sadd.s32 %s368, %s369
        %s371 = smul.addr %s370, 8
        %s372 = scalar_lea.vmem %s1, %s371
        %p373 = pneg %p87
        %p374 = pneg %p84
        %p375 = pneg %p108
        %p376 = pneg %p105
        %p377 = pneg %p129
        %p378 = pneg %p126
        %p379 = pneg %p150
        %p380 = pneg %p147
        %p381 = pneg %p171
        %p382 = pneg %p168
        %p383 = pneg %p192
        %p384 = pneg %p189
        %p385 = pneg %p213
        %p386 = pneg %p210
        %p387 = pneg %p234
        %p388 = pneg %p231
        %p389 = pneg %p262
        %p390 = pneg %p259
        %s391 = sand.u32 %s249, 1
        %s392 = sand.u32 %s249, 1
        %s393 = smul.addr %s392, 128
        %s394 = scalar_lea.vmem [#allocation3], %s393
        %s395 = smul.u32 24, %s25
        %s396 = ssub.s32 78, %s395
        %p397 = scmp.lt.s32.totalorder %s396, 24
        %s398 = scalar_select %p397, %s396, 24
        %s399 = smul.u32 128, %s398
        %p400 = scmp.lt.s32.totalorder %s24, 1
        %s401 = scalar_select %p400, %s24, 1
        %p402 = scmp.lt.s32.totalorder %s395, 77
        %s403 = scalar_select %p402, %s395, 77
        %s404 = smul.addr %s401, 78
        %s405 = sadd.s32 %s403, %s404
        %s406 = smul.addr %s405, 8
        %s407 = scalar_lea.vmem %s0, %s406
        %s408 = smul.u32 24, %s25
        %s409 = ssub.s32 78, %s408
        %p410 = scmp.lt.s32.totalorder %s409, 24
        %s411 = scalar_select %p410, %s409, 24
        %s412 = smul.u32 128, %s411
        %s413 = sadd.s32 %s25, 1
        %s414 = smul.u32 %s413, 4
        %s415 = smul.u32 6, %s414
        %p416 = scmp.lt.s32.totalorder %s24, 1
        %s417 = scalar_select %p416, %s24, 1
        %p418 = scmp.lt.s32.totalorder %s415, 77
        %s419 = scalar_select %p418, %s415, 77
        %s420 = smul.addr %s417, 78
        %s421 = sadd.s32 %s419, %s420
        %s422 = smul.addr %s421, 8
        %s423 = scalar_lea.vmem %s1, %s422
        %s424 = sadd.s32 %s25, 1
        %s425 = smul.u32 %s424, 4
        %s426 = smul.u32 6, %s425
        %s427 = smul.u32 8, %s25
        %s428 = ssub.s32 20, %s427
        %p429 = scmp.lt.s32.totalorder %s428, 8
        %s430 = scalar_select %p429, %s428, 8
        %s431 = smul.u32 128, %s430
        %s432 = smul.u32 %s431, 2
        %s433 = smul.u32 %s25, 8
        %v434 = vld [vmem:[%s407] sm:$0xff]
        %v435 = vld [vmem:[%s407 + $0x8] sm:$0xff]
        %v436 = vld [vmem:[%s407 + $0x10] sm:$0xff]
        %v437 = vld [vmem:[%s407 + $0x18] sm:$0xff]
        %v438 = vld [vmem:[%s407 + $0x20] sm:$0xff]
        %v439 = vld [vmem:[%s407 + $0x28] sm:$0xff]
        %v440 = vld [vmem:[%s407 + $0x30] sm:$0xff]
        %v441 = vld [vmem:[%s407 + $0x38] sm:$0xff]
        %v442 = vld [vmem:[%s407 + $0x40] sm:$0xff]
        %v443 = vld [vmem:[%s407 + $0x48] sm:$0xff]
        %v444 = vld [vmem:[%s407 + $0x50] sm:$0xff]
        %v445 = vld [vmem:[%s407 + $0x58] sm:$0xff]
        %v446 = vld [vmem:[%s407 + $0x60] sm:$0xff]
        %v447 = vld [vmem:[%s407 + $0x68] sm:$0xff]
        %v448 = vld [vmem:[%s407 + $0x70] sm:$0xff]
        %v449 = vld [vmem:[%s407 + $0x78] sm:$0xff]
        %v450 = vld [vmem:[%s407 + $0x80] sm:$0xff]
        %v451 = vld [vmem:[%s407 + $0x88] sm:$0xff]
        %v452 = vld [vmem:[%s407 + $0x90] sm:$0xff]
        %v453 = vld [vmem:[%s407 + $0x98] sm:$0xff]
        %v454 = vld [vmem:[%s407 + $0xa0] sm:$0xff]
        %v455 = vld [vmem:[%s407 + $0xa8] sm:$0xff]
        %v456 = vld [vmem:[%s407 + $0xb0] sm:$0xff]
        %v457 = vld [vmem:[%s407 + $0xb8] sm:$0xff]
        %vm458 = vcmask 64512
        %459 = vst.msk [vmem:[#allocation2] sm:$0xff] %vm458, %v434
        %460 = vst.msk [vmem:[#allocation2 + $0x8] sm:$0xff] %vm458, %v435
        %461 = vst.msk [vmem:[#allocation2 + $0x10] sm:$0xff] %vm458, %v436
        %462 = vst.msk [vmem:[#allocation2 + $0x18] sm:$0xff] %vm458, %v437
        %463 = vst.msk [vmem:[#allocation2 + $0x20] sm:$0xff] %vm458, %v438
        %464 = vst.msk [vmem:[#allocation2 + $0x28] sm:$0xff] %vm458, %v439
        %465 = vst.msk [vmem:[#allocation2 + $0x30] sm:$0xff] %vm458, %v440
        %466 = vst.msk [vmem:[#allocation2 + $0x38] sm:$0xff] %vm458, %v441
        %467 = vst.msk [vmem:[#allocation2 + $0x40] sm:$0xff] %vm458, %v442
        %468 = vst.msk [vmem:[#allocation2 + $0x48] sm:$0xff] %vm458, %v443
        %469 = vst.msk [vmem:[#allocation2 + $0x50] sm:$0xff] %vm458, %v444
        %470 = vst.msk [vmem:[#allocation2 + $0x58] sm:$0xff] %vm458, %v445
        %471 = vst.msk [vmem:[#allocation2 + $0x60] sm:$0xff] %vm458, %v446
        %472 = vst.msk [vmem:[#allocation2 + $0x68] sm:$0xff] %vm458, %v447
        %473 = vst.msk [vmem:[#allocation2 + $0x70] sm:$0xff] %vm458, %v448
        %474 = vst.msk [vmem:[#allocation2 + $0x78] sm:$0xff] %vm458, %v449
        %475 = vst.msk [vmem:[#allocation2 + $0x80] sm:$0xff] %vm458, %v450
        %476 = vst.msk [vmem:[#allocation2 + $0x88] sm:$0xff] %vm458, %v451
        %477 = vst.msk [vmem:[#allocation2 + $0x90] sm:$0xff] %vm458, %v452
        %478 = vst.msk [vmem:[#allocation2 + $0x98] sm:$0xff] %vm458, %v453
        %479 = vst.msk [vmem:[#allocation2 + $0xa0] sm:$0xff] %vm458, %v454
        %480 = vst.msk [vmem:[#allocation2 + $0xa8] sm:$0xff] %vm458, %v455
        %481 = vst.msk [vmem:[#allocation2 + $0xb0] sm:$0xff] %vm458, %v456
        %482 = vst.msk [vmem:[#allocation2 + $0xb8] sm:$0xff] %vm458, %v457
        %v483 = vld [vmem:[%s423] sm:$0xff]
        %v484 = vld [vmem:[%s423 + $0x8] sm:$0xff]
        %v485 = vld [vmem:[%s423 + $0x10] sm:$0xff]
        %v486 = vld [vmem:[%s423 + $0x18] sm:$0xff]
        %v487 = vld [vmem:[%s423 + $0x20] sm:$0xff]
        %v488 = vld [vmem:[%s423 + $0x28] sm:$0xff]
        %489 = vst.msk [vmem:[#allocation2 + $0xc0] sm:$0xff] %vm458, %v483
        %490 = vst.msk [vmem:[#allocation2 + $0xc8] sm:$0xff] %vm458, %v484
        %491 = vst.msk [vmem:[#allocation2 + $0xd0] sm:$0xff] %vm458, %v485
        %492 = vst.msk [vmem:[#allocation2 + $0xd8] sm:$0xff] %vm458, %v486
        %493 = vst.msk [vmem:[#allocation2 + $0xe0] sm:$0xff] %vm458, %v487
        %494 = vst.msk [vmem:[#allocation2 + $0xe8] sm:$0xff] %vm458, %v488
        %495 = vst.msk [vmem:[#allocation2 + $0xf0] sm:$0xff] %vm458, 0.0
        %496 = vst.msk [vmem:[#allocation2 + $0xf8] sm:$0xff] %vm458, 0.0
        %497 = vst.msk [vmem:[#allocation2 + $0x100] sm:$0xff] %vm458, 0.0
        %v498 = vld [vmem:[#allocation2] sm:$0xff]
        %v499 = vld [vmem:[#allocation2 + $0x8] sm:$0xff]
        %v500 = vld [vmem:[#allocation2 + $0x10] sm:$0xff]
        %v501 = vld [vmem:[#allocation2 + $0x18] sm:$0xff]
        %v502 = vld [vmem:[#allocation2 + $0x20] sm:$0xff]
        %v503 = vld [vmem:[#allocation2 + $0x28] sm:$0xff]
        %v504 = vld [vmem:[#allocation2 + $0x30] sm:$0xff]
        %v505 = vld [vmem:[#allocation2 + $0x38] sm:$0xff]
        %v506 = vld [vmem:[#allocation2 + $0x40] sm:$0xff]
        %v507 = vld [vmem:[#allocation2 + $0x48] sm:$0xff]
        %v508 = vld [vmem:[#allocation2 + $0x50] sm:$0xff]
        %v509 = vld [vmem:[#allocation2 + $0x58] sm:$0xff]
        %v510 = vld [vmem:[#allocation2 + $0x60] sm:$0xff]
        %v511 = vld [vmem:[#allocation2 + $0x68] sm:$0xff]
        %v512 = vld [vmem:[#allocation2 + $0x70] sm:$0xff]
        %v513 = vld [vmem:[#allocation2 + $0x78] sm:$0xff]
        %v514 = vld [vmem:[#allocation2 + $0x80] sm:$0xff]
        %v515 = vld [vmem:[#allocation2 + $0x88] sm:$0xff]
        %v516 = vld [vmem:[#allocation2 + $0x90] sm:$0xff]
        %v517 = vld [vmem:[#allocation2 + $0x98] sm:$0xff]
        %v518 = vld [vmem:[#allocation2 + $0xa0] sm:$0xff]
        %v519 = vld [vmem:[#allocation2 + $0xa8] sm:$0xff]
        %v520 = vld [vmem:[#allocation2 + $0xb0] sm:$0xff]
        %v521 = vld [vmem:[#allocation2 + $0xb8] sm:$0xff]
        %v522 = vld [vmem:[#allocation2 + $0xc0] sm:$0xff]
        %v523 = vld [vmem:[#allocation2 + $0xc8] sm:$0xff]
        %v524 = vld [vmem:[#allocation2 + $0xd0] sm:$0xff]
        %v525 = vld [vmem:[#allocation2 + $0xd8] sm:$0xff]
        %v526 = vld [vmem:[#allocation2 + $0xe0] sm:$0xff]
        %v527 = vld [vmem:[#allocation2 + $0xe8] sm:$0xff]
        %v528 = vld [vmem:[#allocation2 + $0xf0] sm:$0xff]
        %v529 = vld [vmem:[#allocation2 + $0xf8] sm:$0xff]
        %v530 = vld [vmem:[#allocation2 + $0x100] sm:$0xff]
        %v531 = vld [vmem:[%s3] sm:$0xff]
        %v532 = vld [vmem:[%s4] sm:$0x1]
        %v534 = vlaneseq
        %v535 = vshrl.u32 %v534, 7
        %v536 = vsub.s32 0, %v535
        %v537 = vrot.slane %v532, %v536
        %v540 = vsel %vm458, %v498, 0
        %v543 = vsel %vm458, %v499, 0
        %v546 = vsel %vm458, %v500, 0
        %v549 = vsel %vm458, %v501, 0
        %v552 = vsel %vm458, %v502, 0
        %v555 = vsel %vm458, %v503, 0
        %v558 = vsel %vm458, %v504, 0
        %v561 = vsel %vm458, %v505, 0
        %v564 = vsel %vm458, %v506, 0
        %v567 = vsel %vm458, %v507, 0
        %v570 = vsel %vm458, %v508, 0
        %v573 = vsel %vm458, %v509, 0
        %v576 = vsel %vm458, %v510, 0
        %v579 = vsel %vm458, %v511, 0
        %v582 = vsel %vm458, %v512, 0
        %v585 = vsel %vm458, %v513, 0
        %v588 = vsel %vm458, %v514, 0
        %v591 = vsel %vm458, %v515, 0
        %v594 = vsel %vm458, %v516, 0
        %v597 = vsel %vm458, %v517, 0
        %v600 = vsel %vm458, %v518, 0
        %v603 = vsel %vm458, %v519, 0
        %v606 = vsel %vm458, %v520, 0
        %v609 = vsel %vm458, %v521, 0
        %v612 = vsel %vm458, %v522, 0
        %v615 = vsel %vm458, %v523, 0
        %v618 = vsel %vm458, %v524, 0
        %v621 = vsel %vm458, %v525, 0
        %v624 = vsel %vm458, %v526, 0
        %v627 = vsel %vm458, %v527, 0
        %v630 = vsel %vm458, %v528, 0
        %v633 = vsel %vm458, %v529, 0
        %v636 = vsel %vm458, %v530, 0
        %638 = vmatprep.subr.mxu0 0.0
        %639 = vmatpush1.msra.mxu0 %v531
        %640 = vmatprep.subr.mxu0 0.0
        %641 = vmatpush1.msra.mxu0 0.0
        %642 = vmatprep.subr.mxu0 0.0
        %643 = vmatpush1.msra.mxu0 0.0
        %644 = vmatprep.subr.mxu0 0.0
        %645 = vmatpush1.msra.mxu0 0.0
        %646 = vmatprep.subr.mxu0 0.0
        %647 = vmatpush1.msra.mxu0 0.0
        %648 = vmatprep.subr.mxu0 0.0
        %649 = vmatpush1.msra.mxu0 0.0
        %650 = vmatprep.subr.mxu0 0.0
        %651 = vmatpush1.msra.mxu0 0.0
        %652 = vmatprep.subr.mxu0 0.0
        %653 = vmatpush1.msra.mxu0 0.0
        %654 = vmatprep.subr.mxu0 0.0
        %655 = vmatpush1.msra.mxu0 0.0
        %656 = vmatprep.subr.mxu0 0.0
        %657 = vmatpush1.msra.mxu0 0.0
        %658 = vmatprep.subr.mxu0 0.0
        %659 = vmatpush1.msra.mxu0 0.0
        %660 = vmatprep.subr.mxu0 0.0
        %661 = vmatpush1.msra.mxu0 0.0
        %662 = vmatprep.subr.mxu0 0.0
        %663 = vmatpush1.msra.mxu0 0.0
        %664 = vmatprep.subr.mxu0 0.0
        %665 = vmatpush1.msra.mxu0 0.0
        %666 = vmatprep.subr.mxu0 0.0
        %667 = vmatpush1.msra.mxu0 0.0
        %668 = vmatprep.subr.mxu0 0.0
        %669 = vmatpush1.msra.mxu0 0.0
        %670 = vmatprep.subr.mxu0 0.0
        %671 = vmatpush1.msra.mxu0 0.0
        %672 = vmatprep.subr.mxu0 0.0
        %673 = vmatpush1.msra.mxu0 0.0
        %674 = vmatprep.subr.mxu0 0.0
        %675 = vmatpush1.msra.mxu0 0.0
        %676 = vmatprep.subr.mxu0 0.0
        %677 = vmatpush1.msra.mxu0 0.0
        %678 = vmatprep.subr.mxu0 0.0
        %679 = vmatpush1.msra.mxu0 0.0
        %680 = vmatprep.subr.mxu0 0.0
        %681 = vmatpush1.msra.mxu0 0.0
        %682 = vmatprep.subr.mxu0 0.0
        %683 = vmatpush1.msra.mxu0 0.0
        %684 = vmatprep.subr.mxu0 0.0
        %685 = vmatpush1.msra.mxu0 0.0
        %686 = vmatprep.subr.mxu0 0.0
        %687 = vmatpush1.msra.mxu0 0.0
        %688 = vmatprep.subr.mxu0 0.0
        %689 = vmatpush1.msra.mxu0 0.0
        %690 = vmatprep.subr.mxu0 0.0
        %691 = vmatpush1.msra.mxu0 0.0
        %692 = vmatprep.subr.mxu0 0.0
        %693 = vmatpush1.msra.mxu0 0.0
        %694 = vmatprep.subr.mxu0 0.0
        %695 = vmatpush1.msra.mxu0 0.0
        %696 = vmatprep.subr.mxu0 0.0
        %697 = vmatpush1.msra.mxu0 0.0
        %698 = vmatprep.subr.mxu0 0.0
        %699 = vmatpush1.msra.mxu0 0.0
        %700 = vmatprep.subr.mxu0 0.0
        %701 = vmatpush1.msra.mxu0 0.0
        %702 = vmatprep.mubr.f32.mxu0 0.0
        %703 = vmatmul.mubr.f32.gmra.mrb[0].mxu0 %v540
        %v704 = vpop.f32.mrb[0].mxu0
        %v705 = vadd.f32 %v537, %v704
        %v706 = vpop.f32.mrb[0].mxu0
        %707 = vmatprep.mubr.f32.mxu0 0.0
        %708 = vmatmul.mubr.f32.gmra.mrb[0].mxu0 %v543
        %v709 = vpop.f32.mrb[0].mxu0
        %v710 = vadd.f32 %v537, %v709
        %v711 = vpop.f32.mrb[0].mxu0
        %712 = vmatprep.mubr.f32.mxu0 0.0
        %713 = vmatmul.mubr.f32.gmra.mrb[0].mxu0 %v546
        %v714 = vpop.f32.mrb[0].mxu0
        %v715 = vadd.f32 %v537, %v714
        %v716 = vpop.f32.mrb[0].mxu0
        %717 = vmatprep.mubr.f32.mxu0 0.0
        %718 = vmatmul.mubr.f32.gmra.mrb[0].mxu0 %v549
        %v719 = vpop.f32.mrb[0].mxu0
        %v720 = vadd.f32 %v537, %v719
        %v721 = vpop.f32.mrb[0].mxu0
        %722 = vmatprep.mubr.f32.mxu0 0.0
        %723 = vmatmul.mubr.f32.gmra.mrb[0].mxu0 %v552
        %v724 = vpop.f32.mrb[0].mxu0
        %v725 = vadd.f32 %v537, %v724
        %v726 = vpop.f32.mrb[0].mxu0
        %727 = vmatprep.mubr.f32.mxu0 0.0
        %728 = vmatmul.mubr.f32.gmra.mrb[0].mxu0 %v555
        %v729 = vpop.f32.mrb[0].mxu0
        %v730 = vadd.f32 %v537, %v729
        %v731 = vpop.f32.mrb[0].mxu0
        %732 = vmatprep.mubr.f32.mxu0 0.0
        %733 = vmatmul.mubr.f32.gmra.mrb[0].mxu0 %v558
        %v734 = vpop.f32.mrb[0].mxu0
        %v735 = vadd.f32 %v537, %v734
        %v736 = vpop.f32.mrb[0].mxu0
        %737 = vmatprep.mubr.f32.mxu0 0.0
        %738 = vmatmul.mubr.f32.gmra.mrb[0].mxu0 %v561
        %v739 = vpop.f32.mrb[0].mxu0
        %v740 = vadd.f32 %v537, %v739
        %v741 = vpop.f32.mrb[0].mxu0
        %742 = vmatprep.mubr.f32.mxu0 0.0
        %743 = vmatmul.mubr.f32.gmra.mrb[0].mxu0 %v564
        %v744 = vpop.f32.mrb[0].mxu0
        %v745 = vadd.f32 %v537, %v744
        %v746 = vpop.f32.mrb[0].mxu0
        %747 = vmatprep.mubr.f32.mxu0 0.0
        %748 = vmatmul.mubr.f32.gmra.mrb[0].mxu0 %v567
        %v749 = vpop.f32.mrb[0].mxu0
        %v750 = vadd.f32 %v537, %v749
        %v751 = vpop.f32.mrb[0].mxu0
        %752 = vmatprep.mubr.f32.mxu0 0.0
        %753 = vmatmul.mubr.f32.gmra.mrb[0].mxu0 %v570
        %v754 = vpop.f32.mrb[0].mxu0
        %v755 = vadd.f32 %v537, %v754
        %v756 = vpop.f32.mrb[0].mxu0
        %757 = vmatprep.mubr.f32.mxu0 0.0
        %758 = vmatmul.mubr.f32.gmra.mrb[0].mxu0 %v573
        %v759 = vpop.f32.mrb[0].mxu0
        %v760 = vadd.f32 %v537, %v759
        %v761 = vpop.f32.mrb[0].mxu0
        %762 = vmatprep.mubr.f32.mxu0 0.0
        %763 = vmatmul.mubr.f32.gmra.mrb[0].mxu0 %v576
        %v764 = vpop.f32.mrb[0].mxu0
        %v765 = vadd.f32 %v537, %v764
        %v766 = vpop.f32.mrb[0].mxu0
        %767 = vmatprep.mubr.f32.mxu0 0.0
        %768 = vmatmul.mubr.f32.gmra.mrb[0].mxu0 %v579
        %v769 = vpop.f32.mrb[0].mxu0
        %v770 = vadd.f32 %v537, %v769
        %v771 = vpop.f32.mrb[0].mxu0
        %772 = vmatprep.mubr.f32.mxu0 0.0
        %773 = vmatmul.mubr.f32.gmra.mrb[0].mxu0 %v582
        %v774 = vpop.f32.mrb[0].mxu0
        %v775 = vadd.f32 %v537, %v774
        %v776 = vpop.f32.mrb[0].mxu0
        %777 = vmatprep.mubr.f32.mxu0 0.0
        %778 = vmatmul.mubr.f32.gmra.mrb[0].mxu0 %v585
        %v779 = vpop.f32.mrb[0].mxu0
        %v780 = vadd.f32 %v537, %v779
        %v781 = vpop.f32.mrb[0].mxu0
        %782 = vmatprep.mubr.f32.mxu0 0.0
        %783 = vmatmul.mubr.f32.gmra.mrb[0].mxu0 %v588
        %v784 = vpop.f32.mrb[0].mxu0
        %v785 = vadd.f32 %v537, %v784
        %v786 = vpop.f32.mrb[0].mxu0
        %787 = vmatprep.mubr.f32.mxu0 0.0
        %788 = vmatmul.mubr.f32.gmra.mrb[0].mxu0 %v591
        %v789 = vpop.f32.mrb[0].mxu0
        %v790 = vadd.f32 %v537, %v789
        %v791 = vpop.f32.mrb[0].mxu0
        %792 = vmatprep.mubr.f32.mxu0 0.0
        %793 = vmatmul.mubr.f32.gmra.mrb[0].mxu0 %v594
        %v794 = vpop.f32.mrb[0].mxu0
        %v795 = vadd.f32 %v537, %v794
        %v796 = vpop.f32.mrb[0].mxu0
        %797 = vmatprep.mubr.f32.mxu0 0.0
        %798 = vmatmul.mubr.f32.gmra.mrb[0].mxu0 %v597
        %v799 = vpop.f32.mrb[0].mxu0
        %v800 = vadd.f32 %v537, %v799
        %v801 = vpop.f32.mrb[0].mxu0
        %802 = vmatprep.mubr.f32.mxu0 0.0
        %803 = vmatmul.mubr.f32.gmra.mrb[0].mxu0 %v600
        %v804 = vpop.f32.mrb[0].mxu0
        %v805 = vadd.f32 %v537, %v804
        %v806 = vpop.f32.mrb[0].mxu0
        %807 = vmatprep.mubr.f32.mxu0 0.0
        %808 = vmatmul.mubr.f32.gmra.mrb[0].mxu0 %v603
        %v809 = vpop.f32.mrb[0].mxu0
        %v810 = vadd.f32 %v537, %v809
        %v811 = vpop.f32.mrb[0].mxu0
        %812 = vmatprep.mubr.f32.mxu0 0.0
        %813 = vmatmul.mubr.f32.gmra.mrb[0].mxu0 %v606
        %v814 = vpop.f32.mrb[0].mxu0
        %v815 = vadd.f32 %v537, %v814
        %v816 = vpop.f32.mrb[0].mxu0
        %817 = vmatprep.mubr.f32.mxu0 0.0
        %818 = vmatmul.mubr.f32.gmra.mrb[0].mxu0 %v609
        %v819 = vpop.f32.mrb[0].mxu0
        %v820 = vadd.f32 %v537, %v819
        %v821 = vpop.f32.mrb[0].mxu0
        %822 = vmatprep.mubr.f32.mxu0 0.0
        %823 = vmatmul.mubr.f32.gmra.mrb[0].mxu0 %v612
        %v824 = vpop.f32.mrb[0].mxu0
        %v825 = vadd.f32 %v537, %v824
        %v826 = vpop.f32.mrb[0].mxu0
        %827 = vmatprep.mubr.f32.mxu0 0.0
        %828 = vmatmul.mubr.f32.gmra.mrb[0].mxu0 %v615
        %v829 = vpop.f32.mrb[0].mxu0
        %v830 = vadd.f32 %v537, %v829
        %v831 = vpop.f32.mrb[0].mxu0
        %832 = vmatprep.mubr.f32.mxu0 0.0
        %833 = vmatmul.mubr.f32.gmra.mrb[0].mxu0 %v618
        %v834 = vpop.f32.mrb[0].mxu0
        %v835 = vadd.f32 %v537, %v834
        %v836 = vpop.f32.mrb[0].mxu0
        %837 = vmatprep.mubr.f32.mxu0 0.0
        %838 = vmatmul.mubr.f32.gmra.mrb[0].mxu0 %v621
        %v839 = vpop.f32.mrb[0].mxu0
        %v840 = vadd.f32 %v537, %v839
        %v841 = vpop.f32.mrb[0].mxu0
        %842 = vmatprep.mubr.f32.mxu0 0.0
        %843 = vmatmul.mubr.f32.gmra.mrb[0].mxu0 %v624
        %v844 = vpop.f32.mrb[0].mxu0
        %v845 = vadd.f32 %v537, %v844
        %v846 = vpop.f32.mrb[0].mxu0
        %847 = vmatprep.mubr.f32.mxu0 0.0
        %848 = vmatmul.mubr.f32.gmra.mrb[0].mxu0 %v627
        %v849 = vpop.f32.mrb[0].mxu0
        %v850 = vadd.f32 %v537, %v849
        %v851 = vpop.f32.mrb[0].mxu0
        %852 = vmatprep.mubr.f32.mxu0 0.0
        %853 = vmatmul.mubr.f32.gmra.mrb[0].mxu0 %v630
        %v854 = vpop.f32.mrb[0].mxu0
        %v855 = vadd.f32 %v537, %v854
        %v856 = vpop.f32.mrb[0].mxu0
        %857 = vmatprep.mubr.f32.mxu0 0.0
        %858 = vmatmul.mubr.f32.gmra.mrb[0].mxu0 %v633
        %v859 = vpop.f32.mrb[0].mxu0
        %v860 = vpop.f32.mrb[0].mxu0
        %861 = vmatprep.mubr.f32.mxu0 0.0
        %862 = vmatmul.mubr.f32.gmra.mrb[0].mxu0 %v636
        %v863 = vpop.f32.mrb[0].mxu0
        %v864 = vpop.f32.mrb[0].mxu0
        %865 = vdwg.mxu0
        %v866 = vmax.f32 %v705, 0.0
        %v867 = vmax.f32 %v710, 0.0
        %v868 = vmax.f32 %v715, 0.0
        %v869 = vmax.f32 %v720, 0.0
        %v870 = vmax.f32 %v725, 0.0
        %v871 = vmax.f32 %v730, 0.0
        %v872 = vmax.f32 %v735, 0.0
        %v873 = vmax.f32 %v740, 0.0
        %v874 = vmax.f32 %v745, 0.0
        %v875 = vmax.f32 %v750, 0.0
        %v876 = vmax.f32 %v755, 0.0
        %v877 = vmax.f32 %v760, 0.0
        %v878 = vmax.f32 %v765, 0.0
        %v879 = vmax.f32 %v770, 0.0
        %v880 = vmax.f32 %v775, 0.0
        %v881 = vmax.f32 %v780, 0.0
        %v882 = vmax.f32 %v785, 0.0
        %v883 = vmax.f32 %v790, 0.0
        %v884 = vmax.f32 %v795, 0.0
        %v885 = vmax.f32 %v800, 0.0
        %v886 = vmax.f32 %v805, 0.0
        %v887 = vmax.f32 %v810, 0.0
        %v888 = vmax.f32 %v815, 0.0
        %v889 = vmax.f32 %v820, 0.0
        %v890 = vmax.f32 %v825, 0.0
        %v891 = vmax.f32 %v830, 0.0
        %v892 = vmax.f32 %v835, 0.0
        %v893 = vmax.f32 %v840, 0.0
        %v894 = vmax.f32 %v845, 0.0
        %v895 = vmax.f32 %v850, 0.0
        %v896 = vmax.f32 %v855, 0.0
        %v897 = vmin.f32 %v866, 6.0
        %v898 = vmin.f32 %v867, 6.0
        %v899 = vmin.f32 %v868, 6.0
        %v900 = vmin.f32 %v869, 6.0
        %v901 = vmin.f32 %v870, 6.0
        %v902 = vmin.f32 %v871, 6.0
        %v903 = vmin.f32 %v872, 6.0
        %v904 = vmin.f32 %v873, 6.0
        %v905 = vmin.f32 %v874, 6.0
        %v906 = vmin.f32 %v875, 6.0
        %v907 = vmin.f32 %v876, 6.0
        %v908 = vmin.f32 %v877, 6.0
        %v909 = vmin.f32 %v878, 6.0
        %v910 = vmin.f32 %v879, 6.0
        %v911 = vmin.f32 %v880, 6.0
        %v912 = vmin.f32 %v881, 6.0
        %v913 = vmin.f32 %v882, 6.0
        %v914 = vmin.f32 %v883, 6.0
        %v915 = vmin.f32 %v884, 6.0
        %v916 = vmin.f32 %v885, 6.0
        %v917 = vmin.f32 %v886, 6.0
        %v918 = vmin.f32 %v887, 6.0
        %v919 = vmin.f32 %v888, 6.0
        %v920 = vmin.f32 %v889, 6.0
        %v921 = vmin.f32 %v890, 6.0
        %v922 = vmin.f32 %v891, 6.0
        %v923 = vmin.f32 %v892, 6.0
        %v924 = vmin.f32 %v893, 6.0
        %v925 = vmin.f32 %v894, 6.0
        %v926 = vmin.f32 %v895, 6.0
        %v927 = vmin.f32 %v896, 6.0
        %v928 = vld [vmem:[%s2] sm:$0xff]
        %v929 = vld [vmem:[%s2 + $0x8] sm:$0xff]
        %v930 = vld [vmem:[%s2 + $0x10] sm:$0xff]
        %v931 = vld [vmem:[%s2 + $0x18] sm:$0xff]
        %v932 = vld [vmem:[%s2 + $0x20] sm:$0xff]
        %v933 = vld [vmem:[%s2 + $0x28] sm:$0xff]
        %v934 = vld [vmem:[%s2 + $0x30] sm:$0xff]
        %v935 = vld [vmem:[%s2 + $0x38] sm:$0xff]
        %v936 = vld [vmem:[%s2 + $0x40] sm:$0xff]
        %v937 = vld [vmem:[%s2 + $0x48] sm:$0xff]
        %v938 = vld [vmem:[%s2 + $0x50] sm:$0xff]
        %v939 = vld [vmem:[%s2 + $0x58] sm:$0xff]
        %v940 = vld [vmem:[%s2 + $0x60] sm:$0xff]
        %v941 = vld [vmem:[%s2 + $0x68] sm:$0xff]
        %v942 = vld [vmem:[%s2 + $0x70] sm:$0xff]
        %v943 = vld [vmem:[%s2 + $0x78] sm:$0xff]
        %v944 = vld [vmem:[%s2 + $0x80] sm:$0xff]
        %v945 = vld [vmem:[%s2 + $0x88] sm:$0xff]
        %v946 = vld [vmem:[%s2 + $0x90] sm:$0xff]
        %v947 = vld [vmem:[%s2 + $0x98] sm:$0xff]
        %v948 = vld [vmem:[%s2 + $0xa0] sm:$0xff]
        %v949 = vld [vmem:[%s2 + $0xa8] sm:$0xff]
        %v950 = vld [vmem:[%s2 + $0xb0] sm:$0xff]
        %v951 = vld [vmem:[%s2 + $0xb8] sm:$0xff]
        %v952 = vld [vmem:[%s2 + $0xc0] sm:$0xff]
        %v953 = vld [vmem:[%s2 + $0xc8] sm:$0xff]
        %v954 = vld [vmem:[%s2 + $0xd0] sm:$0xff]
        %v955 = vld [vmem:[%s2 + $0xd8] sm:$0xff]
        %v956 = vld [vmem:[%s2 + $0xe0] sm:$0xff]
        %v957 = vld [vmem:[%s2 + $0xe8] sm:$0xff]
        %v958 = vld [vmem:[%s2 + $0xf0] sm:$0xff]
        %v959 = vstv %s433
        %v960 = vadd.s32 %v928, %v959
        %v961 = vadd.s32 %v929, %v959
        %v962 = vadd.s32 %v930, %v959
        %v963 = vadd.s32 %v931, %v959
        %v964 = vadd.s32 %v932, %v959
        %v965 = vadd.s32 %v933, %v959
        %v966 = vadd.s32 %v934, %v959
        %v967 = vadd.s32 %v935, %v959
        %v968 = vadd.s32 %v936, %v959
        %v969 = vadd.s32 %v937, %v959
        %v970 = vadd.s32 %v938, %v959
        %v971 = vadd.s32 %v939, %v959
        %v972 = vadd.s32 %v940, %v959
        %v973 = vadd.s32 %v941, %v959
        %v974 = vadd.s32 %v942, %v959
        %v975 = vadd.s32 %v943, %v959
        %v976 = vadd.s32 %v944, %v959
        %v977 = vadd.s32 %v945, %v959
        %v978 = vadd.s32 %v946, %v959
        %v979 = vadd.s32 %v947, %v959
        %v980 = vadd.s32 %v948, %v959
        %v981 = vadd.s32 %v949, %v959
        %v982 = vadd.s32 %v950, %v959
        %v983 = vadd.s32 %v951, %v959
        %v984 = vadd.s32 %v952, %v959
        %v985 = vadd.s32 %v953, %v959
        %v986 = vadd.s32 %v954, %v959
        %v987 = vadd.s32 %v955, %v959
        %v988 = vadd.s32 %v956, %v959
        %v989 = vadd.s32 %v957, %v959
        %v990 = vadd.s32 %v958, %v959
        %vm991 = vcmp.ge.s32.totalorder %v960, 1
        %vm992 = vcmp.ge.s32.totalorder %v961, 1
        %vm993 = vcmp.ge.s32.totalorder %v962, 1
        %vm994 = vcmp.ge.s32.totalorder %v963, 1
        %vm995 = vcmp.ge.s32.totalorder %v964, 1
        %vm996 = vcmp.ge.s32.totalorder %v965, 1
        %vm997 = vcmp.ge.s32.totalorder %v966, 1
        %vm998 = vcmp.ge.s32.totalorder %v967, 1
        %vm999 = vcmp.ge.s32.totalorder %v968, 1
        %vm1000 = vcmp.ge.s32.totalorder %v969, 1
        %vm1001 = vcmp.ge.s32.totalorder %v970, 1
        %vm1002 = vcmp.ge.s32.totalorder %v971, 1
        %vm1003 = vcmp.ge.s32.totalorder %v972, 1
        %vm1004 = vcmp.ge.s32.totalorder %v973, 1
        %vm1005 = vcmp.ge.s32.totalorder %v974, 1
        %vm1006 = vcmp.ge.s32.totalorder %v975, 1
        %vm1007 = vcmp.ge.s32.totalorder %v976, 1
        %vm1008 = vcmp.ge.s32.totalorder %v977, 1
        %vm1009 = vcmp.ge.s32.totalorder %v978, 1
        %vm1010 = vcmp.ge.s32.totalorder %v979, 1
        %vm1011 = vcmp.ge.s32.totalorder %v980, 1
        %vm1012 = vcmp.ge.s32.totalorder %v981, 1
        %vm1013 = vcmp.ge.s32.totalorder %v982, 1
        %vm1014 = vcmp.ge.s32.totalorder %v983, 1
        %vm1015 = vcmp.ge.s32.totalorder %v984, 1
        %vm1016 = vcmp.ge.s32.totalorder %v985, 1
        %vm1017 = vcmp.ge.s32.totalorder %v986, 1
        %vm1018 = vcmp.ge.s32.totalorder %v987, 1
        %vm1019 = vcmp.ge.s32.totalorder %v988, 1
        %vm1020 = vcmp.ge.s32.totalorder %v989, 1
        %vm1021 = vcmp.ge.s32.totalorder %v990, 1
        %vm1022 = vcmp.lt.s32.totalorder %v960, 21
        %vm1023 = vcmp.lt.s32.totalorder %v961, 21
        %vm1024 = vcmp.lt.s32.totalorder %v962, 21
        %vm1025 = vcmp.lt.s32.totalorder %v963, 21
        %vm1026 = vcmp.lt.s32.totalorder %v964, 21
        %vm1027 = vcmp.lt.s32.totalorder %v965, 21
        %vm1028 = vcmp.lt.s32.totalorder %v966, 21
        %vm1029 = vcmp.lt.s32.totalorder %v967, 21
        %vm1030 = vcmp.lt.s32.totalorder %v968, 21
        %vm1031 = vcmp.lt.s32.totalorder %v969, 21
        %vm1032 = vcmp.lt.s32.totalorder %v970, 21
        %vm1033 = vcmp.lt.s32.totalorder %v971, 21
        %vm1034 = vcmp.lt.s32.totalorder %v972, 21
        %vm1035 = vcmp.lt.s32.totalorder %v973, 21
        %vm1036 = vcmp.lt.s32.totalorder %v974, 21
        %vm1037 = vcmp.lt.s32.totalorder %v975, 21
        %vm1038 = vcmp.lt.s32.totalorder %v976, 21
        %vm1039 = vcmp.lt.s32.totalorder %v977, 21
        %vm1040 = vcmp.lt.s32.totalorder %v978, 21
        %vm1041 = vcmp.lt.s32.totalorder %v979, 21
        %vm1042 = vcmp.lt.s32.totalorder %v980, 21
        %vm1043 = vcmp.lt.s32.totalorder %v981, 21
        %vm1044 = vcmp.lt.s32.totalorder %v982, 21
        %vm1045 = vcmp.lt.s32.totalorder %v983, 21
        %vm1046 = vcmp.lt.s32.totalorder %v984, 21
        %vm1047 = vcmp.lt.s32.totalorder %v985, 21
        %vm1048 = vcmp.lt.s32.totalorder %v986, 21
        %vm1049 = vcmp.lt.s32.totalorder %v987, 21
        %vm1050 = vcmp.lt.s32.totalorder %v988, 21
        %vm1051 = vcmp.lt.s32.totalorder %v989, 21
        %vm1052 = vcmp.lt.s32.totalorder %v990, 21
        %vm1053 = vmand %vm991, %vm1022
        %vm1054 = vmand %vm992, %vm1023
        %vm1055 = vmand %vm993, %vm1024
        %vm1056 = vmand %vm994, %vm1025
        %vm1057 = vmand %vm995, %vm1026
        %vm1058 = vmand %vm996, %vm1027
        %vm1059 = vmand %vm997, %vm1028
        %vm1060 = vmand %vm998, %vm1029
        %vm1061 = vmand %vm999, %vm1030
        %vm1062 = vmand %vm1000, %vm1031
        %vm1063 = vmand %vm1001, %vm1032
        %vm1064 = vmand %vm1002, %vm1033
        %vm1065 = vmand %vm1003, %vm1034
        %vm1066 = vmand %vm1004, %vm1035
        %vm1067 = vmand %vm1005, %vm1036
        %vm1068 = vmand %vm1006, %vm1037
        %vm1069 = vmand %vm1007, %vm1038
        %vm1070 = vmand %vm1008, %vm1039
        %vm1071 = vmand %vm1009, %vm1040
        %vm1072 = vmand %vm1010, %vm1041
        %vm1073 = vmand %vm1011, %vm1042
        %vm1074 = vmand %vm1012, %vm1043
        %vm1075 = vmand %vm1013, %vm1044
        %vm1076 = vmand %vm1014, %vm1045
        %vm1077 = vmand %vm1015, %vm1046
        %vm1078 = vmand %vm1016, %vm1047
        %vm1079 = vmand %vm1017, %vm1048
        %vm1080 = vmand %vm1018, %vm1049
        %vm1081 = vmand %vm1019, %vm1050
        %vm1082 = vmand %vm1020, %vm1051
        %vm1083 = vmand %vm1021, %vm1052
        %v1084 = vsel %vm1053, 1, 0
        %v1085 = vsel %vm1054, 1, 0
        %v1086 = vsel %vm1055, 1, 0
        %v1087 = vsel %vm1056, 1, 0
        %v1088 = vsel %vm1057, 1, 0
        %v1089 = vsel %vm1058, 1, 0
        %v1090 = vsel %vm1059, 1, 0
        %v1091 = vsel %vm1060, 1, 0
        %v1092 = vsel %vm1061, 1, 0
        %v1093 = vsel %vm1062, 1, 0
        %v1094 = vsel %vm1063, 1, 0
        %v1095 = vsel %vm1064, 1, 0
        %v1096 = vsel %vm1065, 1, 0
        %v1097 = vsel %vm1066, 1, 0
        %v1098 = vsel %vm1067, 1, 0
        %v1099 = vsel %vm1068, 1, 0
        %v1100 = vsel %vm1069, 1, 0
        %v1101 = vsel %vm1070, 1, 0
        %v1102 = vsel %vm1071, 1, 0
        %v1103 = vsel %vm1072, 1, 0
        %v1104 = vsel %vm1073, 1, 0
        %v1105 = vsel %vm1074, 1, 0
        %v1106 = vsel %vm1075, 1, 0
        %v1107 = vsel %vm1076, 1, 0
        %v1108 = vsel %vm1077, 1, 0
        %v1109 = vsel %vm1078, 1, 0
        %v1110 = vsel %vm1079, 1, 0
        %v1111 = vsel %vm1080, 1, 0
        %v1112 = vsel %vm1081, 1, 0
        %v1113 = vsel %vm1082, 1, 0
        %v1114 = vsel %vm1083, 1, 0
        %1115 = vset.pattern.permute.xlu0 0
        %1116 = vperm.xlu0 %1115, %v1084
        %v1117 = vpop.permute.xlu0 %1116
        %1118 = vset.pattern.permute.xlu0 0
        %1119 = vperm.xlu0 %1118, %v1085
        %v1120 = vpop.permute.xlu0 %1119
        %1121 = vset.pattern.permute.xlu0 0
        %1122 = vperm.xlu0 %1121, %v1086
        %v1123 = vpop.permute.xlu0 %1122
        %1124 = vset.pattern.permute.xlu0 0
        %1125 = vperm.xlu0 %1124, %v1087
        %v1126 = vpop.permute.xlu0 %1125
        %1127 = vset.pattern.permute.xlu0 0
        %1128 = vperm.xlu0 %1127, %v1088
        %v1129 = vpop.permute.xlu0 %1128
        %1130 = vset.pattern.permute.xlu0 0
        %1131 = vperm.xlu0 %1130, %v1089
        %v1132 = vpop.permute.xlu0 %1131
        %1133 = vset.pattern.permute.xlu0 0
        %1134 = vperm.xlu0 %1133, %v1090
        %v1135 = vpop.permute.xlu0 %1134
        %1136 = vset.pattern.permute.xlu0 0
        %1137 = vperm.xlu0 %1136, %v1091
        %v1138 = vpop.permute.xlu0 %1137
        %1139 = vset.pattern.permute.xlu0 0
        %1140 = vperm.xlu0 %1139, %v1092
        %v1141 = vpop.permute.xlu0 %1140
        %1142 = vset.pattern.permute.xlu0 0
        %1143 = vperm.xlu0 %1142, %v1093
        %v1144 = vpop.permute.xlu0 %1143
        %1145 = vset.pattern.permute.xlu0 0
        %1146 = vperm.xlu0 %1145, %v1094
        %v1147 = vpop.permute.xlu0 %1146
        %1148 = vset.pattern.permute.xlu0 0
        %1149 = vperm.xlu0 %1148, %v1095
        %v1150 = vpop.permute.xlu0 %1149
        %1151 = vset.pattern.permute.xlu0 0
        %1152 = vperm.xlu0 %1151, %v1096
        %v1153 = vpop.permute.xlu0 %1152
        %1154 = vset.pattern.permute.xlu0 0
        %1155 = vperm.xlu0 %1154, %v1097
        %v1156 = vpop.permute.xlu0 %1155
        %1157 = vset.pattern.permute.xlu0 0
        %1158 = vperm.xlu0 %1157, %v1098
        %v1159 = vpop.permute.xlu0 %1158
        %1160 = vset.pattern.permute.xlu0 0
        %1161 = vperm.xlu0 %1160, %v1099
        %v1162 = vpop.permute.xlu0 %1161
        %1163 = vset.pattern.permute.xlu0 0
        %1164 = vperm.xlu0 %1163, %v1100
        %v1165 = vpop.permute.xlu0 %1164
        %1166 = vset.pattern.permute.xlu0 0
        %1167 = vperm.xlu0 %1166, %v1101
        %v1168 = vpop.permute.xlu0 %1167
        %1169 = vset.pattern.permute.xlu0 0
        %1170 = vperm.xlu0 %1169, %v1102
        %v1171 = vpop.permute.xlu0 %1170
        %1172 = vset.pattern.permute.xlu0 0
        %1173 = vperm.xlu0 %1172, %v1103
        %v1174 = vpop.permute.xlu0 %1173
        %1175 = vset.pattern.permute.xlu0 0
        %1176 = vperm.xlu0 %1175, %v1104
        %v1177 = vpop.permute.xlu0 %1176
        %1178 = vset.pattern.permute.xlu0 0
        %1179 = vperm.xlu0 %1178, %v1105
        %v1180 = vpop.permute.xlu0 %1179
        %1181 = vset.pattern.permute.xlu0 0
        %1182 = vperm.xlu0 %1181, %v1106
        %v1183 = vpop.permute.xlu0 %1182
        %1184 = vset.pattern.permute.xlu0 0
        %1185 = vperm.xlu0 %1184, %v1107
        %v1186 = vpop.permute.xlu0 %1185
        %1187 = vset.pattern.permute.xlu0 0
        %1188 = vperm.xlu0 %1187, %v1108
        %v1189 = vpop.permute.xlu0 %1188
        %1190 = vset.pattern.permute.xlu0 0
        %1191 = vperm.xlu0 %1190, %v1109
        %v1192 = vpop.permute.xlu0 %1191
        %1193 = vset.pattern.permute.xlu0 0
        %1194 = vperm.xlu0 %1193, %v1110
        %v1195 = vpop.permute.xlu0 %1194
        %1196 = vset.pattern.permute.xlu0 0
        %1197 = vperm.xlu0 %1196, %v1111
        %v1198 = vpop.permute.xlu0 %1197
        %1199 = vset.pattern.permute.xlu0 0
        %1200 = vperm.xlu0 %1199, %v1112
        %v1201 = vpop.permute.xlu0 %1200
        %1202 = vset.pattern.permute.xlu0 0
        %1203 = vperm.xlu0 %1202, %v1113
        %v1204 = vpop.permute.xlu0 %1203
        %1205 = vset.pattern.permute.xlu0 0
        %1206 = vperm.xlu0 %1205, %v1114
        %v1207 = vpop.permute.xlu0 %1206
        %vm1208 = vcmp.eq.s32.totalorder %v1117, 1
        %vm1209 = vcmp.eq.s32.totalorder %v1120, 1
        %vm1210 = vcmp.eq.s32.totalorder %v1123, 1
        %vm1211 = vcmp.eq.s32.totalorder %v1126, 1
        %vm1212 = vcmp.eq.s32.totalorder %v1129, 1
        %vm1213 = vcmp.eq.s32.totalorder %v1132, 1
        %vm1214 = vcmp.eq.s32.totalorder %v1135, 1
        %vm1215 = vcmp.eq.s32.totalorder %v1138, 1
        %vm1216 = vcmp.eq.s32.totalorder %v1141, 1
        %vm1217 = vcmp.eq.s32.totalorder %v1144, 1
        %vm1218 = vcmp.eq.s32.totalorder %v1147, 1
        %vm1219 = vcmp.eq.s32.totalorder %v1150, 1
        %vm1220 = vcmp.eq.s32.totalorder %v1153, 1
        %vm1221 = vcmp.eq.s32.totalorder %v1156, 1
        %vm1222 = vcmp.eq.s32.totalorder %v1159, 1
        %vm1223 = vcmp.eq.s32.totalorder %v1162, 1
        %vm1224 = vcmp.eq.s32.totalorder %v1165, 1
        %vm1225 = vcmp.eq.s32.totalorder %v1168, 1
        %vm1226 = vcmp.eq.s32.totalorder %v1171, 1
        %vm1227 = vcmp.eq.s32.totalorder %v1174, 1
        %vm1228 = vcmp.eq.s32.totalorder %v1177, 1
        %vm1229 = vcmp.eq.s32.totalorder %v1180, 1
        %vm1230 = vcmp.eq.s32.totalorder %v1183, 1
        %vm1231 = vcmp.eq.s32.totalorder %v1186, 1
        %vm1232 = vcmp.eq.s32.totalorder %v1189, 1
        %vm1233 = vcmp.eq.s32.totalorder %v1192, 1
        %vm1234 = vcmp.eq.s32.totalorder %v1195, 1
        %vm1235 = vcmp.eq.s32.totalorder %v1198, 1
        %vm1236 = vcmp.eq.s32.totalorder %v1201, 1
        %vm1237 = vcmp.eq.s32.totalorder %v1204, 1
        %vm1238 = vcmp.eq.s32.totalorder %v1207, 1
        %v1239 = vsel %vm1208, %v897, 0.0
        %v1240 = vsel %vm1209, %v898, 0.0
        %v1241 = vsel %vm1210, %v899, 0.0
        %v1242 = vsel %vm1211, %v900, 0.0
        %v1243 = vsel %vm1212, %v901, 0.0
        %v1244 = vsel %vm1213, %v902, 0.0
        %v1245 = vsel %vm1214, %v903, 0.0
        %v1246 = vsel %vm1215, %v904, 0.0
        %v1247 = vsel %vm1216, %v905, 0.0
        %v1248 = vsel %vm1217, %v906, 0.0
        %v1249 = vsel %vm1218, %v907, 0.0
        %v1250 = vsel %vm1219, %v908, 0.0
        %v1251 = vsel %vm1220, %v909, 0.0
        %v1252 = vsel %vm1221, %v910, 0.0
        %v1253 = vsel %vm1222, %v911, 0.0
        %v1254 = vsel %vm1223, %v912, 0.0
        %v1255 = vsel %vm1224, %v913, 0.0
        %v1256 = vsel %vm1225, %v914, 0.0
        %v1257 = vsel %vm1226, %v915, 0.0
        %v1258 = vsel %vm1227, %v916, 0.0
        %v1259 = vsel %vm1228, %v917, 0.0
        %v1260 = vsel %vm1229, %v918, 0.0
        %v1261 = vsel %vm1230, %v919, 0.0
        %v1262 = vsel %vm1231, %v920, 0.0
        %v1263 = vsel %vm1232, %v921, 0.0
        %v1264 = vsel %vm1233, %v922, 0.0
        %v1265 = vsel %vm1234, %v923, 0.0
        %v1266 = vsel %vm1235, %v924, 0.0
        %v1267 = vsel %vm1236, %v925, 0.0
        %v1268 = vsel %vm1237, %v926, 0.0
        %v1269 = vsel %vm1238, %v927, 0.0
        %v1270 = vld [vmem:[%s5] sm:$0x7]
        %v1271 = vld [vmem:[%s5 + $0x4] sm:$0x7]
        %v1272 = vld [vmem:[%s5 + $0x8] sm:$0x7]
        %v1273 = vlaneseq
        %v1274 = vshrl.u32 %v1273, 7
        %v1275 = vsub.s32 0, %v1274
        %v1276 = vrot.slane %v1270, %v1275
        %v1277 = vmul.f32 %v1239, %v1276
        %v1278 = vmul.f32 %v1240, %v1276
        %v1279 = vmul.f32 %v1241, %v1276
        %v1280 = vmul.f32 %v1242, %v1276
        %v1281 = vmul.f32 %v1243, %v1276
        %v1282 = vmul.f32 %v1244, %v1276
        %v1283 = vmul.f32 %v1245, %v1276
        %v1284 = vmul.f32 %v1246, %v1276
        %v1285 = vmul.f32 %v1247, %v1276
        %v1286 = vmul.f32 %v1248, %v1276
        %v1287 = vmul.f32 %v1249, %v1276
        %v1288 = vmul.f32 %v1250, %v1276
        %v1289 = vmul.f32 %v1251, %v1276
        %v1290 = vmul.f32 %v1252, %v1276
        %v1291 = vmul.f32 %v1253, %v1276
        %v1292 = vmul.f32 %v1254, %v1276
        %v1293 = vmul.f32 %v1255, %v1276
        %v1294 = vmul.f32 %v1256, %v1276
        %v1295 = vmul.f32 %v1257, %v1276
        %v1296 = vmul.f32 %v1258, %v1276
        %v1297 = vmul.f32 %v1259, %v1276
        %v1298 = vmul.f32 %v1260, %v1276
        %v1299 = vmul.f32 %v1261, %v1276
        %v1300 = vmul.f32 %v1262, %v1276
        %v1301 = vadd.f32 %v1277, 0.0
        %v1302 = vadd.f32 %v1278, 0.0
        %v1303 = vadd.f32 %v1279, 0.0
        %v1304 = vadd.f32 %v1280, 0.0
        %v1305 = vadd.f32 %v1281, 0.0
        %v1306 = vadd.f32 %v1282, 0.0
        %v1307 = vadd.f32 %v1283, 0.0
        %v1308 = vadd.f32 %v1284, 0.0
        %v1309 = vadd.f32 %v1285, 0.0
        %v1310 = vadd.f32 %v1286, 0.0
        %v1311 = vadd.f32 %v1287, 0.0
        %v1312 = vadd.f32 %v1288, 0.0
        %v1313 = vadd.f32 %v1289, 0.0
        %v1314 = vadd.f32 %v1290, 0.0
        %v1315 = vadd.f32 %v1291, 0.0
        %v1316 = vadd.f32 %v1292, 0.0
        %v1317 = vadd.f32 %v1293, 0.0
        %v1318 = vadd.f32 %v1294, 0.0
        %v1319 = vadd.f32 %v1295, 0.0
        %v1320 = vadd.f32 %v1296, 0.0
        %v1321 = vadd.f32 %v1297, 0.0
        %v1322 = vadd.f32 %v1298, 0.0
        %v1323 = vadd.f32 %v1299, 0.0
        %v1324 = vadd.f32 %v1300, 0.0
        %v1325 = vlaneseq
        %v1326 = vshrl.u32 %v1325, 7
        %v1327 = vsub.s32 1, %v1326
        %v1328 = vrot.slane %v1270, %v1327
        %v1329 = vmul.f32 %v1239, %v1328
        %v1330 = vmul.f32 %v1240, %v1328
        %v1331 = vmul.f32 %v1241, %v1328
        %v1332 = vmul.f32 %v1242, %v1328
        %v1333 = vmul.f32 %v1243, %v1328
        %v1334 = vmul.f32 %v1244, %v1328
        %v1335 = vmul.f32 %v1245, %v1328
        %v1336 = vmul.f32 %v1246, %v1328
        %v1337 = vmul.f32 %v1247, %v1328
        %v1338 = vmul.f32 %v1248, %v1328
        %v1339 = vmul.f32 %v1249, %v1328
        %v1340 = vmul.f32 %v1250, %v1328
        %v1341 = vmul.f32 %v1251, %v1328
        %v1342 = vmul.f32 %v1252, %v1328
        %v1343 = vmul.f32 %v1253, %v1328
        %v1344 = vmul.f32 %v1254, %v1328
        %v1345 = vmul.f32 %v1255, %v1328
        %v1346 = vmul.f32 %v1256, %v1328
        %v1347 = vmul.f32 %v1257, %v1328
        %v1348 = vmul.f32 %v1258, %v1328
        %v1349 = vmul.f32 %v1259, %v1328
        %v1350 = vmul.f32 %v1260, %v1328
        %v1351 = vmul.f32 %v1261, %v1328
        %v1352 = vmul.f32 %v1262, %v1328
        %v1353 = vmul.f32 %v1263, %v1328
        %vm1379 = vcmask 1046528
        %v1380 = vrot.slane %v1329, 1
        %v1381 = vrot.slane %v1330, 1
        %v1382 = vsel %vm1379, %v1380, %v1381
        %v1383 = vrot.slane %v1331, 1
        %v1384 = vsel %vm1379, %v1381, %v1383
        %v1385 = vrot.slane %v1332, 1
        %v1386 = vsel %vm1379, %v1383, %v1385
        %v1387 = vrot.slane %v1333, 1
        %v1388 = vsel %vm1379, %v1385, %v1387
        %v1389 = vrot.slane %v1334, 1
        %v1390 = vsel %vm1379, %v1387, %v1389
        %v1391 = vrot.slane %v1335, 1
        %v1392 = vsel %vm1379, %v1389, %v1391
        %v1393 = vrot.slane %v1336, 1
        %v1394 = vsel %vm1379, %v1391, %v1393
        %v1395 = vrot.slane %v1337, 1
        %v1396 = vsel %vm1379, %v1393, %v1395
        %v1397 = vrot.slane %v1338, 1
        %v1398 = vsel %vm1379, %v1395, %v1397
        %v1399 = vrot.slane %v1339, 1
        %v1400 = vsel %vm1379, %v1397, %v1399
        %v1401 = vrot.slane %v1340, 1
        %v1402 = vsel %vm1379, %v1399, %v1401
        %v1403 = vrot.slane %v1341, 1
        %v1404 = vsel %vm1379, %v1401, %v1403
        %v1405 = vrot.slane %v1342, 1
        %v1406 = vsel %vm1379, %v1403, %v1405
        %v1407 = vrot.slane %v1343, 1
        %v1408 = vsel %vm1379, %v1405, %v1407
        %v1409 = vrot.slane %v1344, 1
        %v1410 = vsel %vm1379, %v1407, %v1409
        %v1411 = vrot.slane %v1345, 1
        %v1412 = vsel %vm1379, %v1409, %v1411
        %v1413 = vrot.slane %v1346, 1
        %v1414 = vsel %vm1379, %v1411, %v1413
        %v1415 = vrot.slane %v1347, 1
        %v1416 = vsel %vm1379, %v1413, %v1415
        %v1417 = vrot.slane %v1348, 1
        %v1418 = vsel %vm1379, %v1415, %v1417
        %v1419 = vrot.slane %v1349, 1
        %v1420 = vsel %vm1379, %v1417, %v1419
        %v1421 = vrot.slane %v1350, 1
        %v1422 = vsel %vm1379, %v1419, %v1421
        %v1423 = vrot.slane %v1351, 1
        %v1424 = vsel %vm1379, %v1421, %v1423
        %v1425 = vrot.slane %v1352, 1
        %v1426 = vsel %vm1379, %v1423, %v1425
        %v1427 = vrot.slane %v1353, 1
        %v1428 = vsel %vm1379, %v1425, %v1427
        %v1453 = vadd.f32 %v1301, %v1382
        %v1454 = vadd.f32 %v1302, %v1384
        %v1455 = vadd.f32 %v1303, %v1386
        %v1456 = vadd.f32 %v1304, %v1388
        %v1457 = vadd.f32 %v1305, %v1390
        %v1458 = vadd.f32 %v1306, %v1392
        %v1459 = vadd.f32 %v1307, %v1394
        %v1460 = vadd.f32 %v1308, %v1396
        %v1461 = vadd.f32 %v1309, %v1398
        %v1462 = vadd.f32 %v1310, %v1400
        %v1463 = vadd.f32 %v1311, %v1402
        %v1464 = vadd.f32 %v1312, %v1404
        %v1465 = vadd.f32 %v1313, %v1406
        %v1466 = vadd.f32 %v1314, %v1408
        %v1467 = vadd.f32 %v1315, %v1410
        %v1468 = vadd.f32 %v1316, %v1412
        %v1469 = vadd.f32 %v1317, %v1414
        %v1470 = vadd.f32 %v1318, %v1416
        %v1471 = vadd.f32 %v1319, %v1418
        %v1472 = vadd.f32 %v1320, %v1420
        %v1473 = vadd.f32 %v1321, %v1422
        %v1474 = vadd.f32 %v1322, %v1424
        %v1475 = vadd.f32 %v1323, %v1426
        %v1476 = vadd.f32 %v1324, %v1428
        %v1477 = vlaneseq
        %v1478 = vshrl.u32 %v1477, 7
        %v1479 = vsub.s32 2, %v1478
        %v1480 = vrot.slane %v1270, %v1479
        %v1481 = vmul.f32 %v1239, %v1480
        %v1482 = vmul.f32 %v1240, %v1480
        %v1483 = vmul.f32 %v1241, %v1480
        %v1484 = vmul.f32 %v1242, %v1480
        %v1485 = vmul.f32 %v1243, %v1480
        %v1486 = vmul.f32 %v1244, %v1480
        %v1487 = vmul.f32 %v1245, %v1480
        %v1488 = vmul.f32 %v1246, %v1480
        %v1489 = vmul.f32 %v1247, %v1480
        %v1490 = vmul.f32 %v1248, %v1480
        %v1491 = vmul.f32 %v1249, %v1480
        %v1492 = vmul.f32 %v1250, %v1480
        %v1493 = vmul.f32 %v1251, %v1480
        %v1494 = vmul.f32 %v1252, %v1480
        %v1495 = vmul.f32 %v1253, %v1480
        %v1496 = vmul.f32 %v1254, %v1480
        %v1497 = vmul.f32 %v1255, %v1480
        %v1498 = vmul.f32 %v1256, %v1480
        %v1499 = vmul.f32 %v1257, %v1480
        %v1500 = vmul.f32 %v1258, %v1480
        %v1501 = vmul.f32 %v1259, %v1480
        %v1502 = vmul.f32 %v1260, %v1480
        %v1503 = vmul.f32 %v1261, %v1480
        %v1504 = vmul.f32 %v1262, %v1480
        %v1505 = vmul.f32 %v1263, %v1480
        %vm1531 = vcmask 1045504
        %v1532 = vrot.slane %v1481, 2
        %v1533 = vrot.slane %v1482, 2
        %v1534 = vsel %vm1531, %v1532, %v1533
        %v1535 = vrot.slane %v1483, 2
        %v1536 = vsel %vm1531, %v1533, %v1535
        %v1537 = vrot.slane %v1484, 2
        %v1538 = vsel %vm1531, %v1535, %v1537
        %v1539 = vrot.slane %v1485, 2
        %v1540 = vsel %vm1531, %v1537, %v1539
        %v1541 = vrot.slane %v1486, 2
        %v1542 = vsel %vm1531, %v1539, %v1541
        %v1543 = vrot.slane %v1487, 2
        %v1544 = vsel %vm1531, %v1541, %v1543
        %v1545 = vrot.slane %v1488, 2
        %v1546 = vsel %vm1531, %v1543, %v1545
        %v1547 = vrot.slane %v1489, 2
        %v1548 = vsel %vm1531, %v1545, %v1547
        %v1549 = vrot.slane %v1490, 2
        %v1550 = vsel %vm1531, %v1547, %v1549
        %v1551 = vrot.slane %v1491, 2
        %v1552 = vsel %vm1531, %v1549, %v1551
        %v1553 = vrot.slane %v1492, 2
        %v1554 = vsel %vm1531, %v1551, %v1553
        %v1555 = vrot.slane %v1493, 2
        %v1556 = vsel %vm1531, %v1553, %v1555
        %v1557 = vrot.slane %v1494, 2
        %v1558 = vsel %vm1531, %v1555, %v1557
        %v1559 = vrot.slane %v1495, 2
        %v1560 = vsel %vm1531, %v1557, %v1559
        %v1561 = vrot.slane %v1496, 2
        %v1562 = vsel %vm1531, %v1559, %v1561
        %v1563 = vrot.slane %v1497, 2
        %v1564 = vsel %vm1531, %v1561, %v1563
        %v1565 = vrot.slane %v1498, 2
        %v1566 = vsel %vm1531, %v1563, %v1565
        %v1567 = vrot.slane %v1499, 2
        %v1568 = vsel %vm1531, %v1565, %v1567
        %v1569 = vrot.slane %v1500, 2
        %v1570 = vsel %vm1531, %v1567, %v1569
        %v1571 = vrot.slane %v1501, 2
        %v1572 = vsel %vm1531, %v1569, %v1571
        %v1573 = vrot.slane %v1502, 2
        %v1574 = vsel %vm1531, %v1571, %v1573
        %v1575 = vrot.slane %v1503, 2
        %v1576 = vsel %vm1531, %v1573, %v1575
        %v1577 = vrot.slane %v1504, 2
        %v1578 = vsel %vm1531, %v1575, %v1577
        %v1579 = vrot.slane %v1505, 2
        %v1580 = vsel %vm1531, %v1577, %v1579
        %v1605 = vadd.f32 %v1453, %v1534
        %v1606 = vadd.f32 %v1454, %v1536
        %v1607 = vadd.f32 %v1455, %v1538
        %v1608 = vadd.f32 %v1456, %v1540
        %v1609 = vadd.f32 %v1457, %v1542
        %v1610 = vadd.f32 %v1458, %v1544
        %v1611 = vadd.f32 %v1459, %v1546
        %v1612 = vadd.f32 %v1460, %v1548
        %v1613 = vadd.f32 %v1461, %v1550
        %v1614 = vadd.f32 %v1462, %v1552
        %v1615 = vadd.f32 %v1463, %v1554
        %v1616 = vadd.f32 %v1464, %v1556
        %v1617 = vadd.f32 %v1465, %v1558
        %v1618 = vadd.f32 %v1466, %v1560
        %v1619 = vadd.f32 %v1467, %v1562
        %v1620 = vadd.f32 %v1468, %v1564
        %v1621 = vadd.f32 %v1469, %v1566
        %v1622 = vadd.f32 %v1470, %v1568
        %v1623 = vadd.f32 %v1471, %v1570
        %v1624 = vadd.f32 %v1472, %v1572
        %v1625 = vadd.f32 %v1473, %v1574
        %v1626 = vadd.f32 %v1474, %v1576
        %v1627 = vadd.f32 %v1475, %v1578
        %v1628 = vadd.f32 %v1476, %v1580
        %v1629 = vlaneseq
        %v1630 = vshrl.u32 %v1629, 7
        %v1631 = vsub.s32 0, %v1630
        %v1632 = vrot.slane %v1271, %v1631
        %v1633 = vmul.f32 %v1242, %v1632
        %v1634 = vmul.f32 %v1243, %v1632
        %v1635 = vmul.f32 %v1244, %v1632
        %v1636 = vmul.f32 %v1245, %v1632
        %v1637 = vmul.f32 %v1246, %v1632
        %v1638 = vmul.f32 %v1247, %v1632
        %v1639 = vmul.f32 %v1248, %v1632
        %v1640 = vmul.f32 %v1249, %v1632
        %v1641 = vmul.f32 %v1250, %v1632
        %v1642 = vmul.f32 %v1251, %v1632
        %v1643 = vmul.f32 %v1252, %v1632
        %v1644 = vmul.f32 %v1253, %v1632
        %v1645 = vmul.f32 %v1254, %v1632
        %v1646 = vmul.f32 %v1255, %v1632
        %v1647 = vmul.f32 %v1256, %v1632
        %v1648 = vmul.f32 %v1257, %v1632
        %v1649 = vmul.f32 %v1258, %v1632
        %v1650 = vmul.f32 %v1259, %v1632
        %v1651 = vmul.f32 %v1260, %v1632
        %v1652 = vmul.f32 %v1261, %v1632
        %v1653 = vmul.f32 %v1262, %v1632
        %v1654 = vmul.f32 %v1263, %v1632
        %v1655 = vmul.f32 %v1264, %v1632
        %v1656 = vmul.f32 %v1265, %v1632
        %v1657 = vadd.f32 %v1605, %v1633
        %v1658 = vadd.f32 %v1606, %v1634
        %v1659 = vadd.f32 %v1607, %v1635
        %v1660 = vadd.f32 %v1608, %v1636
        %v1661 = vadd.f32 %v1609, %v1637
        %v1662 = vadd.f32 %v1610, %v1638
        %v1663 = vadd.f32 %v1611, %v1639
        %v1664 = vadd.f32 %v1612, %v1640
        %v1665 = vadd.f32 %v1613, %v1641
        %v1666 = vadd.f32 %v1614, %v1642
        %v1667 = vadd.f32 %v1615, %v1643
        %v1668 = vadd.f32 %v1616, %v1644
        %v1669 = vadd.f32 %v1617, %v1645
        %v1670 = vadd.f32 %v1618, %v1646
        %v1671 = vadd.f32 %v1619, %v1647
        %v1672 = vadd.f32 %v1620, %v1648
        %v1673 = vadd.f32 %v1621, %v1649
        %v1674 = vadd.f32 %v1622, %v1650
        %v1675 = vadd.f32 %v1623, %v1651
        %v1676 = vadd.f32 %v1624, %v1652
        %v1677 = vadd.f32 %v1625, %v1653
        %v1678 = vadd.f32 %v1626, %v1654
        %v1679 = vadd.f32 %v1627, %v1655
        %v1680 = vadd.f32 %v1628, %v1656
        %v1681 = vlaneseq
        %v1682 = vshrl.u32 %v1681, 7
        %v1683 = vsub.s32 1, %v1682
        %v1684 = vrot.slane %v1271, %v1683
        %v1685 = vmul.f32 %v1242, %v1684
        %v1686 = vmul.f32 %v1243, %v1684
        %v1687 = vmul.f32 %v1244, %v1684
        %v1688 = vmul.f32 %v1245, %v1684
        %v1689 = vmul.f32 %v1246, %v1684
        %v1690 = vmul.f32 %v1247, %v1684
        %v1691 = vmul.f32 %v1248, %v1684
        %v1692 = vmul.f32 %v1249, %v1684
        %v1693 = vmul.f32 %v1250, %v1684
        %v1694 = vmul.f32 %v1251, %v1684
        %v1695 = vmul.f32 %v1252, %v1684
        %v1696 = vmul.f32 %v1253, %v1684
        %v1697 = vmul.f32 %v1254, %v1684
        %v1698 = vmul.f32 %v1255, %v1684
        %v1699 = vmul.f32 %v1256, %v1684
        %v1700 = vmul.f32 %v1257, %v1684
        %v1701 = vmul.f32 %v1258, %v1684
        %v1702 = vmul.f32 %v1259, %v1684
        %v1703 = vmul.f32 %v1260, %v1684
        %v1704 = vmul.f32 %v1261, %v1684
        %v1705 = vmul.f32 %v1262, %v1684
        %v1706 = vmul.f32 %v1263, %v1684
        %v1707 = vmul.f32 %v1264, %v1684
        %v1708 = vmul.f32 %v1265, %v1684
        %v1709 = vmul.f32 %v1266, %v1684
        %v1735 = vrot.slane %v1685, 1
        %v1736 = vrot.slane %v1686, 1
        %v1737 = vsel %vm1379, %v1735, %v1736
        %v1738 = vrot.slane %v1687, 1
        %v1739 = vsel %vm1379, %v1736, %v1738
        %v1740 = vrot.slane %v1688, 1
        %v1741 = vsel %vm1379, %v1738, %v1740
        %v1742 = vrot.slane %v1689, 1
        %v1743 = vsel %vm1379, %v1740, %v1742
        %v1744 = vrot.slane %v1690, 1
        %v1745 = vsel %vm1379, %v1742, %v1744
        %v1746 = vrot.slane %v1691, 1
        %v1747 = vsel %vm1379, %v1744, %v1746
        %v1748 = vrot.slane %v1692, 1
        %v1749 = vsel %vm1379, %v1746, %v1748
        %v1750 = vrot.slane %v1693, 1
        %v1751 = vsel %vm1379, %v1748, %v1750
        %v1752 = vrot.slane %v1694, 1
        %v1753 = vsel %vm1379, %v1750, %v1752
        %v1754 = vrot.slane %v1695, 1
        %v1755 = vsel %vm1379, %v1752, %v1754
        %v1756 = vrot.slane %v1696, 1
        %v1757 = vsel %vm1379, %v1754, %v1756
        %v1758 = vrot.slane %v1697, 1
        %v1759 = vsel %vm1379, %v1756, %v1758
        %v1760 = vrot.slane %v1698, 1
        %v1761 = vsel %vm1379, %v1758, %v1760
        %v1762 = vrot.slane %v1699, 1
        %v1763 = vsel %vm1379, %v1760, %v1762
        %v1764 = vrot.slane %v1700, 1
        %v1765 = vsel %vm1379, %v1762, %v1764
        %v1766 = vrot.slane %v1701, 1
        %v1767 = vsel %vm1379, %v1764, %v1766
        %v1768 = vrot.slane %v1702, 1
        %v1769 = vsel %vm1379, %v1766, %v1768
        %v1770 = vrot.slane %v1703, 1
        %v1771 = vsel %vm1379, %v1768, %v1770
        %v1772 = vrot.slane %v1704, 1
        %v1773 = vsel %vm1379, %v1770, %v1772
        %v1774 = vrot.slane %v1705, 1
        %v1775 = vsel %vm1379, %v1772, %v1774
        %v1776 = vrot.slane %v1706, 1
        %v1777 = vsel %vm1379, %v1774, %v1776
        %v1778 = vrot.slane %v1707, 1
        %v1779 = vsel %vm1379, %v1776, %v1778
        %v1780 = vrot.slane %v1708, 1
        %v1781 = vsel %vm1379, %v1778, %v1780
        %v1782 = vrot.slane %v1709, 1
        %v1783 = vsel %vm1379, %v1780, %v1782
        %v1808 = vadd.f32 %v1657, %v1737
        %v1809 = vadd.f32 %v1658, %v1739
        %v1810 = vadd.f32 %v1659, %v1741
        %v1811 = vadd.f32 %v1660, %v1743
        %v1812 = vadd.f32 %v1661, %v1745
        %v1813 = vadd.f32 %v1662, %v1747
        %v1814 = vadd.f32 %v1663, %v1749
        %v1815 = vadd.f32 %v1664, %v1751
        %v1816 = vadd.f32 %v1665, %v1753
        %v1817 = vadd.f32 %v1666, %v1755
        %v1818 = vadd.f32 %v1667, %v1757
        %v1819 = vadd.f32 %v1668, %v1759
        %v1820 = vadd.f32 %v1669, %v1761
        %v1821 = vadd.f32 %v1670, %v1763
        %v1822 = vadd.f32 %v1671, %v1765
        %v1823 = vadd.f32 %v1672, %v1767
        %v1824 = vadd.f32 %v1673, %v1769
        %v1825 = vadd.f32 %v1674, %v1771
        %v1826 = vadd.f32 %v1675, %v1773
        %v1827 = vadd.f32 %v1676, %v1775
        %v1828 = vadd.f32 %v1677, %v1777
        %v1829 = vadd.f32 %v1678, %v1779
        %v1830 = vadd.f32 %v1679, %v1781
        %v1831 = vadd.f32 %v1680, %v1783
        %v1832 = vlaneseq
        %v1833 = vshrl.u32 %v1832, 7
        %v1834 = vsub.s32 2, %v1833
        %v1835 = vrot.slane %v1271, %v1834
        %v1836 = vmul.f32 %v1242, %v1835
        %v1837 = vmul.f32 %v1243, %v1835
        %v1838 = vmul.f32 %v1244, %v1835
        %v1839 = vmul.f32 %v1245, %v1835
        %v1840 = vmul.f32 %v1246, %v1835
        %v1841 = vmul.f32 %v1247, %v1835
        %v1842 = vmul.f32 %v1248, %v1835
        %v1843 = vmul.f32 %v1249, %v1835
        %v1844 = vmul.f32 %v1250, %v1835
        %v1845 = vmul.f32 %v1251, %v1835
        %v1846 = vmul.f32 %v1252, %v1835
        %v1847 = vmul.f32 %v1253, %v1835
        %v1848 = vmul.f32 %v1254, %v1835
        %v1849 = vmul.f32 %v1255, %v1835
        %v1850 = vmul.f32 %v1256, %v1835
        %v1851 = vmul.f32 %v1257, %v1835
        %v1852 = vmul.f32 %v1258, %v1835
        %v1853 = vmul.f32 %v1259, %v1835
        %v1854 = vmul.f32 %v1260, %v1835
        %v1855 = vmul.f32 %v1261, %v1835
        %v1856 = vmul.f32 %v1262, %v1835
        %v1857 = vmul.f32 %v1263, %v1835
        %v1858 = vmul.f32 %v1264, %v1835
        %v1859 = vmul.f32 %v1265, %v1835
        %v1860 = vmul.f32 %v1266, %v1835
        %v1886 = vrot.slane %v1836, 2
        %v1887 = vrot.slane %v1837, 2
        %v1888 = vsel %vm1531, %v1886, %v1887
        %v1889 = vrot.slane %v1838, 2
        %v1890 = vsel %vm1531, %v1887, %v1889
        %v1891 = vrot.slane %v1839, 2
        %v1892 = vsel %vm1531, %v1889, %v1891
        %v1893 = vrot.slane %v1840, 2
        %v1894 = vsel %vm1531, %v1891, %v1893
        %v1895 = vrot.slane %v1841, 2
        %v1896 = vsel %vm1531, %v1893, %v1895
        %v1897 = vrot.slane %v1842, 2
        %v1898 = vsel %vm1531, %v1895, %v1897
        %v1899 = vrot.slane %v1843, 2
        %v1900 = vsel %vm1531, %v1897, %v1899
        %v1901 = vrot.slane %v1844, 2
        %v1902 = vsel %vm1531, %v1899, %v1901
        %v1903 = vrot.slane %v1845, 2
        %v1904 = vsel %vm1531, %v1901, %v1903
        %v1905 = vrot.slane %v1846, 2
        %v1906 = vsel %vm1531, %v1903, %v1905
        %v1907 = vrot.slane %v1847, 2
        %v1908 = vsel %vm1531, %v1905, %v1907
        %v1909 = vrot.slane %v1848, 2
        %v1910 = vsel %vm1531, %v1907, %v1909
        %v1911 = vrot.slane %v1849, 2
        %v1912 = vsel %vm1531, %v1909, %v1911
        %v1913 = vrot.slane %v1850, 2
        %v1914 = vsel %vm1531, %v1911, %v1913
        %v1915 = vrot.slane %v1851, 2
        %v1916 = vsel %vm1531, %v1913, %v1915
        %v1917 = vrot.slane %v1852, 2
        %v1918 = vsel %vm1531, %v1915, %v1917
        %v1919 = vrot.slane %v1853, 2
        %v1920 = vsel %vm1531, %v1917, %v1919
        %v1921 = vrot.slane %v1854, 2
        %v1922 = vsel %vm1531, %v1919, %v1921
        %v1923 = vrot.slane %v1855, 2
        %v1924 = vsel %vm1531, %v1921, %v1923
        %v1925 = vrot.slane %v1856, 2
        %v1926 = vsel %vm1531, %v1923, %v1925
        %v1927 = vrot.slane %v1857, 2
        %v1928 = vsel %vm1531, %v1925, %v1927
        %v1929 = vrot.slane %v1858, 2
        %v1930 = vsel %vm1531, %v1927, %v1929
        %v1931 = vrot.slane %v1859, 2
        %v1932 = vsel %vm1531, %v1929, %v1931
        %v1933 = vrot.slane %v1860, 2
        %v1934 = vsel %vm1531, %v1931, %v1933
        %v1959 = vadd.f32 %v1808, %v1888
        %v1960 = vadd.f32 %v1809, %v1890
        %v1961 = vadd.f32 %v1810, %v1892
        %v1962 = vadd.f32 %v1811, %v1894
        %v1963 = vadd.f32 %v1812, %v1896
        %v1964 = vadd.f32 %v1813, %v1898
        %v1965 = vadd.f32 %v1814, %v1900
        %v1966 = vadd.f32 %v1815, %v1902
        %v1967 = vadd.f32 %v1816, %v1904
        %v1968 = vadd.f32 %v1817, %v1906
        %v1969 = vadd.f32 %v1818, %v1908
        %v1970 = vadd.f32 %v1819, %v1910
        %v1971 = vadd.f32 %v1820, %v1912
        %v1972 = vadd.f32 %v1821, %v1914
        %v1973 = vadd.f32 %v1822, %v1916
        %v1974 = vadd.f32 %v1823, %v1918
        %v1975 = vadd.f32 %v1824, %v1920
        %v1976 = vadd.f32 %v1825, %v1922
        %v1977 = vadd.f32 %v1826, %v1924
        %v1978 = vadd.f32 %v1827, %v1926
        %v1979 = vadd.f32 %v1828, %v1928
        %v1980 = vadd.f32 %v1829, %v1930
        %v1981 = vadd.f32 %v1830, %v1932
        %v1982 = vadd.f32 %v1831, %v1934
        %v1983 = vlaneseq
        %v1984 = vshrl.u32 %v1983, 7
        %v1985 = vsub.s32 0, %v1984
        %v1986 = vrot.slane %v1272, %v1985
        %v1987 = vmul.f32 %v1245, %v1986
        %v1988 = vmul.f32 %v1246, %v1986
        %v1989 = vmul.f32 %v1247, %v1986
        %v1990 = vmul.f32 %v1248, %v1986
        %v1991 = vmul.f32 %v1249, %v1986
        %v1992 = vmul.f32 %v1250, %v1986
        %v1993 = vmul.f32 %v1251, %v1986
        %v1994 = vmul.f32 %v1252, %v1986
        %v1995 = vmul.f32 %v1253, %v1986
        %v1996 = vmul.f32 %v1254, %v1986
        %v1997 = vmul.f32 %v1255, %v1986
        %v1998 = vmul.f32 %v1256, %v1986
        %v1999 = vmul.f32 %v1257, %v1986
        %v2000 = vmul.f32 %v1258, %v1986
        %v2001 = vmul.f32 %v1259, %v1986
        %v2002 = vmul.f32 %v1260, %v1986
        %v2003 = vmul.f32 %v1261, %v1986
        %v2004 = vmul.f32 %v1262, %v1986
        %v2005 = vmul.f32 %v1263, %v1986
        %v2006 = vmul.f32 %v1264, %v1986
        %v2007 = vmul.f32 %v1265, %v1986
        %v2008 = vmul.f32 %v1266, %v1986
        %v2009 = vmul.f32 %v1267, %v1986
        %v2010 = vmul.f32 %v1268, %v1986
        %v2011 = vadd.f32 %v1959, %v1987
        %v2012 = vadd.f32 %v1960, %v1988
        %v2013 = vadd.f32 %v1961, %v1989
        %v2014 = vadd.f32 %v1962, %v1990
        %v2015 = vadd.f32 %v1963, %v1991
        %v2016 = vadd.f32 %v1964, %v1992
        %v2017 = vadd.f32 %v1965, %v1993
        %v2018 = vadd.f32 %v1966, %v1994
        %v2019 = vadd.f32 %v1967, %v1995
        %v2020 = vadd.f32 %v1968, %v1996
        %v2021 = vadd.f32 %v1969, %v1997
        %v2022 = vadd.f32 %v1970, %v1998
        %v2023 = vadd.f32 %v1971, %v1999
        %v2024 = vadd.f32 %v1972, %v2000
        %v2025 = vadd.f32 %v1973, %v2001
        %v2026 = vadd.f32 %v1974, %v2002
        %v2027 = vadd.f32 %v1975, %v2003
        %v2028 = vadd.f32 %v1976, %v2004
        %v2029 = vadd.f32 %v1977, %v2005
        %v2030 = vadd.f32 %v1978, %v2006
        %v2031 = vadd.f32 %v1979, %v2007
        %v2032 = vadd.f32 %v1980, %v2008
        %v2033 = vadd.f32 %v1981, %v2009
        %v2034 = vadd.f32 %v1982, %v2010
        %v2035 = vlaneseq
        %v2036 = vshrl.u32 %v2035, 7
        %v2037 = vsub.s32 1, %v2036
        %v2038 = vrot.slane %v1272, %v2037
        %v2039 = vmul.f32 %v1245, %v2038
        %v2040 = vmul.f32 %v1246, %v2038
        %v2041 = vmul.f32 %v1247, %v2038
        %v2042 = vmul.f32 %v1248, %v2038
        %v2043 = vmul.f32 %v1249, %v2038
        %v2044 = vmul.f32 %v1250, %v2038
        %v2045 = vmul.f32 %v1251, %v2038
        %v2046 = vmul.f32 %v1252, %v2038
        %v2047 = vmul.f32 %v1253, %v2038
        %v2048 = vmul.f32 %v1254, %v2038
        %v2049 = vmul.f32 %v1255, %v2038
        %v2050 = vmul.f32 %v1256, %v2038
        %v2051 = vmul.f32 %v1257, %v2038
        %v2052 = vmul.f32 %v1258, %v2038
        %v2053 = vmul.f32 %v1259, %v2038
        %v2054 = vmul.f32 %v1260, %v2038
        %v2055 = vmul.f32 %v1261, %v2038
        %v2056 = vmul.f32 %v1262, %v2038
        %v2057 = vmul.f32 %v1263, %v2038
        %v2058 = vmul.f32 %v1264, %v2038
        %v2059 = vmul.f32 %v1265, %v2038
        %v2060 = vmul.f32 %v1266, %v2038
        %v2061 = vmul.f32 %v1267, %v2038
        %v2062 = vmul.f32 %v1268, %v2038
        %v2063 = vmul.f32 %v1269, %v2038
        %v2089 = vrot.slane %v2039, 1
        %v2090 = vrot.slane %v2040, 1
        %v2091 = vsel %vm1379, %v2089, %v2090
        %v2092 = vrot.slane %v2041, 1
        %v2093 = vsel %vm1379, %v2090, %v2092
        %v2094 = vrot.slane %v2042, 1
        %v2095 = vsel %vm1379, %v2092, %v2094
        %v2096 = vrot.slane %v2043, 1
        %v2097 = vsel %vm1379, %v2094, %v2096
        %v2098 = vrot.slane %v2044, 1
        %v2099 = vsel %vm1379, %v2096, %v2098
        %v2100 = vrot.slane %v2045, 1
        %v2101 = vsel %vm1379, %v2098, %v2100
        %v2102 = vrot.slane %v2046, 1
        %v2103 = vsel %vm1379, %v2100, %v2102
        %v2104 = vrot.slane %v2047, 1
        %v2105 = vsel %vm1379, %v2102, %v2104
        %v2106 = vrot.slane %v2048, 1
        %v2107 = vsel %vm1379, %v2104, %v2106
        %v2108 = vrot.slane %v2049, 1
        %v2109 = vsel %vm1379, %v2106, %v2108
        %v2110 = vrot.slane %v2050, 1
        %v2111 = vsel %vm1379, %v2108, %v2110
        %v2112 = vrot.slane %v2051, 1
        %v2113 = vsel %vm1379, %v2110, %v2112
        %v2114 = vrot.slane %v2052, 1
        %v2115 = vsel %vm1379, %v2112, %v2114
        %v2116 = vrot.slane %v2053, 1
        %v2117 = vsel %vm1379, %v2114, %v2116
        %v2118 = vrot.slane %v2054, 1
        %v2119 = vsel %vm1379, %v2116, %v2118
        %v2120 = vrot.slane %v2055, 1
        %v2121 = vsel %vm1379, %v2118, %v2120
        %v2122 = vrot.slane %v2056, 1
        %v2123 = vsel %vm1379, %v2120, %v2122
        %v2124 = vrot.slane %v2057, 1
        %v2125 = vsel %vm1379, %v2122, %v2124
        %v2126 = vrot.slane %v2058, 1
        %v2127 = vsel %vm1379, %v2124, %v2126
        %v2128 = vrot.slane %v2059, 1
        %v2129 = vsel %vm1379, %v2126, %v2128
        %v2130 = vrot.slane %v2060, 1
        %v2131 = vsel %vm1379, %v2128, %v2130
        %v2132 = vrot.slane %v2061, 1
        %v2133 = vsel %vm1379, %v2130, %v2132
        %v2134 = vrot.slane %v2062, 1
        %v2135 = vsel %vm1379, %v2132, %v2134
        %v2136 = vrot.slane %v2063, 1
        %v2137 = vsel %vm1379, %v2134, %v2136
        %v2162 = vadd.f32 %v2011, %v2091
        %v2163 = vadd.f32 %v2012, %v2093
        %v2164 = vadd.f32 %v2013, %v2095
        %v2165 = vadd.f32 %v2014, %v2097
        %v2166 = vadd.f32 %v2015, %v2099
        %v2167 = vadd.f32 %v2016, %v2101
        %v2168 = vadd.f32 %v2017, %v2103
        %v2169 = vadd.f32 %v2018, %v2105
        %v2170 = vadd.f32 %v2019, %v2107
        %v2171 = vadd.f32 %v2020, %v2109
        %v2172 = vadd.f32 %v2021, %v2111
        %v2173 = vadd.f32 %v2022, %v2113
        %v2174 = vadd.f32 %v2023, %v2115
        %v2175 = vadd.f32 %v2024, %v2117
        %v2176 = vadd.f32 %v2025, %v2119
        %v2177 = vadd.f32 %v2026, %v2121
        %v2178 = vadd.f32 %v2027, %v2123
        %v2179 = vadd.f32 %v2028, %v2125
        %v2180 = vadd.f32 %v2029, %v2127
        %v2181 = vadd.f32 %v2030, %v2129
        %v2182 = vadd.f32 %v2031, %v2131
        %v2183 = vadd.f32 %v2032, %v2133
        %v2184 = vadd.f32 %v2033, %v2135
        %v2185 = vadd.f32 %v2034, %v2137
        %v2186 = vlaneseq
        %v2187 = vshrl.u32 %v2186, 7
        %v2188 = vsub.s32 2, %v2187
        %v2189 = vrot.slane %v1272, %v2188
        %v2190 = vmul.f32 %v1245, %v2189
        %v2191 = vmul.f32 %v1246, %v2189
        %v2192 = vmul.f32 %v1247, %v2189
        %v2193 = vmul.f32 %v1248, %v2189
        %v2194 = vmul.f32 %v1249, %v2189
        %v2195 = vmul.f32 %v1250, %v2189
        %v2196 = vmul.f32 %v1251, %v2189
        %v2197 = vmul.f32 %v1252, %v2189
        %v2198 = vmul.f32 %v1253, %v2189
        %v2199 = vmul.f32 %v1254, %v2189
        %v2200 = vmul.f32 %v1255, %v2189
        %v2201 = vmul.f32 %v1256, %v2189
        %v2202 = vmul.f32 %v1257, %v2189
        %v2203 = vmul.f32 %v1258, %v2189
        %v2204 = vmul.f32 %v1259, %v2189
        %v2205 = vmul.f32 %v1260, %v2189
        %v2206 = vmul.f32 %v1261, %v2189
        %v2207 = vmul.f32 %v1262, %v2189
        %v2208 = vmul.f32 %v1263, %v2189
        %v2209 = vmul.f32 %v1264, %v2189
        %v2210 = vmul.f32 %v1265, %v2189
        %v2211 = vmul.f32 %v1266, %v2189
        %v2212 = vmul.f32 %v1267, %v2189
        %v2213 = vmul.f32 %v1268, %v2189
        %v2214 = vmul.f32 %v1269, %v2189
        %v2240 = vrot.slane %v2190, 2
        %v2241 = vrot.slane %v2191, 2
        %v2242 = vsel %vm1531, %v2240, %v2241
        %v2243 = vrot.slane %v2192, 2
        %v2244 = vsel %vm1531, %v2241, %v2243
        %v2245 = vrot.slane %v2193, 2
        %v2246 = vsel %vm1531, %v2243, %v2245
        %v2247 = vrot.slane %v2194, 2
        %v2248 = vsel %vm1531, %v2245, %v2247
        %v2249 = vrot.slane %v2195, 2
        %v2250 = vsel %vm1531, %v2247, %v2249
        %v2251 = vrot.slane %v2196, 2
        %v2252 = vsel %vm1531, %v2249, %v2251
        %v2253 = vrot.slane %v2197, 2
        %v2254 = vsel %vm1531, %v2251, %v2253
        %v2255 = vrot.slane %v2198, 2
        %v2256 = vsel %vm1531, %v2253, %v2255
        %v2257 = vrot.slane %v2199, 2
        %v2258 = vsel %vm1531, %v2255, %v2257
        %v2259 = vrot.slane %v2200, 2
        %v2260 = vsel %vm1531, %v2257, %v2259
        %v2261 = vrot.slane %v2201, 2
        %v2262 = vsel %vm1531, %v2259, %v2261
        %v2263 = vrot.slane %v2202, 2
        %v2264 = vsel %vm1531, %v2261, %v2263
        %v2265 = vrot.slane %v2203, 2
        %v2266 = vsel %vm1531, %v2263, %v2265
        %v2267 = vrot.slane %v2204, 2
        %v2268 = vsel %vm1531, %v2265, %v2267
        %v2269 = vrot.slane %v2205, 2
        %v2270 = vsel %vm1531, %v2267, %v2269
        %v2271 = vrot.slane %v2206, 2
        %v2272 = vsel %vm1531, %v2269, %v2271
        %v2273 = vrot.slane %v2207, 2
        %v2274 = vsel %vm1531, %v2271, %v2273
        %v2275 = vrot.slane %v2208, 2
        %v2276 = vsel %vm1531, %v2273, %v2275
        %v2277 = vrot.slane %v2209, 2
        %v2278 = vsel %vm1531, %v2275, %v2277
        %v2279 = vrot.slane %v2210, 2
        %v2280 = vsel %vm1531, %v2277, %v2279
        %v2281 = vrot.slane %v2211, 2
        %v2282 = vsel %vm1531, %v2279, %v2281
        %v2283 = vrot.slane %v2212, 2
        %v2284 = vsel %vm1531, %v2281, %v2283
        %v2285 = vrot.slane %v2213, 2
        %v2286 = vsel %vm1531, %v2283, %v2285
        %v2287 = vrot.slane %v2214, 2
        %v2288 = vsel %vm1531, %v2285, %v2287
        %v2313 = vadd.f32 %v2162, %v2242
        %v2314 = vadd.f32 %v2163, %v2244
        %v2315 = vadd.f32 %v2164, %v2246
        %v2316 = vadd.f32 %v2165, %v2248
        %v2317 = vadd.f32 %v2166, %v2250
        %v2318 = vadd.f32 %v2167, %v2252
        %v2319 = vadd.f32 %v2168, %v2254
        %v2320 = vadd.f32 %v2169, %v2256
        %v2321 = vadd.f32 %v2170, %v2258
        %v2322 = vadd.f32 %v2171, %v2260
        %v2323 = vadd.f32 %v2172, %v2262
        %v2324 = vadd.f32 %v2173, %v2264
        %v2325 = vadd.f32 %v2174, %v2266
        %v2326 = vadd.f32 %v2175, %v2268
        %v2327 = vadd.f32 %v2176, %v2270
        %v2328 = vadd.f32 %v2177, %v2272
        %v2329 = vadd.f32 %v2178, %v2274
        %v2330 = vadd.f32 %v2179, %v2276
        %v2331 = vadd.f32 %v2180, %v2278
        %v2332 = vadd.f32 %v2181, %v2280
        %v2333 = vadd.f32 %v2182, %v2282
        %v2334 = vadd.f32 %v2183, %v2284
        %v2335 = vadd.f32 %v2184, %v2286
        %v2336 = vadd.f32 %v2185, %v2288
        %v2337 = vld [vmem:[%s6] sm:$0x1]
        %v2339 = vlaneseq
        %v2340 = vshrl.u32 %v2339, 7
        %v2341 = vsub.s32 0, %v2340
        %v2342 = vrot.slane %v2337, %v2341
        %v2344 = vadd.f32 %v2313, %v2342
        %v2345 = vadd.f32 %v2314, %v2342
        %v2346 = vadd.f32 %v2315, %v2342
        %v2347 = vadd.f32 %v2316, %v2342
        %v2348 = vadd.f32 %v2317, %v2342
        %v2349 = vadd.f32 %v2318, %v2342
        %v2350 = vadd.f32 %v2319, %v2342
        %v2351 = vadd.f32 %v2320, %v2342
        %v2352 = vadd.f32 %v2321, %v2342
        %v2353 = vadd.f32 %v2322, %v2342
        %v2354 = vadd.f32 %v2323, %v2342
        %v2355 = vadd.f32 %v2324, %v2342
        %v2356 = vadd.f32 %v2325, %v2342
        %v2357 = vadd.f32 %v2326, %v2342
        %v2358 = vadd.f32 %v2327, %v2342
        %v2359 = vadd.f32 %v2328, %v2342
        %v2360 = vadd.f32 %v2329, %v2342
        %v2361 = vadd.f32 %v2330, %v2342
        %v2362 = vadd.f32 %v2331, %v2342
        %v2363 = vadd.f32 %v2332, %v2342
        %v2364 = vadd.f32 %v2333, %v2342
        %v2365 = vadd.f32 %v2334, %v2342
        %v2366 = vadd.f32 %v2335, %v2342
        %v2367 = vadd.f32 %v2336, %v2342
        %v2368 = vmax.f32 %v2344, 0.0
        %v2369 = vmax.f32 %v2345, 0.0
        %v2370 = vmax.f32 %v2346, 0.0
        %v2371 = vmax.f32 %v2347, 0.0
        %v2372 = vmax.f32 %v2348, 0.0
        %v2373 = vmax.f32 %v2349, 0.0
        %v2374 = vmax.f32 %v2350, 0.0
        %v2375 = vmax.f32 %v2351, 0.0
        %v2376 = vmax.f32 %v2352, 0.0
        %v2377 = vmax.f32 %v2353, 0.0
        %v2378 = vmax.f32 %v2354, 0.0
        %v2379 = vmax.f32 %v2355, 0.0
        %v2380 = vmax.f32 %v2356, 0.0
        %v2381 = vmax.f32 %v2357, 0.0
        %v2382 = vmax.f32 %v2358, 0.0
        %v2383 = vmax.f32 %v2359, 0.0
        %v2384 = vmax.f32 %v2360, 0.0
        %v2385 = vmax.f32 %v2361, 0.0
        %v2386 = vmax.f32 %v2362, 0.0
        %v2387 = vmax.f32 %v2363, 0.0
        %v2388 = vmax.f32 %v2364, 0.0
        %v2389 = vmax.f32 %v2365, 0.0
        %v2390 = vmax.f32 %v2366, 0.0
        %v2391 = vmax.f32 %v2367, 0.0
        %v2392 = vmin.f32 %v2368, 6.0
        %v2393 = vmin.f32 %v2369, 6.0
        %v2394 = vmin.f32 %v2370, 6.0
        %v2395 = vmin.f32 %v2371, 6.0
        %v2396 = vmin.f32 %v2372, 6.0
        %v2397 = vmin.f32 %v2373, 6.0
        %v2398 = vmin.f32 %v2374, 6.0
        %v2399 = vmin.f32 %v2375, 6.0
        %v2400 = vmin.f32 %v2376, 6.0
        %v2401 = vmin.f32 %v2377, 6.0
        %v2402 = vmin.f32 %v2378, 6.0
        %v2403 = vmin.f32 %v2379, 6.0
        %v2404 = vmin.f32 %v2380, 6.0
        %v2405 = vmin.f32 %v2381, 6.0
        %v2406 = vmin.f32 %v2382, 6.0
        %v2407 = vmin.f32 %v2383, 6.0
        %v2408 = vmin.f32 %v2384, 6.0
        %v2409 = vmin.f32 %v2385, 6.0
        %v2410 = vmin.f32 %v2386, 6.0
        %v2411 = vmin.f32 %v2387, 6.0
        %v2412 = vmin.f32 %v2388, 6.0
        %v2413 = vmin.f32 %v2389, 6.0
        %v2414 = vmin.f32 %v2390, 6.0
        %v2415 = vmin.f32 %v2391, 6.0
        %v2416 = vld [vmem:[%s7] sm:$0xff]
        %v2417 = vld [vmem:[%s7 + $0x8] sm:$0xff]
        %v2418 = vld [vmem:[%s8] sm:$0x1]
        %v2420 = vlaneseq
        %v2421 = vshrl.u32 %v2420, 7
        %v2422 = vsub.s32 0, %v2421
        %v2423 = vrot.slane %v2418, %v2422
        %vm2425 = vcmask 130048
        %v2427 = vsel %vm2425, %v2392, 0
        %v2430 = vsel %vm2425, %v2393, 0
        %v2433 = vsel %vm2425, %v2394, 0
        %v2436 = vsel %vm2425, %v2395, 0
        %v2439 = vsel %vm2425, %v2396, 0
        %v2442 = vsel %vm2425, %v2397, 0
        %v2445 = vsel %vm2425, %v2398, 0
        %v2448 = vsel %vm2425, %v2399, 0
        %v2451 = vsel %vm2425, %v2400, 0
        %v2454 = vsel %vm2425, %v2401, 0
        %v2457 = vsel %vm2425, %v2402, 0
        %v2460 = vsel %vm2425, %v2403, 0
        %v2463 = vsel %vm2425, %v2404, 0
        %v2466 = vsel %vm2425, %v2405, 0
        %v2469 = vsel %vm2425, %v2406, 0
        %v2472 = vsel %vm2425, %v2407, 0
        %v2475 = vsel %vm2425, %v2408, 0
        %v2478 = vsel %vm2425, %v2409, 0
        %v2481 = vsel %vm2425, %v2410, 0
        %v2484 = vsel %vm2425, %v2411, 0
        %v2487 = vsel %vm2425, %v2412, 0
        %v2490 = vsel %vm2425, %v2413, 0
        %v2493 = vsel %vm2425, %v2414, 0
        %v2496 = vsel %vm2425, %v2415, 0
        %2498 = vmatprep.subr.mxu0 0.0
        %2499 = vmatpush1.msra.mxu0 %v2416
        %2500 = vmatprep.subr.mxu0 0.0
        %2501 = vmatpush1.msra.mxu0 %v2417
        %2502 = vmatprep.subr.mxu0 0.0
        %2503 = vmatpush1.msra.mxu0 0.0
        %2504 = vmatprep.subr.mxu0 0.0
        %2505 = vmatpush1.msra.mxu0 0.0
        %2506 = vmatprep.subr.mxu0 0.0
        %2507 = vmatpush1.msra.mxu0 0.0
        %2508 = vmatprep.subr.mxu0 0.0
        %2509 = vmatpush1.msra.mxu0 0.0
        %2510 = vmatprep.subr.mxu0 0.0
        %2511 = vmatpush1.msra.mxu0 0.0
        %2512 = vmatprep.subr.mxu0 0.0
        %2513 = vmatpush1.msra.mxu0 0.0
        %2514 = vmatprep.subr.mxu0 0.0
        %2515 = vmatpush1.msra.mxu0 0.0
        %2516 = vmatprep.subr.mxu0 0.0
        %2517 = vmatpush1.msra.mxu0 0.0
        %2518 = vmatprep.subr.mxu0 0.0
        %2519 = vmatpush1.msra.mxu0 0.0
        %2520 = vmatprep.subr.mxu0 0.0
        %2521 = vmatpush1.msra.mxu0 0.0
        %2522 = vmatprep.subr.mxu0 0.0
        %2523 = vmatpush1.msra.mxu0 0.0
        %2524 = vmatprep.subr.mxu0 0.0
        %2525 = vmatpush1.msra.mxu0 0.0
        %2526 = vmatprep.subr.mxu0 0.0
        %2527 = vmatpush1.msra.mxu0 0.0
        %2528 = vmatprep.subr.mxu0 0.0
        %2529 = vmatpush1.msra.mxu0 0.0
        %2530 = vmatprep.subr.mxu0 0.0
        %2531 = vmatpush1.msra.mxu0 0.0
        %2532 = vmatprep.subr.mxu0 0.0
        %2533 = vmatpush1.msra.mxu0 0.0
        %2534 = vmatprep.subr.mxu0 0.0
        %2535 = vmatpush1.msra.mxu0 0.0
        %2536 = vmatprep.subr.mxu0 0.0
        %2537 = vmatpush1.msra.mxu0 0.0
        %2538 = vmatprep.subr.mxu0 0.0
        %2539 = vmatpush1.msra.mxu0 0.0
        %2540 = vmatprep.subr.mxu0 0.0
        %2541 = vmatpush1.msra.mxu0 0.0
        %2542 = vmatprep.subr.mxu0 0.0
        %2543 = vmatpush1.msra.mxu0 0.0
        %2544 = vmatprep.subr.mxu0 0.0
        %2545 = vmatpush1.msra.mxu0 0.0
        %2546 = vmatprep.subr.mxu0 0.0
        %2547 = vmatpush1.msra.mxu0 0.0
        %2548 = vmatprep.subr.mxu0 0.0
        %2549 = vmatpush1.msra.mxu0 0.0
        %2550 = vmatprep.subr.mxu0 0.0
        %2551 = vmatpush1.msra.mxu0 0.0
        %2552 = vmatprep.subr.mxu0 0.0
        %2553 = vmatpush1.msra.mxu0 0.0
        %2554 = vmatprep.subr.mxu0 0.0
        %2555 = vmatpush1.msra.mxu0 0.0
        %2556 = vmatprep.subr.mxu0 0.0
        %2557 = vmatpush1.msra.mxu0 0.0
        %2558 = vmatprep.subr.mxu0 0.0
        %2559 = vmatpush1.msra.mxu0 0.0
        %2560 = vmatprep.subr.mxu0 0.0
        %2561 = vmatpush1.msra.mxu0 0.0
        %2562 = vmatprep.mubr.f32.mxu0 0.0
        %2563 = vmatmul.mubr.f32.gmra.mrb[0].mxu0 %v2427
        %v2564 = vpop.f32.mrb[0].mxu0
        %v2565 = vadd.f32 %v2423, %v2564
        %v2566 = vpop.f32.mrb[0].mxu0
        %2567 = vmatprep.mubr.f32.mxu0 0.0
        %2568 = vmatmul.mubr.f32.gmra.mrb[0].mxu0 %v2430
        %v2569 = vpop.f32.mrb[0].mxu0
        %v2570 = vadd.f32 %v2423, %v2569
        %v2571 = vpop.f32.mrb[0].mxu0
        %2572 = vmatprep.mubr.f32.mxu0 0.0
        %2573 = vmatmul.mubr.f32.gmra.mrb[0].mxu0 %v2433
        %v2574 = vpop.f32.mrb[0].mxu0
        %v2575 = vpop.f32.mrb[0].mxu0
        %2576 = vmatprep.mubr.f32.mxu0 0.0
        %2577 = vmatmul.mubr.f32.gmra.mrb[0].mxu0 %v2436
        %v2578 = vpop.f32.mrb[0].mxu0
        %v2579 = vadd.f32 %v2423, %v2578
        %v2580 = vpop.f32.mrb[0].mxu0
        %2581 = vmatprep.mubr.f32.mxu0 0.0
        %2582 = vmatmul.mubr.f32.gmra.mrb[0].mxu0 %v2439
        %v2583 = vpop.f32.mrb[0].mxu0
        %v2584 = vadd.f32 %v2423, %v2583
        %v2585 = vpop.f32.mrb[0].mxu0
        %2586 = vmatprep.mubr.f32.mxu0 0.0
        %2587 = vmatmul.mubr.f32.gmra.mrb[0].mxu0 %v2442
        %v2588 = vpop.f32.mrb[0].mxu0
        %v2589 = vpop.f32.mrb[0].mxu0
        %2590 = vmatprep.mubr.f32.mxu0 0.0
        %2591 = vmatmul.mubr.f32.gmra.mrb[0].mxu0 %v2445
        %v2592 = vpop.f32.mrb[0].mxu0
        %v2593 = vadd.f32 %v2423, %v2592
        %v2594 = vpop.f32.mrb[0].mxu0
        %2595 = vmatprep.mubr.f32.mxu0 0.0
        %2596 = vmatmul.mubr.f32.gmra.mrb[0].mxu0 %v2448
        %v2597 = vpop.f32.mrb[0].mxu0
        %v2598 = vadd.f32 %v2423, %v2597
        %v2599 = vpop.f32.mrb[0].mxu0
        %2600 = vmatprep.mubr.f32.mxu0 0.0
        %2601 = vmatmul.mubr.f32.gmra.mrb[0].mxu0 %v2451
        %v2602 = vpop.f32.mrb[0].mxu0
        %v2603 = vpop.f32.mrb[0].mxu0
        %2604 = vmatprep.mubr.f32.mxu0 0.0
        %2605 = vmatmul.mubr.f32.gmra.mrb[0].mxu0 %v2454
        %v2606 = vpop.f32.mrb[0].mxu0
        %v2607 = vadd.f32 %v2423, %v2606
        %v2608 = vpop.f32.mrb[0].mxu0
        %2609 = vmatprep.mubr.f32.mxu0 0.0
        %2610 = vmatmul.mubr.f32.gmra.mrb[0].mxu0 %v2457
        %v2611 = vpop.f32.mrb[0].mxu0
        %v2612 = vadd.f32 %v2423, %v2611
        %v2613 = vpop.f32.mrb[0].mxu0
        %2614 = vmatprep.mubr.f32.mxu0 0.0
        %2615 = vmatmul.mubr.f32.gmra.mrb[0].mxu0 %v2460
        %v2616 = vpop.f32.mrb[0].mxu0
        %v2617 = vpop.f32.mrb[0].mxu0
        %2618 = vmatprep.mubr.f32.mxu0 0.0
        %2619 = vmatmul.mubr.f32.gmra.mrb[0].mxu0 %v2463
        %v2620 = vpop.f32.mrb[0].mxu0
        %v2621 = vadd.f32 %v2423, %v2620
        %v2622 = vpop.f32.mrb[0].mxu0
        %2623 = vmatprep.mubr.f32.mxu0 0.0
        %2624 = vmatmul.mubr.f32.gmra.mrb[0].mxu0 %v2466
        %v2625 = vpop.f32.mrb[0].mxu0
        %v2626 = vadd.f32 %v2423, %v2625
        %v2627 = vpop.f32.mrb[0].mxu0
        %2628 = vmatprep.mubr.f32.mxu0 0.0
        %2629 = vmatmul.mubr.f32.gmra.mrb[0].mxu0 %v2469
        %v2630 = vpop.f32.mrb[0].mxu0
        %v2631 = vpop.f32.mrb[0].mxu0
        %2632 = vmatprep.mubr.f32.mxu0 0.0
        %2633 = vmatmul.mubr.f32.gmra.mrb[0].mxu0 %v2472
        %v2634 = vpop.f32.mrb[0].mxu0
        %v2635 = vadd.f32 %v2423, %v2634
        %v2636 = vpop.f32.mrb[0].mxu0
        %2637 = vmatprep.mubr.f32.mxu0 0.0
        %2638 = vmatmul.mubr.f32.gmra.mrb[0].mxu0 %v2475
        %v2639 = vpop.f32.mrb[0].mxu0
        %v2640 = vadd.f32 %v2423, %v2639
        %v2641 = vpop.f32.mrb[0].mxu0
        %2642 = vmatprep.mubr.f32.mxu0 0.0
        %2643 = vmatmul.mubr.f32.gmra.mrb[0].mxu0 %v2478
        %v2644 = vpop.f32.mrb[0].mxu0
        %v2645 = vpop.f32.mrb[0].mxu0
        %2646 = vmatprep.mubr.f32.mxu0 0.0
        %2647 = vmatmul.mubr.f32.gmra.mrb[0].mxu0 %v2481
        %v2648 = vpop.f32.mrb[0].mxu0
        %v2649 = vadd.f32 %v2423, %v2648
        %v2650 = vpop.f32.mrb[0].mxu0
        %2651 = vmatprep.mubr.f32.mxu0 0.0
        %2652 = vmatmul.mubr.f32.gmra.mrb[0].mxu0 %v2484
        %v2653 = vpop.f32.mrb[0].mxu0
        %v2654 = vadd.f32 %v2423, %v2653
        %v2655 = vpop.f32.mrb[0].mxu0
        %2656 = vmatprep.mubr.f32.mxu0 0.0
        %2657 = vmatmul.mubr.f32.gmra.mrb[0].mxu0 %v2487
        %v2658 = vpop.f32.mrb[0].mxu0
        %v2659 = vpop.f32.mrb[0].mxu0
        %2660 = vmatprep.mubr.f32.mxu0 0.0
        %2661 = vmatmul.mubr.f32.gmra.mrb[0].mxu0 %v2490
        %v2662 = vpop.f32.mrb[0].mxu0
        %v2663 = vadd.f32 %v2423, %v2662
        %v2664 = vpop.f32.mrb[0].mxu0
        %2665 = vmatprep.mubr.f32.mxu0 0.0
        %2666 = vmatmul.mubr.f32.gmra.mrb[0].mxu0 %v2493
        %v2667 = vpop.f32.mrb[0].mxu0
        %v2668 = vadd.f32 %v2423, %v2667
        %v2669 = vpop.f32.mrb[0].mxu0
        %2670 = vmatprep.mubr.f32.mxu0 0.0
        %2671 = vmatmul.mubr.f32.gmra.mrb[0].mxu0 %v2496
        %v2672 = vpop.f32.mrb[0].mxu0
        %v2673 = vpop.f32.mrb[0].mxu0
        %2674 = vdwg.mxu0
        %v2675 = vrot.slane %v501, 1
        %v2676 = vrot.slane %v502, 1
        %v2677 = vsel %vm1379, %v2675, %v2676
        %v2678 = vrot.slane %v503, 1
        %v2679 = vsel %vm1379, %v2676, %v2678
        %v2680 = vrot.slane %v504, 1
        %v2681 = vrot.slane %v505, 1
        %v2682 = vsel %vm1379, %v2680, %v2681
        %v2683 = vrot.slane %v506, 1
        %v2684 = vsel %vm1379, %v2681, %v2683
        %v2685 = vrot.slane %v507, 1
        %v2686 = vrot.slane %v508, 1
        %v2687 = vsel %vm1379, %v2685, %v2686
        %v2688 = vrot.slane %v509, 1
        %v2689 = vsel %vm1379, %v2686, %v2688
        %v2690 = vrot.slane %v510, 1
        %v2691 = vrot.slane %v511, 1
        %v2692 = vsel %vm1379, %v2690, %v2691
        %v2693 = vrot.slane %v512, 1
        %v2694 = vsel %vm1379, %v2691, %v2693
        %v2695 = vrot.slane %v513, 1
        %v2696 = vrot.slane %v514, 1
        %v2697 = vsel %vm1379, %v2695, %v2696
        %v2698 = vrot.slane %v515, 1
        %v2699 = vsel %vm1379, %v2696, %v2698
        %v2700 = vrot.slane %v516, 1
        %v2701 = vrot.slane %v517, 1
        %v2702 = vsel %vm1379, %v2700, %v2701
        %v2703 = vrot.slane %v518, 1
        %v2704 = vsel %vm1379, %v2701, %v2703
        %v2705 = vrot.slane %v519, 1
        %v2706 = vrot.slane %v520, 1
        %v2707 = vsel %vm1379, %v2705, %v2706
        %v2708 = vrot.slane %v521, 1
        %v2709 = vsel %vm1379, %v2706, %v2708
        %v2710 = vrot.slane %v522, 1
        %v2711 = vrot.slane %v523, 1
        %v2712 = vsel %vm1379, %v2710, %v2711
        %v2713 = vrot.slane %v524, 1
        %v2714 = vsel %vm1379, %v2711, %v2713
        %v2731 = vadd.f32 %v2565, %v2677
        %v2732 = vadd.f32 %v2570, %v2679
        %v2733 = vadd.f32 %v2579, %v2682
        %v2734 = vadd.f32 %v2584, %v2684
        %v2735 = vadd.f32 %v2593, %v2687
        %v2736 = vadd.f32 %v2598, %v2689
        %v2737 = vadd.f32 %v2607, %v2692
        %v2738 = vadd.f32 %v2612, %v2694
        %v2739 = vadd.f32 %v2621, %v2697
        %v2740 = vadd.f32 %v2626, %v2699
        %v2741 = vadd.f32 %v2635, %v2702
        %v2742 = vadd.f32 %v2640, %v2704
        %v2743 = vadd.f32 %v2649, %v2707
        %v2744 = vadd.f32 %v2654, %v2709
        %v2745 = vadd.f32 %v2663, %v2712
        %v2746 = vadd.f32 %v2668, %v2714
        %2747 = vst.msk [vmem:[%s394] sm:$0xff] %vm458, %v2731
        %2748 = vst.msk [vmem:[%s394 + $0x8] sm:$0xff] %vm458, %v2732
        %s2749 = scalar_lea.vmem %s394, 16 [#allocation3]
        %2750 = vst.msk [vmem:[%s2749] sm:$0xff] %vm458, %v2733
        %2751 = vst.msk [vmem:[%s2749 + $0x8] sm:$0xff] %vm458, %v2734
        %s2752 = scalar_lea.vmem %s394, 32 [#allocation3]
        %2753 = vst.msk [vmem:[%s2752] sm:$0xff] %vm458, %v2735
        %2754 = vst.msk [vmem:[%s2752 + $0x8] sm:$0xff] %vm458, %v2736
        %s2755 = scalar_lea.vmem %s394, 48 [#allocation3]
        %2756 = vst.msk [vmem:[%s2755] sm:$0xff] %vm458, %v2737
        %2757 = vst.msk [vmem:[%s2755 + $0x8] sm:$0xff] %vm458, %v2738
        %s2758 = scalar_lea.vmem %s394, 64 [#allocation3]
        %2759 = vst.msk [vmem:[%s2758] sm:$0xff] %vm458, %v2739
        %2760 = vst.msk [vmem:[%s2758 + $0x8] sm:$0xff] %vm458, %v2740
        %s2761 = scalar_lea.vmem %s394, 80 [#allocation3]
        %2762 = vst.msk [vmem:[%s2761] sm:$0xff] %vm458, %v2741
        %2763 = vst.msk [vmem:[%s2761 + $0x8] sm:$0xff] %vm458, %v2742
        %s2764 = scalar_lea.vmem %s394, 96 [#allocation3]
        %2765 = vst.msk [vmem:[%s2764] sm:$0xff] %vm458, %v2743
        %2766 = vst.msk [vmem:[%s2764 + $0x8] sm:$0xff] %vm458, %v2744
        %s2767 = scalar_lea.vmem %s394, 112 [#allocation3]
        %2768 = vst.msk [vmem:[%s2767] sm:$0xff] %vm458, %v2745
        %2769 = vst.msk [vmem:[%s2767 + $0x8] sm:$0xff] %vm458, %v2746
        %s2770 = sand.u32 %s249, 1
        %s2771 = sand.u32 %s249, 1
        %s2772 = smul.addr %s2771, 128
        %s2773 = scalar_lea.vmem [#allocation3], %s2772
        // Predicated region
        $region57: #{tpu_custom_call.1} parent=55 // pred_check
          %p2774 = pneg %p259
        $region58: #{tpu_custom_call.1} parent=55 // pred_check_branch
          %2776 = sbr.rel (%p2774) target = $region60
        $region59: #{tpu_custom_call.1} parent=55 // pred_region
          %s2777 = smul.u32 8, %s25
          %s2778 = ssub.s32 20, %s2777
          %p2779 = scmp.lt.s32.totalorder %s2778, 8
          %s2780 = scalar_select %p2779, %s2778, 8
          %s2781 = smul.u32 128, %s2780
          %s2782 = smul.u32 %s2781, 2
          %p2783 = scmp.ne.s32.totalorder 0, %s2782
          %s2784 = smul.addr %s2777, 2
          %s2785 = smul.addr %s24, 40
          %s2786 = sadd.s32 %s2784, %s2785
          %s2787 = smul.addr %s2786, 8
          %s2788 = scalar_lea.vmem %s9, %s2787
          %s2789 = smul.u32 %s2780, 2
          // Predicated region
          $region61: #{tpu_custom_call.1} parent=59 // pred_check
            %p2790 = pneg %p2783
          $region62: #{tpu_custom_call.1} parent=59 // pred_check_branch
            %2792 = sbr.rel (%p2790) target = $region64
          $region63: #{tpu_custom_call.1} parent=59 // pred_region
            // Predicated region
            $region65: #{tpu_custom_call.1} parent=63 // pred_check
              _
            $region66: #{tpu_custom_call.1} parent=63 // pred_check_branch
              %2794 = sbr.rel (0) target = $region68
            $region67: #{tpu_custom_call.1} parent=63 // pred_region
              // Predicated region
              $region87: #{tpu_custom_call.1} parent=67 // pred_check
                _
              $region88: #{tpu_custom_call.1} parent=67 // pred_check_branch
                %2873 = sbr.rel (0) target = $region90
              $region89: #{tpu_custom_call.1} parent=67 // pred_region
                %s2874 = sshrl.u32 %s2789, 4
                // While loop
                $region91: #{tpu_custom_call.1} parent=89 // loop_pre_header
                  _
                $region92: #{tpu_custom_call.1} parent=89 // loop_header
                  %s2876 = sphi 0, %s2878
                  %p2877 = scmp.ge.s32.totalorder %s2876, %s2874
                  %s2881 = sphi 0, %s2918
                  %s2882 = sphi %s2773, %s2921
                  %s2883 = sphi %s2788, %s2922
                $region93: #{tpu_custom_call.1} parent=89 // loop_header_branch
                  %2880 = sbr.rel (%p2877) target = $region97
                $region94: #{tpu_custom_call.1} parent=89 // loop_body
                  %v2884 = vld [vmem:[%s2882] sm:$0xff]
                  %2885 = vst [vmem:[%s2883] sm:$0xff] %v2884
                  %v2886 = vld [vmem:[%s2882 + $0x8] sm:$0xff]
                  %2887 = vst [vmem:[%s2883 + $0x8] sm:$0xff] %v2886
                  %v2888 = vld [vmem:[%s2882 + $0x10] sm:$0xff]
                  %2889 = vst [vmem:[%s2883 + $0x10] sm:$0xff] %v2888
                  %v2890 = vld [vmem:[%s2882 + $0x18] sm:$0xff]
                  %2891 = vst [vmem:[%s2883 + $0x18] sm:$0xff] %v2890
                  %v2892 = vld [vmem:[%s2882 + $0x20] sm:$0xff]
                  %2893 = vst [vmem:[%s2883 + $0x20] sm:$0xff] %v2892
                  %v2894 = vld [vmem:[%s2882 + $0x28] sm:$0xff]
                  %2895 = vst [vmem:[%s2883 + $0x28] sm:$0xff] %v2894
                  %v2896 = vld [vmem:[%s2882 + $0x30] sm:$0xff]
                  %2897 = vst [vmem:[%s2883 + $0x30] sm:$0xff] %v2896
                  %v2898 = vld [vmem:[%s2882 + $0x38] sm:$0xff]
                  %2899 = vst [vmem:[%s2883 + $0x38] sm:$0xff] %v2898
                  %v2900 = vld [vmem:[%s2882 + $0x40] sm:$0xff]
                  %2901 = vst [vmem:[%s2883 + $0x40] sm:$0xff] %v2900
                  %v2902 = vld [vmem:[%s2882 + $0x48] sm:$0xff]
                  %2903 = vst [vmem:[%s2883 + $0x48] sm:$0xff] %v2902
                  %v2904 = vld [vmem:[%s2882 + $0x50] sm:$0xff]
                  %2905 = vst [vmem:[%s2883 + $0x50] sm:$0xff] %v2904
                  %v2906 = vld [vmem:[%s2882 + $0x58] sm:$0xff]
                  %2907 = vst [vmem:[%s2883 + $0x58] sm:$0xff] %v2906
                  %v2908 = vld [vmem:[%s2882 + $0x60] sm:$0xff]
                  %2909 = vst [vmem:[%s2883 + $0x60] sm:$0xff] %v2908
                  %v2910 = vld [vmem:[%s2882 + $0x68] sm:$0xff]
                  %2911 = vst [vmem:[%s2883 + $0x68] sm:$0xff] %v2910
                  %v2912 = vld [vmem:[%s2882 + $0x70] sm:$0xff]
                  %2913 = vst [vmem:[%s2883 + $0x70] sm:$0xff] %v2912
                  %v2914 = vld [vmem:[%s2882 + $0x78] sm:$0xff]
                  %2915 = vst [vmem:[%s2883 + $0x78] sm:$0xff] %v2914
                  %s2916 = sadd.s32 1, %s2881
                  %p2917 = scmp.ge.s32.totalorder %s2916, %s2874
                  %s2918 = scalar_select %p2917, 0, %s2916
                  %s2919 = smul.u32 %s2918, 128
                  %s2920 = smul.u32 %s2918, 128
                  %s2921 = scalar_lea.vmem %s2773, %s2919 [#allocation3]
                  %s2922 = scalar_lea.vmem %s2788, %s2920
                $region95: #{tpu_custom_call.1} parent=89 // loop_footer
                  %s2878 = sadd.s32 %s2876, 1
                $region96: #{tpu_custom_call.1} parent=89 // loop_footer_branch
                  %2875 = sbr.rel target = $region92
                $region97: #{tpu_custom_call.1} parent=89 // loop_exit
                  _
                %s2923 = sshrl.u32 %s2789, 4
                %s2924 = sand.u32 %s2789, 15
                %s2925 = smul.u32 %s2923, 16
                %s2926 = smul.u32 8, %s2925
                %s2927 = scalar_lea.vmem %s2773, %s2926 [#allocation3]
                %s2928 = smul.u32 8, %s2925
                %s2929 = scalar_lea.vmem %s2788, %s2928
                // While loop
                $region98: #{tpu_custom_call.1} parent=89 // loop_pre_header
                  _
                $region99: #{tpu_custom_call.1} parent=89 // loop_header
                  %s2931 = sphi 0, %s2933
                  %p2932 = scmp.ge.s32.totalorder %s2931, %s2924
                  %s2936 = sphi 0, %s2943
                  %s2937 = sphi %s2927, %s2946
                  %s2938 = sphi %s2929, %s2947
                $region100: #{tpu_custom_call.1} parent=89 // loop_header_branch
                  %2935 = sbr.rel (%p2932) target = $region104
                $region101: #{tpu_custom_call.1} parent=89 // loop_body
                  %v2939 = vld [vmem:[%s2937] sm:$0xff]
                  %2940 = vst [vmem:[%s2938] sm:$0xff] %v2939
                  %s2941 = sadd.s32 1, %s2936
                  %p2942 = scmp.ge.s32.totalorder %s2941, %s2924
                  %s2943 = scalar_select %p2942, 0, %s2941
                  %s2944 = smul.u32 %s2943, 8
                  %s2945 = smul.u32 %s2943, 8
                  %s2946 = scalar_lea.vmem %s2927, %s2944 [#allocation3]
                  %s2947 = scalar_lea.vmem %s2929, %s2945
                $region102: #{tpu_custom_call.1} parent=89 // loop_footer
                  %s2933 = sadd.s32 %s2931, 1
                $region103: #{tpu_custom_call.1} parent=89 // loop_footer_branch
                  %2930 = sbr.rel target = $region99
                $region104: #{tpu_custom_call.1} parent=89 // loop_exit
                  _
              $region90: #{tpu_custom_call.1} parent=67 // pred_fallthru
                _
              // Predicated region
              $region105: #{tpu_custom_call.1} parent=67 // pred_check
                _
              $region106: #{tpu_custom_call.1} parent=67 // pred_check_branch
                %2949 = sbr.rel target = $region108
              $region107: #{tpu_custom_call.1} parent=67 // pred_region
                _
              $region108: #{tpu_custom_call.1} parent=67 // pred_fallthru
                _
            $region68: #{tpu_custom_call.1} parent=63 // pred_fallthru
              _
            // Predicated region
            $region69: #{tpu_custom_call.1} parent=63 // pred_check
              _
            $region70: #{tpu_custom_call.1} parent=63 // pred_check_branch
              %2796 = sbr.rel target = $region72
            $region71: #{tpu_custom_call.1} parent=63 // pred_region
              %s2798 = sshrl.u32 %s2789, 4
              // While loop
              $region73: #{tpu_custom_call.1} parent=71 // loop_pre_header
                _
              $region74: #{tpu_custom_call.1} parent=71 // loop_header
                %s2800 = sphi 0, %s2802
                %p2801 = scmp.ge.s32.totalorder %s2800, %s2798
                %s2805 = sphi 0, %s2842
                %s2806 = sphi %s2773, %s2845
                %s2807 = sphi %s2788, %s2846
              $region75: #{tpu_custom_call.1} parent=71 // loop_header_branch
                %2804 = sbr.rel (%p2801) target = $region79
              $region76: #{tpu_custom_call.1} parent=71 // loop_body
                %v2808 = vld [vmem:[%s2806] sm:$0xff]
                %2809 = vst [vmem:[%s2807] sm:$0xff] %v2808
                %v2810 = vld [vmem:[%s2806 + $0x8] sm:$0xff]
                %2811 = vst [vmem:[%s2807 + $0x8] sm:$0xff] %v2810
                %v2812 = vld [vmem:[%s2806 + $0x10] sm:$0xff]
                %2813 = vst [vmem:[%s2807 + $0x10] sm:$0xff] %v2812
                %v2814 = vld [vmem:[%s2806 + $0x18] sm:$0xff]
                %2815 = vst [vmem:[%s2807 + $0x18] sm:$0xff] %v2814
                %v2816 = vld [vmem:[%s2806 + $0x20] sm:$0xff]
                %2817 = vst [vmem:[%s2807 + $0x20] sm:$0xff] %v2816
                %v2818 = vld [vmem:[%s2806 + $0x28] sm:$0xff]
                %2819 = vst [vmem:[%s2807 + $0x28] sm:$0xff] %v2818
                %v2820 = vld [vmem:[%s2806 + $0x30] sm:$0xff]
                %2821 = vst [vmem:[%s2807 + $0x30] sm:$0xff] %v2820
                %v2822 = vld [vmem:[%s2806 + $0x38] sm:$0xff]
                %2823 = vst [vmem:[%s2807 + $0x38] sm:$0xff] %v2822
                %v2824 = vld [vmem:[%s2806 + $0x40] sm:$0xff]
                %2825 = vst [vmem:[%s2807 + $0x40] sm:$0xff] %v2824
                %v2826 = vld [vmem:[%s2806 + $0x48] sm:$0xff]
                %2827 = vst [vmem:[%s2807 + $0x48] sm:$0xff] %v2826
                %v2828 = vld [vmem:[%s2806 + $0x50] sm:$0xff]
                %2829 = vst [vmem:[%s2807 + $0x50] sm:$0xff] %v2828
                %v2830 = vld [vmem:[%s2806 + $0x58] sm:$0xff]
                %2831 = vst [vmem:[%s2807 + $0x58] sm:$0xff] %v2830
                %v2832 = vld [vmem:[%s2806 + $0x60] sm:$0xff]
                %2833 = vst [vmem:[%s2807 + $0x60] sm:$0xff] %v2832
                %v2834 = vld [vmem:[%s2806 + $0x68] sm:$0xff]
                %2835 = vst [vmem:[%s2807 + $0x68] sm:$0xff] %v2834
                %v2836 = vld [vmem:[%s2806 + $0x70] sm:$0xff]
                %2837 = vst [vmem:[%s2807 + $0x70] sm:$0xff] %v2836
                %v2838 = vld [vmem:[%s2806 + $0x78] sm:$0xff]
                %2839 = vst [vmem:[%s2807 + $0x78] sm:$0xff] %v2838
                %s2840 = sadd.s32 1, %s2805
                %p2841 = scmp.ge.s32.totalorder %s2840, %s2798
                %s2842 = scalar_select %p2841, 0, %s2840
                %s2843 = smul.u32 %s2842, 128
                %s2844 = smul.u32 %s2842, 128
                %s2845 = scalar_lea.vmem %s2773, %s2843 [#allocation3]
                %s2846 = scalar_lea.vmem %s2788, %s2844
              $region77: #{tpu_custom_call.1} parent=71 // loop_footer
                %s2802 = sadd.s32 %s2800, 1
              $region78: #{tpu_custom_call.1} parent=71 // loop_footer_branch
                %2799 = sbr.rel target = $region74
              $region79: #{tpu_custom_call.1} parent=71 // loop_exit
                _
              %s2847 = sshrl.u32 %s2789, 4
              %s2848 = sand.u32 %s2789, 15
              %s2849 = smul.u32 %s2847, 16
              %s2850 = smul.u32 8, %s2849
              %s2851 = scalar_lea.vmem %s2773, %s2850 [#allocation3]
              %s2852 = smul.u32 8, %s2849
              %s2853 = scalar_lea.vmem %s2788, %s2852
              // While loop
              $region80: #{tpu_custom_call.1} parent=71 // loop_pre_header
                _
              $region81: #{tpu_custom_call.1} parent=71 // loop_header
                %s2855 = sphi 0, %s2857
                %p2856 = scmp.ge.s32.totalorder %s2855, %s2848
                %s2860 = sphi 0, %s2867
                %s2861 = sphi %s2851, %s2870
                %s2862 = sphi %s2853, %s2871
              $region82: #{tpu_custom_call.1} parent=71 // loop_header_branch
                %2859 = sbr.rel (%p2856) target = $region86
              $region83: #{tpu_custom_call.1} parent=71 // loop_body
                %v2863 = vld [vmem:[%s2861] sm:$0xff]
                %2864 = vst [vmem:[%s2862] sm:$0xff] %v2863
                %s2865 = sadd.s32 1, %s2860
                %p2866 = scmp.ge.s32.totalorder %s2865, %s2848
                %s2867 = scalar_select %p2866, 0, %s2865
                %s2868 = smul.u32 %s2867, 8
                %s2869 = smul.u32 %s2867, 8
                %s2870 = scalar_lea.vmem %s2851, %s2868 [#allocation3]
                %s2871 = scalar_lea.vmem %s2853, %s2869
              $region84: #{tpu_custom_call.1} parent=71 // loop_footer
                %s2857 = sadd.s32 %s2855, 1
              $region85: #{tpu_custom_call.1} parent=71 // loop_footer_branch
                %2854 = sbr.rel target = $region81
              $region86: #{tpu_custom_call.1} parent=71 // loop_exit
                _
            $region72: #{tpu_custom_call.1} parent=63 // pred_fallthru
              _
          $region64: #{tpu_custom_call.1} parent=59 // pred_fallthru
            _
          %2950 = vnop
        $region60: #{tpu_custom_call.1} parent=55 // pred_fallthru
          _
      $region56: #{tpu_custom_call.1} parent=5 // pred_fallthru
        _
      %p2951 = scmp.le.s32.totalorder 2, %s15
      // Predicated region
      $region109: #{tpu_custom_call.1} parent=5 // pred_check
        %p2952 = pneg %p2951
      $region110: #{tpu_custom_call.1} parent=5 // pred_check_branch
        %2954 = sbr.rel (%p2952) target = $region112
      $region111: #{tpu_custom_call.1} parent=5 // pred_region
        %s2955 = ssub.s32 %s15, 2
        // Predicated region
        $region113: #{tpu_custom_call.1} parent=111 // pred_check
          %p2956 = pneg %p265
        $region114: #{tpu_custom_call.1} parent=111 // pred_check_branch
          %2958 = sbr.rel (%p2956) target = $region116
        $region115: #{tpu_custom_call.1} parent=111 // pred_region
          %s2959 = sand.u32 %s250, 1
          %s2960 = sand.u32 %s250, 1
          %s2961 = smul.addr %s2960, 128
          %s2962 = scalar_lea.vmem [#allocation3], %s2961
        $region116: #{tpu_custom_call.1} parent=111 // pred_fallthru
          _
      $region112: #{tpu_custom_call.1} parent=5 // pred_fallthru
        _
    $region6: #{tpu_custom_call.1} parent=1 // loop_footer
      %s19 = sadd.s32 1, %s15
    $region7: #{tpu_custom_call.1} parent=1 // loop_footer_branch
      %14 = sbr.rel target = $region3
    $region8: #{tpu_custom_call.1} parent=1 // loop_exit
      _

</llo_original>
